<compile_context>
chip_gen: v7x
topology: tpu7x:2x2x1
jax: 0.10.0
libtpu: 0.0.40
codegen_flags: <defaults>
</compile_context>

<pallas_src>
import jax
import jax.numpy as jnp
from jax.experimental import pallas as pl
from jax.experimental.pallas import tpu as pltpu


# ----------------------------- config (synthetic) -----------------------------
class Config:
    n_offsets = 10                     # feat_in = 3 * n_offsets = 30
    light_embedding_dim = 32
    add_color_dist = True              # dist_dim = 1
    appearance_n_fourier_freqs = 4     # 6 * 4 = 24
    appearance_dropout = 0.1           # identity in eval mode

HIDDEN = 256


def dims(cfg: Config):
    dist_dim = 1 if cfg.add_color_dist else 0
    feat_in = 3 * cfg.n_offsets
    d_in = (cfg.light_embedding_dim + feat_in + 3 + dist_dim
            + 6 * cfg.appearance_n_fourier_freqs)
    return d_in, feat_in, dist_dim


def _round_up(x, m):
    return ((x + m - 1) // m) * m


# --------------------------------- kernel -------------------------------------
def _mlp_kernel(c_ref, g_ref, a_ref, v_ref,
                w1c_ref, w1g_ref, w1a_ref, w1v_ref, b1_ref,
                w2_ref, b2_ref, w3_ref, b3_ref, o_ref):
    bf16 = jnp.bfloat16
    f32 = jnp.float32

    # ----- Layer 1: fused concat == four partial dots against W1 row-slices.
    h = jnp.dot(c_ref[...].astype(bf16), w1c_ref[...], preferred_element_type=f32)
    h = h + jnp.dot(g_ref[...].astype(bf16), w1g_ref[...], preferred_element_type=f32)
    h = h + jnp.dot(a_ref[...].astype(bf16), w1a_ref[...], preferred_element_type=f32)
    h = h + jnp.dot(v_ref[...].astype(bf16), w1v_ref[...], preferred_element_type=f32)
    h = jnp.maximum(h + b1_ref[...], 0.0)                     # ReLU (f32)

    # ----- Layer 2 (256x256, MXU in bf16, f32 accumulation).
    h = jnp.dot(h.astype(bf16), w2_ref[...], preferred_element_type=f32) + b2_ref[...]
    h = jnp.maximum(h, 0.0)

    # ----- Layer 3 + Sigmoid. Output is lane-padded to 128 -> dense stores.
    o = jnp.dot(h.astype(bf16), w3_ref[...], preferred_element_type=f32) + b3_ref[...]
    o_ref[...] = jax.nn.sigmoid(o).astype(o_ref.dtype)


# --------------------------------- wrapper -------------------------------------
def light_decoupling_forward(params, gembedding, aembedding, color, local_view,
                             *, tile_n=1024):
    """Pallas implementation of LightDecoupling.forward (eval mode)."""
    w1, b1, w2, b2, w3, b3 = params
    n = color.shape[0]
    d_c = color.shape[1]
    d_g = gembedding.shape[1]
    d_a = aembedding.shape[1]
    d_v = local_view.shape[1]
    d_out = w3.shape[1]

    bf16 = jnp.bfloat16

    # Split W1 by input segment, same order as the torch concat (color, gemb,
    # aemb, local_view). Cast matmul operands to bf16.
    w1b = w1.astype(bf16)
    w1_c = w1b[:d_c]
    w1_g = w1b[d_c:d_c + d_g]
    w1_a = w1b[d_c + d_g:d_c + d_g + d_a]
    w1_v = w1b[d_c + d_g + d_a:]
    w2b = w2.astype(bf16)

    # Lane-pad output layer to a multiple of 128 (zero columns; sliced off below).
    d_out_pad = _round_up(max(d_out, 128), 128)
    w3p = jnp.zeros((HIDDEN, d_out_pad), bf16).at[:, :d_out].set(w3.astype(bf16))
    b3p = jnp.zeros((1, d_out_pad), jnp.float32).at[:, :d_out].set(b3.astype(jnp.float32))
    b1f = b1.astype(jnp.float32)
    b2f = b2.astype(jnp.float32)

    # Row tiling: large tiles amortize per-step overhead; cap so the grid has
    # >= 2 steps (both TensorCores busy on v7x); zero-pad rows to a multiple.
    tile_n = max(8, min(tile_n, _round_up(pl.cdiv(n, 2), 8)))
    n_pad = _round_up(n, tile_n)

    def pad_rows(x):
        return x if n_pad == n else jnp.pad(x, ((0, n_pad - n), (0, 0)))

    color_p = pad_rows(color)
    gemb_p = pad_rows(gembedding)
    aemb_p = pad_rows(aembedding)
    view_p = pad_rows(local_view)

    grid = (n_pad // tile_n,)

    def row_spec(d):
        return pl.BlockSpec((tile_n, d), lambda i: (i, 0))

    def full_spec(a):
        return pl.BlockSpec(a.shape, lambda i: (0, 0))

    out = pl.pallas_call(
        _mlp_kernel,
        out_shape=jax.ShapeDtypeStruct((n_pad, d_out_pad), jnp.float32),
        grid_spec=pltpu.PrefetchScalarGridSpec(
            num_scalar_prefetch=0,
            grid=grid,
            in_specs=[
                row_spec(d_c),                 # color tile
                row_spec(d_g),                 # gembedding tile
                row_spec(d_a),                 # aembedding tile
                row_spec(d_v),                 # local_view tile
                full_spec(w1_c), full_spec(w1_g), full_spec(w1_a), full_spec(w1_v),
                full_spec(b1f),
                full_spec(w2b), full_spec(b2f),
                full_spec(w3p), full_spec(b3p),
            ],
            out_specs=pl.BlockSpec((tile_n, d_out_pad), lambda i: (i, 0)),
        ),
        compiler_params=pltpu.CompilerParams(
            dimension_semantics=("parallel",)),
    )(color_p, gemb_p, aemb_p, view_p,
      w1_c, w1_g, w1_a, w1_v, b1f, w2b, b2f, w3p, b3p)

    # Strip row padding and output lane padding.
    return out[:n, :d_out]


# ----------------------------- parameter init ---------------------------------
def init_params(key, d_in, d_out):
    """Deterministic init mimicking torch.nn.Linear (uniform +/- 1/sqrt(fan_in))."""
    ks = jax.random.split(key, 6)

    def linear(kw, kb, fan_in, fan_out):
        bound = 1.0 / jnp.sqrt(fan_in)
        w = jax.random.uniform(kw, (fan_in, fan_out), jnp.float32, -bound, bound)
        b = jax.random.uniform(kb, (1, fan_out), jnp.float32, -bound, bound)
        return w, b

    w1, b1 = linear(ks[0], ks[1], d_in, HIDDEN)
    w2, b2 = linear(ks[2], ks[3], HIDDEN, HIDDEN)
    w3, b3 = linear(ks[4], ks[5], HIDDEN, d_out)
    return (w1, b1, w2, b2, w3, b3)


# reference in plain JAX (for sanity check)
def _ref_forward(params, gembedding, aembedding, color, local_view):
    w1, b1, w2, b2, w3, b3 = params
    x = jnp.concatenate((color, gembedding, aembedding, local_view), axis=-1)
    h = jax.nn.relu(x @ w1 + b1)
    h = jax.nn.relu(h @ w2 + b2)
    return jax.nn.sigmoid(h @ w3 + b3)


# ----------------------------------- main --------------------------------------
if __name__ == "__main__":
    cfg = Config()
    d_in, feat_in, dist_dim = dims(cfg)          # 90, 30, 1

    key = jax.random.PRNGKey(0)
    k_p, k_g, k_a, k_c, k_v = jax.random.split(key, 5)

    N = 1000                                     # not a tile multiple on purpose
    params = init_params(k_p, d_in, feat_in)

    gembedding = jax.random.normal(k_g, (N, cfg.light_embedding_dim), jnp.float32)
    aembedding = jax.random.normal(k_a, (N, 6 * cfg.appearance_n_fourier_freqs),
                                   jnp.float32)
    color      = jax.random.normal(k_c, (N, feat_in), jnp.float32)
    local_view = jax.random.normal(k_v, (N, 3 + dist_dim), jnp.float32)

    out = light_decoupling_forward(params, gembedding, aembedding, color, local_view)
    out = jax.block_until_ready(out)

    ref = _ref_forward(params, gembedding, aembedding, color, local_view)
    assert out.shape == (N, feat_in)
    # bf16 matmul operands (f32 accumulation) -> loosened tolerance vs f32 ref.
    assert jnp.allclose(out, ref, atol=2e-2, rtol=2e-2)

    print("KERNEL_OK")
</pallas_src>

<mosaic_0001>
module attributes {stable_mosaic.version = 11 : i64} {
  func.func @_mlp_kernel(%arg0: i32, %arg1: memref<504x30xf32, #tpu.memory_space<vmem>>, %arg2: memref<504x32xf32, #tpu.memory_space<vmem>>, %arg3: memref<504x24xf32, #tpu.memory_space<vmem>>, %arg4: memref<504x4xf32, #tpu.memory_space<vmem>>, %arg5: memref<30x256xbf16, #tpu.memory_space<vmem>>, %arg6: memref<32x256xbf16, #tpu.memory_space<vmem>>, %arg7: memref<24x256xbf16, #tpu.memory_space<vmem>>, %arg8: memref<4x256xbf16, #tpu.memory_space<vmem>>, %arg9: memref<1x256xf32, #tpu.memory_space<vmem>>, %arg10: memref<256x256xbf16, #tpu.memory_space<vmem>>, %arg11: memref<1x256xf32, #tpu.memory_space<vmem>>, %arg12: memref<256x128xbf16, #tpu.memory_space<vmem>>, %arg13: memref<1x128xf32, #tpu.memory_space<vmem>>, %arg14: memref<504x128xf32, #tpu.memory_space<vmem>>) attributes {dimension_semantics = [#tpu.dimension_semantics<parallel>], iteration_bounds = array<i64: 2>, scalar_prefetch = 0 : i64, scratch_operands = 0 : i64, tpu.core_type = #tpu.core_type<tc>, window_params = [{transform_indices = @transform_0, window_bounds = array<i64: 504, 30>}, {transform_indices = @transform_1, window_bounds = array<i64: 504, 32>}, {transform_indices = @transform_2, window_bounds = array<i64: 504, 24>}, {transform_indices = @transform_3, window_bounds = array<i64: 504, 4>}, {pipeline_mode = #tpu.pipeline_mode<synchronous>, transform_indices = @transform_4, window_bounds = array<i64: 30, 256>}, {pipeline_mode = #tpu.pipeline_mode<synchronous>, transform_indices = @transform_5, window_bounds = array<i64: 32, 256>}, {pipeline_mode = #tpu.pipeline_mode<synchronous>, transform_indices = @transform_6, window_bounds = array<i64: 24, 256>}, {pipeline_mode = #tpu.pipeline_mode<synchronous>, transform_indices = @transform_7, window_bounds = array<i64: 4, 256>}, {pipeline_mode = #tpu.pipeline_mode<synchronous>, transform_indices = @transform_8, window_bounds = array<i64: 1, 256>}, {pipeline_mode = #tpu.pipeline_mode<synchronous>, transform_indices = @transform_9, window_bounds = array<i64: 256, 256>}, {pipeline_mode = #tpu.pipeline_mode<synchronous>, transform_indices = @transform_10, window_bounds = array<i64: 1, 256>}, {pipeline_mode = #tpu.pipeline_mode<synchronous>, transform_indices = @transform_11, window_bounds = array<i64: 256, 128>}, {pipeline_mode = #tpu.pipeline_mode<synchronous>, transform_indices = @transform_12, window_bounds = array<i64: 1, 128>}, {transform_indices = @transform_13, window_bounds = array<i64: 504, 128>}]} {
    %c0 = arith.constant 0 : index
    %c0_0 = arith.constant 0 : index
    %0 = vector.load %arg1[%c0, %c0_0] : memref<504x30xf32, #tpu.memory_space<vmem>>, vector<504x30xf32>
    %1 = arith.truncf %0 : vector<504x30xf32> to vector<504x30xbf16>
    %c0_1 = arith.constant 0 : index
    %c0_2 = arith.constant 0 : index
    %2 = vector.load %arg5[%c0_1, %c0_2] : memref<30x256xbf16, #tpu.memory_space<vmem>>, vector<30x256xbf16>
    %cst = arith.constant dense<0.000000e+00> : vector<504x256xf32>
    %3 = tpu.matmul %1, %2, %cst {dimension_numbers = #tpu.dot_dimension_numbers<[1], [0], [0], [1], [0, 0, 1, 1], [], []>} : vector<504x30xbf16>, vector<30x256xbf16>, vector<504x256xf32> -> vector<504x256xf32>
    %c0_3 = arith.constant 0 : index
    %c0_4 = arith.constant 0 : index
    %4 = vector.load %arg2[%c0_3, %c0_4] : memref<504x32xf32, #tpu.memory_space<vmem>>, vector<504x32xf32>
    %5 = arith.truncf %4 : vector<504x32xf32> to vector<504x32xbf16>
    %c0_5 = arith.constant 0 : index
    %c0_6 = arith.constant 0 : index
    %6 = vector.load %arg6[%c0_5, %c0_6] : memref<32x256xbf16, #tpu.memory_space<vmem>>, vector<32x256xbf16>
    %cst_7 = arith.constant dense<0.000000e+00> : vector<504x256xf32>
    %7 = tpu.matmul %5, %6, %cst_7 {dimension_numbers = #tpu.dot_dimension_numbers<[1], [0], [0], [1], [0, 0, 1, 1], [], []>} : vector<504x32xbf16>, vector<32x256xbf16>, vector<504x256xf32> -> vector<504x256xf32>
    %8 = arith.addf %3, %7 : vector<504x256xf32>
    %c0_8 = arith.constant 0 : index
    %c0_9 = arith.constant 0 : index
    %9 = vector.load %arg3[%c0_8, %c0_9] : memref<504x24xf32, #tpu.memory_space<vmem>>, vector<504x24xf32>
    %10 = arith.truncf %9 : vector<504x24xf32> to vector<504x24xbf16>
    %c0_10 = arith.constant 0 : index
    %c0_11 = arith.constant 0 : index
    %11 = vector.load %arg7[%c0_10, %c0_11] : memref<24x256xbf16, #tpu.memory_space<vmem>>, vector<24x256xbf16>
    %cst_12 = arith.constant dense<0.000000e+00> : vector<504x256xf32>
    %12 = tpu.matmul %10, %11, %cst_12 {dimension_numbers = #tpu.dot_dimension_numbers<[1], [0], [0], [1], [0, 0, 1, 1], [], []>} : vector<504x24xbf16>, vector<24x256xbf16>, vector<504x256xf32> -> vector<504x256xf32>
    %13 = arith.addf %8, %12 : vector<504x256xf32>
    %c0_13 = arith.constant 0 : index
    %c0_14 = arith.constant 0 : index
    %14 = vector.load %arg4[%c0_13, %c0_14] : memref<504x4xf32, #tpu.memory_space<vmem>>, vector<504x4xf32>
    %15 = arith.truncf %14 : vector<504x4xf32> to vector<504x4xbf16>
    %c0_15 = arith.constant 0 : index
    %c0_16 = arith.constant 0 : index
    %16 = vector.load %arg8[%c0_15, %c0_16] : memref<4x256xbf16, #tpu.memory_space<vmem>>, vector<4x256xbf16>
    %cst_17 = arith.constant dense<0.000000e+00> : vector<504x256xf32>
    %17 = tpu.matmul %15, %16, %cst_17 {dimension_numbers = #tpu.dot_dimension_numbers<[1], [0], [0], [1], [0, 0, 1, 1], [], []>} : vector<504x4xbf16>, vector<4x256xbf16>, vector<504x256xf32> -> vector<504x256xf32>
    %18 = arith.addf %13, %17 : vector<504x256xf32>
    %c0_18 = arith.constant 0 : index
    %c0_19 = arith.constant 0 : index
    %19 = vector.load %arg9[%c0_18, %c0_19] : memref<1x256xf32, #tpu.memory_space<vmem>>, vector<1x256xf32>
    %20 = vector.broadcast %19 : vector<1x256xf32> to vector<504x256xf32>
    %21 = arith.addf %18, %20 : vector<504x256xf32>
    %cst_20 = arith.constant 0.000000e+00 : f32
    %22 = vector.broadcast %cst_20 : f32 to vector<504x256xf32>
    %23 = arith.maximumf %21, %22 : vector<504x256xf32>
    %24 = arith.truncf %23 : vector<504x256xf32> to vector<504x256xbf16>
    %c0_21 = arith.constant 0 : index
    %c0_22 = arith.constant 0 : index
    %25 = vector.load %arg10[%c0_21, %c0_22] : memref<256x256xbf16, #tpu.memory_space<vmem>>, vector<256x256xbf16>
    %cst_23 = arith.constant dense<0.000000e+00> : vector<504x256xf32>
    %26 = tpu.matmul %24, %25, %cst_23 {dimension_numbers = #tpu.dot_dimension_numbers<[1], [0], [0], [1], [0, 0, 1, 1], [], []>} : vector<504x256xbf16>, vector<256x256xbf16>, vector<504x256xf32> -> vector<504x256xf32>
    %c0_24 = arith.constant 0 : index
    %c0_25 = arith.constant 0 : index
    %27 = vector.load %arg11[%c0_24, %c0_25] : memref<1x256xf32, #tpu.memory_space<vmem>>, vector<1x256xf32>
    %28 = vector.broadcast %27 : vector<1x256xf32> to vector<504x256xf32>
    %29 = arith.addf %26, %28 : vector<504x256xf32>
    %cst_26 = arith.constant 0.000000e+00 : f32
    %30 = vector.broadcast %cst_26 : f32 to vector<504x256xf32>
    %31 = arith.maximumf %29, %30 : vector<504x256xf32>
    %32 = arith.truncf %31 : vector<504x256xf32> to vector<504x256xbf16>
    %c0_27 = arith.constant 0 : index
    %c0_28 = arith.constant 0 : index
    %33 = vector.load %arg12[%c0_27, %c0_28] : memref<256x128xbf16, #tpu.memory_space<vmem>>, vector<256x128xbf16>
    %cst_29 = arith.constant dense<0.000000e+00> : vector<504x128xf32>
    %34 = tpu.matmul %32, %33, %cst_29 {dimension_numbers = #tpu.dot_dimension_numbers<[1], [0], [0], [1], [0, 0, 1, 1], [], []>} : vector<504x256xbf16>, vector<256x128xbf16>, vector<504x128xf32> -> vector<504x128xf32>
    %c0_30 = arith.constant 0 : index
    %c0_31 = arith.constant 0 : index
    %35 = vector.load %arg13[%c0_30, %c0_31] : memref<1x128xf32, #tpu.memory_space<vmem>>, vector<1x128xf32>
    %36 = vector.broadcast %35 : vector<1x128xf32> to vector<504x128xf32>
    %37 = arith.addf %34, %36 : vector<504x128xf32>
    %38 = arith.negf %37 : vector<504x128xf32>
    %39 = math.exp %38 : vector<504x128xf32>
    %cst_32 = arith.constant 1.000000e+00 : f32
    %40 = vector.broadcast %cst_32 : f32 to vector<504x128xf32>
    %41 = arith.addf %40, %39 : vector<504x128xf32>
    %42 = arith.divf %40, %41 : vector<504x128xf32>
    %c0_33 = arith.constant 0 : index
    %c0_34 = arith.constant 0 : index
    %43 = vector.load %arg14[%c0_33, %c0_34] : memref<504x128xf32, #tpu.memory_space<vmem>>, vector<504x128xf32>
    tpu.vector_store %arg14[%c0_33, %c0_34], %42 {strides = array<i32>} : memref<504x128xf32, #tpu.memory_space<vmem>>, vector<504x128xf32>,
    return
  }
  func.func @transform_0(%arg0: i32) -> (i32, i32) {
    %c0_i32 = arith.constant 0 : i32
    %c0_i32_0 = arith.constant 0 : i32
    return %arg0, %c0_i32 : i32, i32
  }
  func.func @transform_1(%arg0: i32) -> (i32, i32) {
    %c0_i32 = arith.constant 0 : i32
    %c0_i32_0 = arith.constant 0 : i32
    return %arg0, %c0_i32 : i32, i32
  }
  func.func @transform_2(%arg0: i32) -> (i32, i32) {
    %c0_i32 = arith.constant 0 : i32
    %c0_i32_0 = arith.constant 0 : i32
    return %arg0, %c0_i32 : i32, i32
  }
  func.func @transform_3(%arg0: i32) -> (i32, i32) {
    %c0_i32 = arith.constant 0 : i32
    %c0_i32_0 = arith.constant 0 : i32
    return %arg0, %c0_i32 : i32, i32
  }
  func.func @transform_4(%arg0: i32) -> (i32, i32) {
    %c0_i32 = arith.constant 0 : i32
    %c0_i32_0 = arith.constant 0 : i32
    %c0_i32_1 = arith.constant 0 : i32
    return %c0_i32, %c0_i32_0 : i32, i32
  }
  func.func @transform_5(%arg0: i32) -> (i32, i32) {
    %c0_i32 = arith.constant 0 : i32
    %c0_i32_0 = arith.constant 0 : i32
    %c0_i32_1 = arith.constant 0 : i32
    return %c0_i32, %c0_i32_0 : i32, i32
  }
  func.func @transform_6(%arg0: i32) -> (i32, i32) {
    %c0_i32 = arith.constant 0 : i32
    %c0_i32_0 = arith.constant 0 : i32
    %c0_i32_1 = arith.constant 0 : i32
    return %c0_i32, %c0_i32_0 : i32, i32
  }
  func.func @transform_7(%arg0: i32) -> (i32, i32) {
    %c0_i32 = arith.constant 0 : i32
    %c0_i32_0 = arith.constant 0 : i32
    %c0_i32_1 = arith.constant 0 : i32
    return %c0_i32, %c0_i32_0 : i32, i32
  }
  func.func @transform_8(%arg0: i32) -> (i32, i32) {
    %c0_i32 = arith.constant 0 : i32
    %c0_i32_0 = arith.constant 0 : i32
    %c0_i32_1 = arith.constant 0 : i32
    return %c0_i32, %c0_i32_0 : i32, i32
  }
  func.func @transform_9(%arg0: i32) -> (i32, i32) {
    %c0_i32 = arith.constant 0 : i32
    %c0_i32_0 = arith.constant 0 : i32
    %c0_i32_1 = arith.constant 0 : i32
    return %c0_i32, %c0_i32_0 : i32, i32
  }
  func.func @transform_10(%arg0: i32) -> (i32, i32) {
    %c0_i32 = arith.constant 0 : i32
    %c0_i32_0 = arith.constant 0 : i32
    %c0_i32_1 = arith.constant 0 : i32
    return %c0_i32, %c0_i32_0 : i32, i32
  }
  func.func @transform_11(%arg0: i32) -> (i32, i32) {
    %c0_i32 = arith.constant 0 : i32
    %c0_i32_0 = arith.constant 0 : i32
    %c0_i32_1 = arith.constant 0 : i32
    return %c0_i32, %c0_i32_0 : i32, i32
  }
  func.func @transform_12(%arg0: i32) -> (i32, i32) {
    %c0_i32 = arith.constant 0 : i32
    %c0_i32_0 = arith.constant 0 : i32
    %c0_i32_1 = arith.constant 0 : i32
    return %c0_i32, %c0_i32_0 : i32, i32
  }
  func.func @transform_13(%arg0: i32) -> (i32, i32) {
    %c0_i32 = arith.constant 0 : i32
    %c0_i32_0 = arith.constant 0 : i32
    return %arg0, %c0_i32 : i32, i32
  }
}

</mosaic_0001>

<llo_original>
// kernel: tpu_custom_call.1
$region0: #{tpu_custom_call.1}
  #allocation0 [shape = 'u32[]', space=smem, size = 0x4, offset = 0x4, fixed_abs, tag = 'smem constant byte address 0x4 - core index']
  #allocation1 [shape = 'u32[144,128]{1,0:T(1,128)}', space=vmem, size = 0x12000, scoped, tag = 'internal scratch']
  %s0 = inlined_call_operand.vmem [shape: f32[1008,30], index: 0, kind: input, shape index: {}]
  %s1 = inlined_call_operand.vmem [shape: f32[1008,32], index: 1, kind: input, shape index: {}]
  %s2 = inlined_call_operand.vmem [shape: f32[1008,24], index: 2, kind: input, shape index: {}]
  %s3 = inlined_call_operand.vmem [shape: f32[1008,4], index: 3, kind: input, shape index: {}]
  %s4 = inlined_call_operand.vmem [shape: bf16[30,256], index: 4, kind: input, shape index: {}]
  %s5 = inlined_call_operand.vmem [shape: bf16[32,256], index: 5, kind: input, shape index: {}]
  %s6 = inlined_call_operand.vmem [shape: bf16[24,256], index: 6, kind: input, shape index: {}]
  %s7 = inlined_call_operand.vmem [shape: bf16[4,256], index: 7, kind: input, shape index: {}]
  %s8 = inlined_call_operand.vmem [shape: f32[1,256], index: 8, kind: input, shape index: {}]
  %s9 = inlined_call_operand.vmem [shape: bf16[256,256], index: 9, kind: input, shape index: {}]
  %s10 = inlined_call_operand.vmem [shape: f32[1,256], index: 10, kind: input, shape index: {}]
  %s11 = inlined_call_operand.vmem [shape: bf16[256,128], index: 11, kind: input, shape index: {}]
  %s12 = inlined_call_operand.vmem [shape: f32[1,128], index: 12, kind: input, shape index: {}]
  %s13 = inlined_call_operand.hbm [shape: f32[1008,128], index: 13, kind: output, shape index: {}]
  %s14 = sld [smem:[#allocation0]]
  $region85: #{tpu_custom_call.1} parent=0
    _
  %s16 = ssub.s32 1, %s14
  %s17 = scalar_select 0, %s16, %s14
  $region1: #{tpu_custom_call.1} parent=0
    #allocation2 [shape = 'u8[516096]{0}', space=vmem, size = 0x7e000, scoped, tag = 'output window, operand 0']
    #allocation3 [shape = 's32[2]{0}', space=sflag, size = 0x8, scoped, tag = 'scoped memory for tpu_custom_call.1']
    %18 = vsyncpa [#allocation3], 0
    %s19 = scalar_lea.sflag [#allocation3], 1
    %20 = vsyncpa %s19, 0
    loop: start=0, step=1, limit=4
    $region2: #{tpu_custom_call.1} parent=1 // loop_pre_header
      _
    $region3: #{tpu_custom_call.1} parent=1 // loop_header
      %s22 = sphi 0, %s26
      %p23 = scmp.ge.s32.totalorder %s22, 4
      %s32 = sphi 0, %s34
      %s35 = sphi 0, %s32
      %s36 = sphi 0, %s35
      %s52 = sphi 0, %s36
      %s58 = sphi 0, %s60
      %s61 = sphi 0, %s58
      %s62 = sphi 0, %s61
      %s78 = sphi 0, %s62
      %s84 = sphi 0, %s86
      %s87 = sphi 0, %s84
      %s88 = sphi 0, %s87
      %s104 = sphi 0, %s88
      %s110 = sphi 0, %s112
      %s113 = sphi 0, %s110
      %s114 = sphi 0, %s113
      %s130 = sphi 0, %s114
      %s134 = sphi 0, %s134
      %s136 = sphi 0, %s134
      %s137 = sphi 0, %s136
      %s151 = sphi 0, %s137
      %s155 = sphi 0, %s155
      %s157 = sphi 0, %s155
      %s158 = sphi 0, %s157
      %s172 = sphi 0, %s158
      %s176 = sphi 0, %s176
      %s178 = sphi 0, %s176
      %s179 = sphi 0, %s178
      %s193 = sphi 0, %s179
      %s197 = sphi 0, %s197
      %s199 = sphi 0, %s197
      %s200 = sphi 0, %s199
      %s214 = sphi 0, %s200
      %s218 = sphi 0, %s218
      %s220 = sphi 0, %s218
      %s221 = sphi 0, %s220
      %s235 = sphi 0, %s221
      %s239 = sphi 0, %s239
      %s241 = sphi 0, %s239
      %s242 = sphi 0, %s241
      %s256 = sphi 0, %s242
      %s260 = sphi 0, %s260
      %s262 = sphi 0, %s260
      %s263 = sphi 0, %s262
      %s277 = sphi 0, %s263
      %s281 = sphi 0, %s281
      %s283 = sphi 0, %s281
      %s284 = sphi 0, %s283
      %s298 = sphi 0, %s284
      %s302 = sphi 0, %s302
      %s304 = sphi 0, %s302
      %s305 = sphi 0, %s304
      %s319 = sphi 0, %s305
      %s325 = sphi 0, %s327
      %s328 = sphi 0, %s325
      %s329 = sphi 0, %s328
      %s345 = sphi 0, %s329
    $region4: #{tpu_custom_call.1} parent=1 // loop_header_branch
      %25 = sbr.rel (%p23) target = $region8
    $region5: #{tpu_custom_call.1} parent=1 // loop_body
      %s27 = ssub.s32 %s22, 1
      %s28 = ssub.s32 %s22, 2
      %s29 = sadd.s32 %s22, 1
      %s30 = ssub.s32 %s22, %s29
      %p31 = scmp.eq.s32.totalorder %s30, 0
      %s33 = sadd.s32 %s32, 1
      %s34 = scalar_select %p31, %s32, %s33
      %p37 = pneg %p31
      %p38 = scmp.eq.s32.totalorder %s22, 1
      %p39 = por %p37, %p38
      %p40 = scmp.ne.s32.totalorder %s32, %s35
      %p41 = scmp.eq.s32.totalorder %s22, 0
      %p42 = por %p40, %p41
      %p43 = scmp.ne.s32.totalorder %s32, %s35
      %p44 = scmp.eq.s32.totalorder %s27, 1
      %p45 = por %p43, %p44
      %p46 = scmp.ne.s32.totalorder %s35, %s36
      %p47 = scmp.eq.s32.totalorder %s27, 0
      %p48 = por %p46, %p47
      %p49 = scmp.ne.s32.totalorder %s35, %s36
      %p50 = scmp.eq.s32.totalorder %s28, 1
      %p51 = por %p49, %p50
      %p53 = scmp.ne.s32.totalorder %s36, %s52
      %p54 = scmp.eq.s32.totalorder %s28, 0
      %p55 = por %p53, %p54
      %s56 = ssub.s32 %s22, %s29
      %p57 = scmp.eq.s32.totalorder %s56, 0
      %s59 = sadd.s32 %s58, 1
      %s60 = scalar_select %p57, %s58, %s59
      %p63 = pneg %p57
      %p64 = scmp.eq.s32.totalorder %s22, 1
      %p65 = por %p63, %p64
      %p66 = scmp.ne.s32.totalorder %s58, %s61
      %p67 = scmp.eq.s32.totalorder %s22, 0
      %p68 = por %p66, %p67
      %p69 = scmp.ne.s32.totalorder %s58, %s61
      %p70 = scmp.eq.s32.totalorder %s27, 1
      %p71 = por %p69, %p70
      %p72 = scmp.ne.s32.totalorder %s61, %s62
      %p73 = scmp.eq.s32.totalorder %s27, 0
      %p74 = por %p72, %p73
      %p75 = scmp.ne.s32.totalorder %s61, %s62
      %p76 = scmp.eq.s32.totalorder %s28, 1
      %p77 = por %p75, %p76
      %p79 = scmp.ne.s32.totalorder %s62, %s78
      %p80 = scmp.eq.s32.totalorder %s28, 0
      %p81 = por %p79, %p80
      %s82 = ssub.s32 %s22, %s29
      %p83 = scmp.eq.s32.totalorder %s82, 0
      %s85 = sadd.s32 %s84, 1
      %s86 = scalar_select %p83, %s84, %s85
      %p89 = pneg %p83
      %p90 = scmp.eq.s32.totalorder %s22, 1
      %p91 = por %p89, %p90
      %p92 = scmp.ne.s32.totalorder %s84, %s87
      %p93 = scmp.eq.s32.totalorder %s22, 0
      %p94 = por %p92, %p93
      %p95 = scmp.ne.s32.totalorder %s84, %s87
      %p96 = scmp.eq.s32.totalorder %s27, 1
      %p97 = por %p95, %p96
      %p98 = scmp.ne.s32.totalorder %s87, %s88
      %p99 = scmp.eq.s32.totalorder %s27, 0
      %p100 = por %p98, %p99
      %p101 = scmp.ne.s32.totalorder %s87, %s88
      %p102 = scmp.eq.s32.totalorder %s28, 1
      %p103 = por %p101, %p102
      %p105 = scmp.ne.s32.totalorder %s88, %s104
      %p106 = scmp.eq.s32.totalorder %s28, 0
      %p107 = por %p105, %p106
      %s108 = ssub.s32 %s22, %s29
      %p109 = scmp.eq.s32.totalorder %s108, 0
      %s111 = sadd.s32 %s110, 1
      %s112 = scalar_select %p109, %s110, %s111
      %p115 = pneg %p109
      %p116 = scmp.eq.s32.totalorder %s22, 1
      %p117 = por %p115, %p116
      %p118 = scmp.ne.s32.totalorder %s110, %s113
      %p119 = scmp.eq.s32.totalorder %s22, 0
      %p120 = por %p118, %p119
      %p121 = scmp.ne.s32.totalorder %s110, %s113
      %p122 = scmp.eq.s32.totalorder %s27, 1
      %p123 = por %p121, %p122
      %p124 = scmp.ne.s32.totalorder %s113, %s114
      %p125 = scmp.eq.s32.totalorder %s27, 0
      %p126 = por %p124, %p125
      %p127 = scmp.ne.s32.totalorder %s113, %s114
      %p128 = scmp.eq.s32.totalorder %s28, 1
      %p129 = por %p127, %p128
      %p131 = scmp.ne.s32.totalorder %s114, %s130
      %p132 = scmp.eq.s32.totalorder %s28, 0
      %p133 = por %p131, %p132
      %s135 = sadd.s32 %s134, 1
      %p138 = scmp.eq.s32.totalorder %s22, 1
      %p139 = scmp.ne.s32.totalorder %s134, %s136
      %p140 = scmp.eq.s32.totalorder %s22, 0
      %p141 = por %p139, %p140
      %p142 = scmp.ne.s32.totalorder %s134, %s136
      %p143 = scmp.eq.s32.totalorder %s27, 1
      %p144 = por %p142, %p143
      %p145 = scmp.ne.s32.totalorder %s136, %s137
      %p146 = scmp.eq.s32.totalorder %s27, 0
      %p147 = por %p145, %p146
      %p148 = scmp.ne.s32.totalorder %s136, %s137
      %p149 = scmp.eq.s32.totalorder %s28, 1
      %p150 = por %p148, %p149
      %p152 = scmp.ne.s32.totalorder %s137, %s151
      %p153 = scmp.eq.s32.totalorder %s28, 0
      %p154 = por %p152, %p153
      %s156 = sadd.s32 %s155, 1
      %p159 = scmp.eq.s32.totalorder %s22, 1
      %p160 = scmp.ne.s32.totalorder %s155, %s157
      %p161 = scmp.eq.s32.totalorder %s22, 0
      %p162 = por %p160, %p161
      %p163 = scmp.ne.s32.totalorder %s155, %s157
      %p164 = scmp.eq.s32.totalorder %s27, 1
      %p165 = por %p163, %p164
      %p166 = scmp.ne.s32.totalorder %s157, %s158
      %p167 = scmp.eq.s32.totalorder %s27, 0
      %p168 = por %p166, %p167
      %p169 = scmp.ne.s32.totalorder %s157, %s158
      %p170 = scmp.eq.s32.totalorder %s28, 1
      %p171 = por %p169, %p170
      %p173 = scmp.ne.s32.totalorder %s158, %s172
      %p174 = scmp.eq.s32.totalorder %s28, 0
      %p175 = por %p173, %p174
      %s177 = sadd.s32 %s176, 1
      %p180 = scmp.eq.s32.totalorder %s22, 1
      %p181 = scmp.ne.s32.totalorder %s176, %s178
      %p182 = scmp.eq.s32.totalorder %s22, 0
      %p183 = por %p181, %p182
      %p184 = scmp.ne.s32.totalorder %s176, %s178
      %p185 = scmp.eq.s32.totalorder %s27, 1
      %p186 = por %p184, %p185
      %p187 = scmp.ne.s32.totalorder %s178, %s179
      %p188 = scmp.eq.s32.totalorder %s27, 0
      %p189 = por %p187, %p188
      %p190 = scmp.ne.s32.totalorder %s178, %s179
      %p191 = scmp.eq.s32.totalorder %s28, 1
      %p192 = por %p190, %p191
      %p194 = scmp.ne.s32.totalorder %s179, %s193
      %p195 = scmp.eq.s32.totalorder %s28, 0
      %p196 = por %p194, %p195
      %s198 = sadd.s32 %s197, 1
      %p201 = scmp.eq.s32.totalorder %s22, 1
      %p202 = scmp.ne.s32.totalorder %s197, %s199
      %p203 = scmp.eq.s32.totalorder %s22, 0
      %p204 = por %p202, %p203
      %p205 = scmp.ne.s32.totalorder %s197, %s199
      %p206 = scmp.eq.s32.totalorder %s27, 1
      %p207 = por %p205, %p206
      %p208 = scmp.ne.s32.totalorder %s199, %s200
      %p209 = scmp.eq.s32.totalorder %s27, 0
      %p210 = por %p208, %p209
      %p211 = scmp.ne.s32.totalorder %s199, %s200
      %p212 = scmp.eq.s32.totalorder %s28, 1
      %p213 = por %p211, %p212
      %p215 = scmp.ne.s32.totalorder %s200, %s214
      %p216 = scmp.eq.s32.totalorder %s28, 0
      %p217 = por %p215, %p216
      %s219 = sadd.s32 %s218, 1
      %p222 = scmp.eq.s32.totalorder %s22, 1
      %p223 = scmp.ne.s32.totalorder %s218, %s220
      %p224 = scmp.eq.s32.totalorder %s22, 0
      %p225 = por %p223, %p224
      %p226 = scmp.ne.s32.totalorder %s218, %s220
      %p227 = scmp.eq.s32.totalorder %s27, 1
      %p228 = por %p226, %p227
      %p229 = scmp.ne.s32.totalorder %s220, %s221
      %p230 = scmp.eq.s32.totalorder %s27, 0
      %p231 = por %p229, %p230
      %p232 = scmp.ne.s32.totalorder %s220, %s221
      %p233 = scmp.eq.s32.totalorder %s28, 1
      %p234 = por %p232, %p233
      %p236 = scmp.ne.s32.totalorder %s221, %s235
      %p237 = scmp.eq.s32.totalorder %s28, 0
      %p238 = por %p236, %p237
      %s240 = sadd.s32 %s239, 1
      %p243 = scmp.eq.s32.totalorder %s22, 1
      %p244 = scmp.ne.s32.totalorder %s239, %s241
      %p245 = scmp.eq.s32.totalorder %s22, 0
      %p246 = por %p244, %p245
      %p247 = scmp.ne.s32.totalorder %s239, %s241
      %p248 = scmp.eq.s32.totalorder %s27, 1
      %p249 = por %p247, %p248
      %p250 = scmp.ne.s32.totalorder %s241, %s242
      %p251 = scmp.eq.s32.totalorder %s27, 0
      %p252 = por %p250, %p251
      %p253 = scmp.ne.s32.totalorder %s241, %s242
      %p254 = scmp.eq.s32.totalorder %s28, 1
      %p255 = por %p253, %p254
      %p257 = scmp.ne.s32.totalorder %s242, %s256
      %p258 = scmp.eq.s32.totalorder %s28, 0
      %p259 = por %p257, %p258
      %s261 = sadd.s32 %s260, 1
      %p264 = scmp.eq.s32.totalorder %s22, 1
      %p265 = scmp.ne.s32.totalorder %s260, %s262
      %p266 = scmp.eq.s32.totalorder %s22, 0
      %p267 = por %p265, %p266
      %p268 = scmp.ne.s32.totalorder %s260, %s262
      %p269 = scmp.eq.s32.totalorder %s27, 1
      %p270 = por %p268, %p269
      %p271 = scmp.ne.s32.totalorder %s262, %s263
      %p272 = scmp.eq.s32.totalorder %s27, 0
      %p273 = por %p271, %p272
      %p274 = scmp.ne.s32.totalorder %s262, %s263
      %p275 = scmp.eq.s32.totalorder %s28, 1
      %p276 = por %p274, %p275
      %p278 = scmp.ne.s32.totalorder %s263, %s277
      %p279 = scmp.eq.s32.totalorder %s28, 0
      %p280 = por %p278, %p279
      %s282 = sadd.s32 %s281, 1
      %p285 = scmp.eq.s32.totalorder %s22, 1
      %p286 = scmp.ne.s32.totalorder %s281, %s283
      %p287 = scmp.eq.s32.totalorder %s22, 0
      %p288 = por %p286, %p287
      %p289 = scmp.ne.s32.totalorder %s281, %s283
      %p290 = scmp.eq.s32.totalorder %s27, 1
      %p291 = por %p289, %p290
      %p292 = scmp.ne.s32.totalorder %s283, %s284
      %p293 = scmp.eq.s32.totalorder %s27, 0
      %p294 = por %p292, %p293
      %p295 = scmp.ne.s32.totalorder %s283, %s284
      %p296 = scmp.eq.s32.totalorder %s28, 1
      %p297 = por %p295, %p296
      %p299 = scmp.ne.s32.totalorder %s284, %s298
      %p300 = scmp.eq.s32.totalorder %s28, 0
      %p301 = por %p299, %p300
      %s303 = sadd.s32 %s302, 1
      %p306 = scmp.eq.s32.totalorder %s22, 1
      %p307 = scmp.ne.s32.totalorder %s302, %s304
      %p308 = scmp.eq.s32.totalorder %s22, 0
      %p309 = por %p307, %p308
      %p310 = scmp.ne.s32.totalorder %s302, %s304
      %p311 = scmp.eq.s32.totalorder %s27, 1
      %p312 = por %p310, %p311
      %p313 = scmp.ne.s32.totalorder %s304, %s305
      %p314 = scmp.eq.s32.totalorder %s27, 0
      %p315 = por %p313, %p314
      %p316 = scmp.ne.s32.totalorder %s304, %s305
      %p317 = scmp.eq.s32.totalorder %s28, 1
      %p318 = por %p316, %p317
      %p320 = scmp.ne.s32.totalorder %s305, %s319
      %p321 = scmp.eq.s32.totalorder %s28, 0
      %p322 = por %p320, %p321
      %s323 = ssub.s32 %s22, %s29
      %p324 = scmp.eq.s32.totalorder %s323, 0
      %s326 = sadd.s32 %s325, 1
      %s327 = scalar_select %p324, %s325, %s326
      %p330 = pneg %p324
      %p331 = scmp.eq.s32.totalorder %s22, 1
      %p332 = por %p330, %p331
      %p333 = scmp.ne.s32.totalorder %s325, %s328
      %p334 = scmp.eq.s32.totalorder %s22, 0
      %p335 = por %p333, %p334
      %p336 = scmp.ne.s32.totalorder %s325, %s328
      %p337 = scmp.eq.s32.totalorder %s27, 1
      %p338 = por %p336, %p337
      %p339 = scmp.ne.s32.totalorder %s328, %s329
      %p340 = scmp.eq.s32.totalorder %s27, 0
      %p341 = por %p339, %p340
      %p342 = scmp.ne.s32.totalorder %s328, %s329
      %p343 = scmp.eq.s32.totalorder %s28, 1
      %p344 = por %p342, %p343
      %p346 = scmp.ne.s32.totalorder %s329, %s345
      %p347 = scmp.eq.s32.totalorder %s28, 0
      %p348 = por %p346, %p347
      %p349 = scmp.le.s32.totalorder 1, %s22
      %p350 = scmp.lt.s32.totalorder %s22, 3
      %p351 = pnand %p349, %p350
      %p352 = pneg %p351
      // Predicated region
      $region9: #{tpu_custom_call.1} parent=5 // pred_check
        _
      $region10: #{tpu_custom_call.1} parent=5 // pred_check_branch
        %354 = sbr.rel (%p351) target = $region12
      $region11: #{tpu_custom_call.1} parent=5 // pred_region
        %s355 = ssub.s32 %s22, 1
        // Predicated region
        $region13: #{tpu_custom_call.1} parent=11 // pred_check
          %p356 = pneg %p147
        $region14: #{tpu_custom_call.1} parent=11 // pred_check_branch
          %358 = sbr.rel (%p356) target = $region16
        $region15: #{tpu_custom_call.1} parent=11 // pred_region
          _
        $region16: #{tpu_custom_call.1} parent=11 // pred_fallthru
          _
        // Predicated region
        $region17: #{tpu_custom_call.1} parent=11 // pred_check
          %p359 = pneg %p168
        $region18: #{tpu_custom_call.1} parent=11 // pred_check_branch
          %361 = sbr.rel (%p359) target = $region20
        $region19: #{tpu_custom_call.1} parent=11 // pred_region
          _
        $region20: #{tpu_custom_call.1} parent=11 // pred_fallthru
          _
        // Predicated region
        $region21: #{tpu_custom_call.1} parent=11 // pred_check
          %p362 = pneg %p189
        $region22: #{tpu_custom_call.1} parent=11 // pred_check_branch
          %364 = sbr.rel (%p362) target = $region24
        $region23: #{tpu_custom_call.1} parent=11 // pred_region
          _
        $region24: #{tpu_custom_call.1} parent=11 // pred_fallthru
          _
        // Predicated region
        $region25: #{tpu_custom_call.1} parent=11 // pred_check
          %p365 = pneg %p210
        $region26: #{tpu_custom_call.1} parent=11 // pred_check_branch
          %367 = sbr.rel (%p365) target = $region28
        $region27: #{tpu_custom_call.1} parent=11 // pred_region
          _
        $region28: #{tpu_custom_call.1} parent=11 // pred_fallthru
          _
        // Predicated region
        $region29: #{tpu_custom_call.1} parent=11 // pred_check
          %p368 = pneg %p231
        $region30: #{tpu_custom_call.1} parent=11 // pred_check_branch
          %370 = sbr.rel (%p368) target = $region32
        $region31: #{tpu_custom_call.1} parent=11 // pred_region
          _
        $region32: #{tpu_custom_call.1} parent=11 // pred_fallthru
          _
        // Predicated region
        $region33: #{tpu_custom_call.1} parent=11 // pred_check
          %p371 = pneg %p252
        $region34: #{tpu_custom_call.1} parent=11 // pred_check_branch
          %373 = sbr.rel (%p371) target = $region36
        $region35: #{tpu_custom_call.1} parent=11 // pred_region
          _
        $region36: #{tpu_custom_call.1} parent=11 // pred_fallthru
          _
        // Predicated region
        $region37: #{tpu_custom_call.1} parent=11 // pred_check
          %p374 = pneg %p273
        $region38: #{tpu_custom_call.1} parent=11 // pred_check_branch
          %376 = sbr.rel (%p374) target = $region40
        $region39: #{tpu_custom_call.1} parent=11 // pred_region
          _
        $region40: #{tpu_custom_call.1} parent=11 // pred_fallthru
          _
        // Predicated region
        $region41: #{tpu_custom_call.1} parent=11 // pred_check
          %p377 = pneg %p294
        $region42: #{tpu_custom_call.1} parent=11 // pred_check_branch
          %379 = sbr.rel (%p377) target = $region44
        $region43: #{tpu_custom_call.1} parent=11 // pred_region
          _
        $region44: #{tpu_custom_call.1} parent=11 // pred_fallthru
          _
        // Predicated region
        $region45: #{tpu_custom_call.1} parent=11 // pred_check
          %p380 = pneg %p315
        $region46: #{tpu_custom_call.1} parent=11 // pred_check_branch
          %382 = sbr.rel (%p380) target = $region48
        $region47: #{tpu_custom_call.1} parent=11 // pred_region
          _
        $region48: #{tpu_custom_call.1} parent=11 // pred_fallthru
          _
      $region12: #{tpu_custom_call.1} parent=5 // pred_fallthru
        _
      %p383 = scmp.lt.s32.totalorder %s22, 2
      // Predicated region
      $region49: #{tpu_custom_call.1} parent=5 // pred_check
        %p384 = pneg %p383
      $region50: #{tpu_custom_call.1} parent=5 // pred_check_branch
        %386 = sbr.rel (%p384) target = $region52
      $region51: #{tpu_custom_call.1} parent=5 // pred_region
        // Predicated region
        $region53: #{tpu_custom_call.1} parent=51 // pred_check
          %p387 = pneg %p42
        $region54: #{tpu_custom_call.1} parent=51 // pred_check_branch
          %389 = sbr.rel (%p387) target = $region56
        $region55: #{tpu_custom_call.1} parent=51 // pred_region
          %s390 = smul.u32 63, %s22
          %p391 = scmp.lt.s32.totalorder %s390, 125
          %s392 = scalar_select %p391, %s390, 125
          %s393 = smul.addr %s392, 8
          %s394 = scalar_lea.vmem %s0, %s393
          %s395 = smul.u32 63, %s22
        $region56: #{tpu_custom_call.1} parent=51 // pred_fallthru
          _
        // Predicated region
        $region57: #{tpu_custom_call.1} parent=51 // pred_check
          %p396 = pneg %p68
        $region58: #{tpu_custom_call.1} parent=51 // pred_check_branch
          %398 = sbr.rel (%p396) target = $region60
        $region59: #{tpu_custom_call.1} parent=51 // pred_region
          %s399 = smul.u32 63, %s22
          %p400 = scmp.lt.s32.totalorder %s399, 125
          %s401 = scalar_select %p400, %s399, 125
          %s402 = smul.addr %s401, 8
          %s403 = scalar_lea.vmem %s1, %s402
          %s404 = smul.u32 63, %s22
        $region60: #{tpu_custom_call.1} parent=51 // pred_fallthru
          _
        // Predicated region
        $region61: #{tpu_custom_call.1} parent=51 // pred_check
          %p405 = pneg %p94
        $region62: #{tpu_custom_call.1} parent=51 // pred_check_branch
          %407 = sbr.rel (%p405) target = $region64
        $region63: #{tpu_custom_call.1} parent=51 // pred_region
          %s408 = smul.u32 63, %s22
          %p409 = scmp.lt.s32.totalorder %s408, 125
          %s410 = scalar_select %p409, %s408, 125
          %s411 = smul.addr %s410, 8
          %s412 = scalar_lea.vmem %s2, %s411
          %s413 = smul.u32 63, %s22
        $region64: #{tpu_custom_call.1} parent=51 // pred_fallthru
          _
        // Predicated region
        $region65: #{tpu_custom_call.1} parent=51 // pred_check
          %p414 = pneg %p120
        $region66: #{tpu_custom_call.1} parent=51 // pred_check_branch
          %416 = sbr.rel (%p414) target = $region68
        $region67: #{tpu_custom_call.1} parent=51 // pred_region
          %s417 = smul.u32 63, %s22
          %p418 = scmp.lt.s32.totalorder %s417, 125
          %s419 = scalar_select %p418, %s417, 125
          %s420 = smul.addr %s419, 8
          %s421 = scalar_lea.vmem %s3, %s420
          %s422 = smul.u32 63, %s22
        $region68: #{tpu_custom_call.1} parent=51 // pred_fallthru
          _
      $region52: #{tpu_custom_call.1} parent=5 // pred_fallthru
        _
      %p423 = scmp.le.s32.totalorder 1, %s22
      %p424 = scmp.lt.s32.totalorder %s22, 3
      %p425 = pnand %p423, %p424
      %p426 = pneg %p425
      // Predicated region
      $region69: #{tpu_custom_call.1} parent=5 // pred_check
        _
      $region70: #{tpu_custom_call.1} parent=5 // pred_check_branch
        %428 = sbr.rel (%p425) target = $region72
      $region71: #{tpu_custom_call.1} parent=5 // pred_region
        %s429 = ssub.s32 %s22, 1
        %s430 = smul.u32 63, %s27
        %p431 = scmp.lt.s32.totalorder %s430, 125
        %s432 = scalar_select %p431, %s430, 125
        %s433 = smul.addr %s432, 8
        %s434 = scalar_lea.vmem %s0, %s433
        %p435 = pneg %p48
        %p436 = pneg %p45
        %s437 = smul.u32 63, %s27
        %p438 = scmp.lt.s32.totalorder %s437, 125
        %s439 = scalar_select %p438, %s437, 125
        %s440 = smul.addr %s439, 8
        %s441 = scalar_lea.vmem %s1, %s440
        %p442 = pneg %p74
        %p443 = pneg %p71
        %s444 = smul.u32 63, %s27
        %p445 = scmp.lt.s32.totalorder %s444, 125
        %s446 = scalar_select %p445, %s444, 125
        %s447 = smul.addr %s446, 8
        %s448 = scalar_lea.vmem %s2, %s447
        %p449 = pneg %p100
        %p450 = pneg %p97
        %s451 = smul.u32 63, %s27
        %p452 = scmp.lt.s32.totalorder %s451, 125
        %s453 = scalar_select %p452, %s451, 125
        %s454 = smul.addr %s453, 8
        %s455 = scalar_lea.vmem %s3, %s454
        %p456 = pneg %p126
        %p457 = pneg %p123
        %p458 = pneg %p147
        %p459 = pneg %p144
        %p460 = pneg %p168
        %p461 = pneg %p165
        %p462 = pneg %p189
        %p463 = pneg %p186
        %p464 = pneg %p210
        %p465 = pneg %p207
        %p466 = pneg %p231
        %p467 = pneg %p228
        %p468 = pneg %p252
        %p469 = pneg %p249
        %p470 = pneg %p273
        %p471 = pneg %p270
        %p472 = pneg %p294
        %p473 = pneg %p291
        %p474 = pneg %p315
        %p475 = pneg %p312
        %p476 = pneg %p341
        %p477 = pneg %p338
        %s478 = sand.u32 %s328, 1
        %s479 = scalar_lea.sflag [#allocation3], %s478
        %s480 = sand.u32 %s328, 1
        %s481 = smul.addr %s480, 504
        %s482 = scalar_lea.vmem [#allocation2], %s481
        %s483 = smul.u32 63, %s27
        %p484 = scmp.lt.s32.totalorder %s483, 125
        %s485 = scalar_select %p484, %s483, 125
        %s486 = smul.addr %s485, 8
        %s487 = scalar_lea.vmem %s0, %s486
        %s488 = smul.u32 63, %s27
        %s489 = smul.u32 63, %s27
        %p490 = scmp.lt.s32.totalorder %s489, 125
        %s491 = scalar_select %p490, %s489, 125
        %s492 = smul.addr %s491, 8
        %s493 = scalar_lea.vmem %s1, %s492
        %s494 = smul.u32 63, %s27
        %s495 = smul.u32 63, %s27
        %p496 = scmp.lt.s32.totalorder %s495, 125
        %s497 = scalar_select %p496, %s495, 125
        %s498 = smul.addr %s497, 8
        %s499 = scalar_lea.vmem %s2, %s498
        %s500 = smul.u32 63, %s27
        %s501 = smul.u32 63, %s27
        %p502 = scmp.lt.s32.totalorder %s501, 125
        %s503 = scalar_select %p502, %s501, 125
        %s504 = smul.addr %s503, 8
        %s505 = scalar_lea.vmem %s3, %s504
        %s506 = smul.u32 63, %s27
        %s507 = smul.u32 63, %s27
        %v509 = vld [vmem:[%s487] sm:$0xff]
        %v510 = vld [vmem:[%s487 + $0x8] sm:$0xff]
        %v511 = vld [vmem:[%s487 + $0x10] sm:$0xff]
        %v512 = vld [vmem:[%s487 + $0x18] sm:$0xff]
        %v513 = vld [vmem:[%s487 + $0x20] sm:$0xff]
        %v514 = vld [vmem:[%s487 + $0x28] sm:$0xff]
        %v515 = vld [vmem:[%s487 + $0x30] sm:$0xff]
        %v516 = vld [vmem:[%s487 + $0x38] sm:$0xff]
        %v517 = vld [vmem:[%s487 + $0x40] sm:$0xff]
        %v518 = vld [vmem:[%s487 + $0x48] sm:$0xff]
        %v519 = vld [vmem:[%s487 + $0x50] sm:$0xff]
        %v520 = vld [vmem:[%s487 + $0x58] sm:$0xff]
        %v521 = vld [vmem:[%s487 + $0x60] sm:$0xff]
        %v522 = vld [vmem:[%s487 + $0x68] sm:$0xff]
        %v523 = vld [vmem:[%s487 + $0x70] sm:$0xff]
        %v524 = vld [vmem:[%s487 + $0x78] sm:$0xff]
        %v525 = vld [vmem:[%s487 + $0x80] sm:$0xff]
        %v526 = vld [vmem:[%s487 + $0x88] sm:$0xff]
        %v527 = vld [vmem:[%s487 + $0x90] sm:$0xff]
        %v528 = vld [vmem:[%s487 + $0x98] sm:$0xff]
        %v529 = vld [vmem:[%s487 + $0xa0] sm:$0xff]
        %v530 = vld [vmem:[%s487 + $0xa8] sm:$0xff]
        %v531 = vld [vmem:[%s487 + $0xb0] sm:$0xff]
        %v532 = vld [vmem:[%s487 + $0xb8] sm:$0xff]
        %v533 = vld [vmem:[%s487 + $0xc0] sm:$0xff]
        %v534 = vld [vmem:[%s487 + $0xc8] sm:$0xff]
        %v535 = vld [vmem:[%s487 + $0xd0] sm:$0xff]
        %v536 = vld [vmem:[%s487 + $0xd8] sm:$0xff]
        %v537 = vld [vmem:[%s487 + $0xe0] sm:$0xff]
        %v538 = vld [vmem:[%s487 + $0xe8] sm:$0xff]
        %v539 = vld [vmem:[%s487 + $0xf0] sm:$0xff]
        %v540 = vld [vmem:[%s487 + $0xf8] sm:$0xff]
        %v541 = vld [vmem:[%s487 + $0x100] sm:$0xff]
        %v542 = vld [vmem:[%s487 + $0x108] sm:$0xff]
        %v543 = vld [vmem:[%s487 + $0x110] sm:$0xff]
        %v544 = vld [vmem:[%s487 + $0x118] sm:$0xff]
        %v545 = vld [vmem:[%s487 + $0x120] sm:$0xff]
        %v546 = vld [vmem:[%s487 + $0x128] sm:$0xff]
        %v547 = vld [vmem:[%s487 + $0x130] sm:$0xff]
        %v548 = vld [vmem:[%s487 + $0x138] sm:$0xff]
        %v549 = vld [vmem:[%s487 + $0x140] sm:$0xff]
        %v550 = vld [vmem:[%s487 + $0x148] sm:$0xff]
        %v551 = vld [vmem:[%s487 + $0x150] sm:$0xff]
        %v552 = vld [vmem:[%s487 + $0x158] sm:$0xff]
        %v553 = vld [vmem:[%s487 + $0x160] sm:$0xff]
        %v554 = vld [vmem:[%s487 + $0x168] sm:$0xff]
        %v555 = vld [vmem:[%s487 + $0x170] sm:$0xff]
        %v556 = vld [vmem:[%s487 + $0x178] sm:$0xff]
        %v557 = vld [vmem:[%s487 + $0x180] sm:$0xff]
        %v558 = vld [vmem:[%s487 + $0x188] sm:$0xff]
        %v559 = vld [vmem:[%s487 + $0x190] sm:$0xff]
        %v560 = vld [vmem:[%s487 + $0x198] sm:$0xff]
        %v561 = vld [vmem:[%s487 + $0x1a0] sm:$0xff]
        %v562 = vld [vmem:[%s487 + $0x1a8] sm:$0xff]
        %v563 = vld [vmem:[%s487 + $0x1b0] sm:$0xff]
        %v564 = vld [vmem:[%s487 + $0x1b8] sm:$0xff]
        %v565 = vld [vmem:[%s487 + $0x1c0] sm:$0xff]
        %v566 = vld [vmem:[%s487 + $0x1c8] sm:$0xff]
        %v567 = vld [vmem:[%s487 + $0x1d0] sm:$0xff]
        %v568 = vld [vmem:[%s487 + $0x1d8] sm:$0xff]
        %v569 = vld [vmem:[%s487 + $0x1e0] sm:$0xff]
        %v570 = vld [vmem:[%s487 + $0x1e8] sm:$0xff]
        %v571 = vld [vmem:[%s487 + $0x1f0] sm:$0xff]
        %v572 = vpack.c.bf16 %v510, %v509
        %v573 = vpack.c.bf16 %v512, %v511
        %v574 = vpack.c.bf16 %v514, %v513
        %v575 = vpack.c.bf16 %v516, %v515
        %v576 = vpack.c.bf16 %v518, %v517
        %v577 = vpack.c.bf16 %v520, %v519
        %v578 = vpack.c.bf16 %v522, %v521
        %v579 = vpack.c.bf16 %v524, %v523
        %v580 = vpack.c.bf16 %v526, %v525
        %v581 = vpack.c.bf16 %v528, %v527
        %v582 = vpack.c.bf16 %v530, %v529
        %v583 = vpack.c.bf16 %v532, %v531
        %v584 = vpack.c.bf16 %v534, %v533
        %v585 = vpack.c.bf16 %v536, %v535
        %v586 = vpack.c.bf16 %v538, %v537
        %v587 = vpack.c.bf16 %v540, %v539
        %v588 = vpack.c.bf16 %v542, %v541
        %v589 = vpack.c.bf16 %v544, %v543
        %v590 = vpack.c.bf16 %v546, %v545
        %v591 = vpack.c.bf16 %v548, %v547
        %v592 = vpack.c.bf16 %v550, %v549
        %v593 = vpack.c.bf16 %v552, %v551
        %v594 = vpack.c.bf16 %v554, %v553
        %v595 = vpack.c.bf16 %v556, %v555
        %v596 = vpack.c.bf16 %v558, %v557
        %v597 = vpack.c.bf16 %v560, %v559
        %v598 = vpack.c.bf16 %v562, %v561
        %v599 = vpack.c.bf16 %v564, %v563
        %v600 = vpack.c.bf16 %v566, %v565
        %v601 = vpack.c.bf16 %v568, %v567
        %v602 = vpack.c.bf16 %v570, %v569
        %v603 = vpack.c.bf16 %v571, %v571
        %v604 = vld [vmem:[%s4] sm:$0xff]
        %v605 = vld [vmem:[%s4 + $0x8] sm:$0xff]
        %v606 = vld [vmem:[%s4 + $0x10] sm:$0xff]
        %v607 = vld [vmem:[%s4 + $0x18] sm:$0x77]
        %v608 = vld [vmem:[%s493] sm:$0xff]
        %v609 = vld [vmem:[%s493 + $0x8] sm:$0xff]
        %v610 = vld [vmem:[%s493 + $0x10] sm:$0xff]
        %v611 = vld [vmem:[%s493 + $0x18] sm:$0xff]
        %v612 = vld [vmem:[%s493 + $0x20] sm:$0xff]
        %v613 = vld [vmem:[%s493 + $0x28] sm:$0xff]
        %v614 = vld [vmem:[%s493 + $0x30] sm:$0xff]
        %v615 = vld [vmem:[%s493 + $0x38] sm:$0xff]
        %v616 = vld [vmem:[%s493 + $0x40] sm:$0xff]
        %v617 = vld [vmem:[%s493 + $0x48] sm:$0xff]
        %v618 = vld [vmem:[%s493 + $0x50] sm:$0xff]
        %v619 = vld [vmem:[%s493 + $0x58] sm:$0xff]
        %v620 = vld [vmem:[%s493 + $0x60] sm:$0xff]
        %v621 = vld [vmem:[%s493 + $0x68] sm:$0xff]
        %v622 = vld [vmem:[%s493 + $0x70] sm:$0xff]
        %v623 = vld [vmem:[%s493 + $0x78] sm:$0xff]
        %v624 = vld [vmem:[%s493 + $0x80] sm:$0xff]
        %v625 = vld [vmem:[%s493 + $0x88] sm:$0xff]
        %v626 = vld [vmem:[%s493 + $0x90] sm:$0xff]
        %v627 = vld [vmem:[%s493 + $0x98] sm:$0xff]
        %v628 = vld [vmem:[%s493 + $0xa0] sm:$0xff]
        %v629 = vld [vmem:[%s493 + $0xa8] sm:$0xff]
        %v630 = vld [vmem:[%s493 + $0xb0] sm:$0xff]
        %v631 = vld [vmem:[%s493 + $0xb8] sm:$0xff]
        %v632 = vld [vmem:[%s493 + $0xc0] sm:$0xff]
        %v633 = vld [vmem:[%s493 + $0xc8] sm:$0xff]
        %v634 = vld [vmem:[%s493 + $0xd0] sm:$0xff]
        %v635 = vld [vmem:[%s493 + $0xd8] sm:$0xff]
        %v636 = vld [vmem:[%s493 + $0xe0] sm:$0xff]
        %v637 = vld [vmem:[%s493 + $0xe8] sm:$0xff]
        %v638 = vld [vmem:[%s493 + $0xf0] sm:$0xff]
        %v639 = vld [vmem:[%s493 + $0xf8] sm:$0xff]
        %v640 = vld [vmem:[%s493 + $0x100] sm:$0xff]
        %v641 = vld [vmem:[%s493 + $0x108] sm:$0xff]
        %v642 = vld [vmem:[%s493 + $0x110] sm:$0xff]
        %v643 = vld [vmem:[%s493 + $0x118] sm:$0xff]
        %v644 = vld [vmem:[%s493 + $0x120] sm:$0xff]
        %v645 = vld [vmem:[%s493 + $0x128] sm:$0xff]
        %v646 = vld [vmem:[%s493 + $0x130] sm:$0xff]
        %v647 = vld [vmem:[%s493 + $0x138] sm:$0xff]
        %v648 = vld [vmem:[%s493 + $0x140] sm:$0xff]
        %v649 = vld [vmem:[%s493 + $0x148] sm:$0xff]
        %v650 = vld [vmem:[%s493 + $0x150] sm:$0xff]
        %v651 = vld [vmem:[%s493 + $0x158] sm:$0xff]
        %v652 = vld [vmem:[%s493 + $0x160] sm:$0xff]
        %v653 = vld [vmem:[%s493 + $0x168] sm:$0xff]
        %v654 = vld [vmem:[%s493 + $0x170] sm:$0xff]
        %v655 = vld [vmem:[%s493 + $0x178] sm:$0xff]
        %v656 = vld [vmem:[%s493 + $0x180] sm:$0xff]
        %v657 = vld [vmem:[%s493 + $0x188] sm:$0xff]
        %v658 = vld [vmem:[%s493 + $0x190] sm:$0xff]
        %v659 = vld [vmem:[%s493 + $0x198] sm:$0xff]
        %v660 = vld [vmem:[%s493 + $0x1a0] sm:$0xff]
        %v661 = vld [vmem:[%s493 + $0x1a8] sm:$0xff]
        %v662 = vld [vmem:[%s493 + $0x1b0] sm:$0xff]
        %v663 = vld [vmem:[%s493 + $0x1b8] sm:$0xff]
        %v664 = vld [vmem:[%s493 + $0x1c0] sm:$0xff]
        %v665 = vld [vmem:[%s493 + $0x1c8] sm:$0xff]
        %v666 = vld [vmem:[%s493 + $0x1d0] sm:$0xff]
        %v667 = vld [vmem:[%s493 + $0x1d8] sm:$0xff]
        %v668 = vld [vmem:[%s493 + $0x1e0] sm:$0xff]
        %v669 = vld [vmem:[%s493 + $0x1e8] sm:$0xff]
        %v670 = vld [vmem:[%s493 + $0x1f0] sm:$0xff]
        %v671 = vpack.c.bf16 %v609, %v608
        %v672 = vpack.c.bf16 %v611, %v610
        %v673 = vpack.c.bf16 %v613, %v612
        %v674 = vpack.c.bf16 %v615, %v614
        %v675 = vpack.c.bf16 %v617, %v616
        %v676 = vpack.c.bf16 %v619, %v618
        %v677 = vpack.c.bf16 %v621, %v620
        %v678 = vpack.c.bf16 %v623, %v622
        %v679 = vpack.c.bf16 %v625, %v624
        %v680 = vpack.c.bf16 %v627, %v626
        %v681 = vpack.c.bf16 %v629, %v628
        %v682 = vpack.c.bf16 %v631, %v630
        %v683 = vpack.c.bf16 %v633, %v632
        %v684 = vpack.c.bf16 %v635, %v634
        %v685 = vpack.c.bf16 %v637, %v636
        %v686 = vpack.c.bf16 %v639, %v638
        %v687 = vpack.c.bf16 %v641, %v640
        %v688 = vpack.c.bf16 %v643, %v642
        %v689 = vpack.c.bf16 %v645, %v644
        %v690 = vpack.c.bf16 %v647, %v646
        %v691 = vpack.c.bf16 %v649, %v648
        %v692 = vpack.c.bf16 %v651, %v650
        %v693 = vpack.c.bf16 %v653, %v652
        %v694 = vpack.c.bf16 %v655, %v654
        %v695 = vpack.c.bf16 %v657, %v656
        %v696 = vpack.c.bf16 %v659, %v658
        %v697 = vpack.c.bf16 %v661, %v660
        %v698 = vpack.c.bf16 %v663, %v662
        %v699 = vpack.c.bf16 %v665, %v664
        %v700 = vpack.c.bf16 %v667, %v666
        %v701 = vpack.c.bf16 %v669, %v668
        %v702 = vpack.c.bf16 %v670, %v670
        %v703 = vld [vmem:[%s5] sm:$0xff]
        %v704 = vld [vmem:[%s5 + $0x8] sm:$0xff]
        %v705 = vld [vmem:[%s5 + $0x10] sm:$0xff]
        %v706 = vld [vmem:[%s5 + $0x18] sm:$0xff]
        %v711 = vunpack.c.l.b16 %v703
        %v712 = vunpack.c.h.b16 %v703
        %v713 = vunpack.c.l.b16 %v704
        %v714 = vunpack.c.h.b16 %v704
        %v715 = vunpack.c.l.b16 %v705
        %v716 = vunpack.c.h.b16 %v705
        %v717 = vunpack.c.l.b16 %v706
        %v718 = vunpack.c.h.b16 %v706
        %v719 = vpack.c.b16 %v713, %v711
        %v720 = vpack.c.b16 %v714, %v712
        %v721 = vpack.c.b16 %v717, %v715
        %v722 = vpack.c.b16 %v718, %v716
        %vm727 = vcmask 261120
        %v729 = vsel %vm727, %v671, 0
        %v732 = vsel %vm727, %v672, 0
        %v735 = vsel %vm727, %v673, 0
        %v738 = vsel %vm727, %v674, 0
        %v741 = vsel %vm727, %v675, 0
        %v744 = vsel %vm727, %v676, 0
        %v747 = vsel %vm727, %v677, 0
        %v750 = vsel %vm727, %v678, 0
        %v753 = vsel %vm727, %v679, 0
        %v756 = vsel %vm727, %v680, 0
        %v759 = vsel %vm727, %v681, 0
        %v762 = vsel %vm727, %v682, 0
        %v765 = vsel %vm727, %v683, 0
        %v768 = vsel %vm727, %v684, 0
        %v771 = vsel %vm727, %v685, 0
        %v774 = vsel %vm727, %v686, 0
        %v777 = vsel %vm727, %v687, 0
        %v780 = vsel %vm727, %v688, 0
        %v783 = vsel %vm727, %v689, 0
        %v786 = vsel %vm727, %v690, 0
        %v789 = vsel %vm727, %v691, 0
        %v792 = vsel %vm727, %v692, 0
        %v795 = vsel %vm727, %v693, 0
        %v798 = vsel %vm727, %v694, 0
        %v801 = vsel %vm727, %v695, 0
        %v804 = vsel %vm727, %v696, 0
        %v807 = vsel %vm727, %v697, 0
        %v810 = vsel %vm727, %v698, 0
        %v813 = vsel %vm727, %v699, 0
        %v816 = vsel %vm727, %v700, 0
        %v819 = vsel %vm727, %v701, 0
        %v822 = vsel %vm727, %v702, 0
        %824 = vmatprep.subr.bf16.mxu0 %v720
        %825 = vmatpush1.bf16.msra.mxu0 %v719
        %826 = vmatprep.subr.bf16.mxu0 %v722
        %827 = vmatpush1.bf16.msra.mxu0 %v721
        %828 = vmatprep.subr.bf16.mxu0 0
        %829 = vmatpush1.bf16.msra.mxu0 0
        %830 = vmatprep.subr.bf16.mxu0 0
        %831 = vmatpush1.bf16.msra.mxu0 0
        %832 = vmatprep.subr.bf16.mxu0 0
        %833 = vmatpush1.bf16.msra.mxu0 0
        %834 = vmatprep.subr.bf16.mxu0 0
        %835 = vmatpush1.bf16.msra.mxu0 0
        %836 = vmatprep.subr.bf16.mxu0 0
        %837 = vmatpush1.bf16.msra.mxu0 0
        %838 = vmatprep.subr.bf16.mxu0 0
        %839 = vmatpush1.bf16.msra.mxu0 0
        %840 = vmatprep.subr.bf16.mxu0 0
        %841 = vmatpush1.bf16.msra.mxu0 0
        %842 = vmatprep.subr.bf16.mxu0 0
        %843 = vmatpush1.bf16.msra.mxu0 0
        %844 = vmatprep.subr.bf16.mxu0 0
        %845 = vmatpush1.bf16.msra.mxu0 0
        %846 = vmatprep.subr.bf16.mxu0 0
        %847 = vmatpush1.bf16.msra.mxu0 0
        %848 = vmatprep.subr.bf16.mxu0 0
        %849 = vmatpush1.bf16.msra.mxu0 0
        %850 = vmatprep.subr.bf16.mxu0 0
        %851 = vmatpush1.bf16.msra.mxu0 0
        %852 = vmatprep.subr.bf16.mxu0 0
        %853 = vmatpush1.bf16.msra.mxu0 0
        %854 = vmatprep.subr.bf16.mxu0 0
        %855 = vmatpush1.bf16.msra.mxu0 0
        %856 = vmatprep.mubr.bf16.mxu0 0
        %857 = vmatmul.mubr.bf16.gmra.mrb[0].mxu0 %v729
        %v858 = vpop.f32.mrb[0].mxu0
        %v859 = vadd.f32 0.0, %v858
        %v860 = vpop.f32.mrb[0].mxu0
        %v861 = vadd.f32 0.0, %v860
        %v862 = vpop.f32.mrb[0].mxu0
        %v863 = vadd.f32 0.0, %v862
        %v864 = vpop.f32.mrb[0].mxu0
        %v865 = vadd.f32 0.0, %v864
        %866 = vmatprep.mubr.bf16.mxu0 0
        %867 = vmatmul.mubr.bf16.gmra.mrb[0].mxu0 %v732
        %v868 = vpop.f32.mrb[0].mxu0
        %v869 = vadd.f32 0.0, %v868
        %v870 = vpop.f32.mrb[0].mxu0
        %v871 = vadd.f32 0.0, %v870
        %v872 = vpop.f32.mrb[0].mxu0
        %v873 = vadd.f32 0.0, %v872
        %v874 = vpop.f32.mrb[0].mxu0
        %v875 = vadd.f32 0.0, %v874
        %876 = vmatprep.mubr.bf16.mxu0 0
        %877 = vmatmul.mubr.bf16.gmra.mrb[0].mxu0 %v735
        %v878 = vpop.f32.mrb[0].mxu0
        %v879 = vadd.f32 0.0, %v878
        %v880 = vpop.f32.mrb[0].mxu0
        %v881 = vadd.f32 0.0, %v880
        %v882 = vpop.f32.mrb[0].mxu0
        %v883 = vadd.f32 0.0, %v882
        %v884 = vpop.f32.mrb[0].mxu0
        %v885 = vadd.f32 0.0, %v884
        %886 = vmatprep.mubr.bf16.mxu0 0
        %887 = vmatmul.mubr.bf16.gmra.mrb[0].mxu0 %v738
        %v888 = vpop.f32.mrb[0].mxu0
        %v889 = vadd.f32 0.0, %v888
        %v890 = vpop.f32.mrb[0].mxu0
        %v891 = vadd.f32 0.0, %v890
        %v892 = vpop.f32.mrb[0].mxu0
        %v893 = vadd.f32 0.0, %v892
        %v894 = vpop.f32.mrb[0].mxu0
        %v895 = vadd.f32 0.0, %v894
        %896 = vmatprep.mubr.bf16.mxu0 0
        %897 = vmatmul.mubr.bf16.gmra.mrb[0].mxu0 %v741
        %v898 = vpop.f32.mrb[0].mxu0
        %v899 = vadd.f32 0.0, %v898
        %v900 = vpop.f32.mrb[0].mxu0
        %v901 = vadd.f32 0.0, %v900
        %v902 = vpop.f32.mrb[0].mxu0
        %v903 = vadd.f32 0.0, %v902
        %v904 = vpop.f32.mrb[0].mxu0
        %v905 = vadd.f32 0.0, %v904
        %906 = vmatprep.mubr.bf16.mxu0 0
        %907 = vmatmul.mubr.bf16.gmra.mrb[0].mxu0 %v744
        %v908 = vpop.f32.mrb[0].mxu0
        %v909 = vadd.f32 0.0, %v908
        %v910 = vpop.f32.mrb[0].mxu0
        %v911 = vadd.f32 0.0, %v910
        %v912 = vpop.f32.mrb[0].mxu0
        %v913 = vadd.f32 0.0, %v912
        %v914 = vpop.f32.mrb[0].mxu0
        %v915 = vadd.f32 0.0, %v914
        %916 = vmatprep.mubr.bf16.mxu0 0
        %917 = vmatmul.mubr.bf16.gmra.mrb[0].mxu0 %v747
        %v918 = vpop.f32.mrb[0].mxu0
        %v919 = vadd.f32 0.0, %v918
        %v920 = vpop.f32.mrb[0].mxu0
        %v921 = vadd.f32 0.0, %v920
        %v922 = vpop.f32.mrb[0].mxu0
        %v923 = vadd.f32 0.0, %v922
        %v924 = vpop.f32.mrb[0].mxu0
        %v925 = vadd.f32 0.0, %v924
        %926 = vmatprep.mubr.bf16.mxu0 0
        %927 = vmatmul.mubr.bf16.gmra.mrb[0].mxu0 %v750
        %v928 = vpop.f32.mrb[0].mxu0
        %v929 = vadd.f32 0.0, %v928
        %v930 = vpop.f32.mrb[0].mxu0
        %v931 = vadd.f32 0.0, %v930
        %v932 = vpop.f32.mrb[0].mxu0
        %v933 = vadd.f32 0.0, %v932
        %v934 = vpop.f32.mrb[0].mxu0
        %v935 = vadd.f32 0.0, %v934
        %936 = vmatprep.mubr.bf16.mxu0 0
        %937 = vmatmul.mubr.bf16.gmra.mrb[0].mxu0 %v753
        %v938 = vpop.f32.mrb[0].mxu0
        %v939 = vadd.f32 0.0, %v938
        %v940 = vpop.f32.mrb[0].mxu0
        %v941 = vadd.f32 0.0, %v940
        %v942 = vpop.f32.mrb[0].mxu0
        %v943 = vadd.f32 0.0, %v942
        %v944 = vpop.f32.mrb[0].mxu0
        %v945 = vadd.f32 0.0, %v944
        %946 = vmatprep.mubr.bf16.mxu0 0
        %947 = vmatmul.mubr.bf16.gmra.mrb[0].mxu0 %v756
        %v948 = vpop.f32.mrb[0].mxu0
        %v949 = vadd.f32 0.0, %v948
        %v950 = vpop.f32.mrb[0].mxu0
        %v951 = vadd.f32 0.0, %v950
        %v952 = vpop.f32.mrb[0].mxu0
        %v953 = vadd.f32 0.0, %v952
        %v954 = vpop.f32.mrb[0].mxu0
        %v955 = vadd.f32 0.0, %v954
        %956 = vmatprep.mubr.bf16.mxu0 0
        %957 = vmatmul.mubr.bf16.gmra.mrb[0].mxu0 %v759
        %v958 = vpop.f32.mrb[0].mxu0
        %v959 = vadd.f32 0.0, %v958
        %v960 = vpop.f32.mrb[0].mxu0
        %v961 = vadd.f32 0.0, %v960
        %v962 = vpop.f32.mrb[0].mxu0
        %v963 = vadd.f32 0.0, %v962
        %v964 = vpop.f32.mrb[0].mxu0
        %v965 = vadd.f32 0.0, %v964
        %966 = vmatprep.mubr.bf16.mxu0 0
        %967 = vmatmul.mubr.bf16.gmra.mrb[0].mxu0 %v762
        %v968 = vpop.f32.mrb[0].mxu0
        %v969 = vadd.f32 0.0, %v968
        %v970 = vpop.f32.mrb[0].mxu0
        %v971 = vadd.f32 0.0, %v970
        %v972 = vpop.f32.mrb[0].mxu0
        %v973 = vadd.f32 0.0, %v972
        %v974 = vpop.f32.mrb[0].mxu0
        %v975 = vadd.f32 0.0, %v974
        %976 = vmatprep.mubr.bf16.mxu0 0
        %977 = vmatmul.mubr.bf16.gmra.mrb[0].mxu0 %v765
        %v978 = vpop.f32.mrb[0].mxu0
        %v979 = vadd.f32 0.0, %v978
        %v980 = vpop.f32.mrb[0].mxu0
        %v981 = vadd.f32 0.0, %v980
        %v982 = vpop.f32.mrb[0].mxu0
        %v983 = vadd.f32 0.0, %v982
        %v984 = vpop.f32.mrb[0].mxu0
        %v985 = vadd.f32 0.0, %v984
        %986 = vmatprep.mubr.bf16.mxu0 0
        %987 = vmatmul.mubr.bf16.gmra.mrb[0].mxu0 %v768
        %v988 = vpop.f32.mrb[0].mxu0
        %v989 = vadd.f32 0.0, %v988
        %v990 = vpop.f32.mrb[0].mxu0
        %v991 = vadd.f32 0.0, %v990
        %v992 = vpop.f32.mrb[0].mxu0
        %v993 = vadd.f32 0.0, %v992
        %v994 = vpop.f32.mrb[0].mxu0
        %v995 = vadd.f32 0.0, %v994
        %996 = vmatprep.mubr.bf16.mxu0 0
        %997 = vmatmul.mubr.bf16.gmra.mrb[0].mxu0 %v771
        %v998 = vpop.f32.mrb[0].mxu0
        %v999 = vadd.f32 0.0, %v998
        %v1000 = vpop.f32.mrb[0].mxu0
        %v1001 = vadd.f32 0.0, %v1000
        %v1002 = vpop.f32.mrb[0].mxu0
        %v1003 = vadd.f32 0.0, %v1002
        %v1004 = vpop.f32.mrb[0].mxu0
        %v1005 = vadd.f32 0.0, %v1004
        %1006 = vmatprep.mubr.bf16.mxu0 0
        %1007 = vmatmul.mubr.bf16.gmra.mrb[0].mxu0 %v774
        %v1008 = vpop.f32.mrb[0].mxu0
        %v1009 = vadd.f32 0.0, %v1008
        %v1010 = vpop.f32.mrb[0].mxu0
        %v1011 = vadd.f32 0.0, %v1010
        %v1012 = vpop.f32.mrb[0].mxu0
        %v1013 = vadd.f32 0.0, %v1012
        %v1014 = vpop.f32.mrb[0].mxu0
        %v1015 = vadd.f32 0.0, %v1014
        %1016 = vmatprep.mubr.bf16.mxu0 0
        %1017 = vmatmul.mubr.bf16.gmra.mrb[0].mxu0 %v777
        %v1018 = vpop.f32.mrb[0].mxu0
        %v1019 = vadd.f32 0.0, %v1018
        %v1020 = vpop.f32.mrb[0].mxu0
        %v1021 = vadd.f32 0.0, %v1020
        %v1022 = vpop.f32.mrb[0].mxu0
        %v1023 = vadd.f32 0.0, %v1022
        %v1024 = vpop.f32.mrb[0].mxu0
        %v1025 = vadd.f32 0.0, %v1024
        %1026 = vmatprep.mubr.bf16.mxu0 0
        %1027 = vmatmul.mubr.bf16.gmra.mrb[0].mxu0 %v780
        %v1028 = vpop.f32.mrb[0].mxu0
        %v1029 = vadd.f32 0.0, %v1028
        %v1030 = vpop.f32.mrb[0].mxu0
        %v1031 = vadd.f32 0.0, %v1030
        %v1032 = vpop.f32.mrb[0].mxu0
        %v1033 = vadd.f32 0.0, %v1032
        %v1034 = vpop.f32.mrb[0].mxu0
        %v1035 = vadd.f32 0.0, %v1034
        %1036 = vmatprep.mubr.bf16.mxu0 0
        %1037 = vmatmul.mubr.bf16.gmra.mrb[0].mxu0 %v783
        %v1038 = vpop.f32.mrb[0].mxu0
        %v1039 = vadd.f32 0.0, %v1038
        %v1040 = vpop.f32.mrb[0].mxu0
        %v1041 = vadd.f32 0.0, %v1040
        %v1042 = vpop.f32.mrb[0].mxu0
        %v1043 = vadd.f32 0.0, %v1042
        %v1044 = vpop.f32.mrb[0].mxu0
        %v1045 = vadd.f32 0.0, %v1044
        %1046 = vmatprep.mubr.bf16.mxu0 0
        %1047 = vmatmul.mubr.bf16.gmra.mrb[0].mxu0 %v786
        %v1048 = vpop.f32.mrb[0].mxu0
        %v1049 = vadd.f32 0.0, %v1048
        %v1050 = vpop.f32.mrb[0].mxu0
        %v1051 = vadd.f32 0.0, %v1050
        %v1052 = vpop.f32.mrb[0].mxu0
        %v1053 = vadd.f32 0.0, %v1052
        %v1054 = vpop.f32.mrb[0].mxu0
        %v1055 = vadd.f32 0.0, %v1054
        %1056 = vmatprep.mubr.bf16.mxu0 0
        %1057 = vmatmul.mubr.bf16.gmra.mrb[0].mxu0 %v789
        %v1058 = vpop.f32.mrb[0].mxu0
        %v1059 = vadd.f32 0.0, %v1058
        %v1060 = vpop.f32.mrb[0].mxu0
        %v1061 = vadd.f32 0.0, %v1060
        %v1062 = vpop.f32.mrb[0].mxu0
        %v1063 = vadd.f32 0.0, %v1062
        %v1064 = vpop.f32.mrb[0].mxu0
        %v1065 = vadd.f32 0.0, %v1064
        %1066 = vmatprep.mubr.bf16.mxu0 0
        %1067 = vmatmul.mubr.bf16.gmra.mrb[0].mxu0 %v792
        %v1068 = vpop.f32.mrb[0].mxu0
        %v1069 = vadd.f32 0.0, %v1068
        %v1070 = vpop.f32.mrb[0].mxu0
        %v1071 = vadd.f32 0.0, %v1070
        %v1072 = vpop.f32.mrb[0].mxu0
        %v1073 = vadd.f32 0.0, %v1072
        %v1074 = vpop.f32.mrb[0].mxu0
        %v1075 = vadd.f32 0.0, %v1074
        %1076 = vmatprep.mubr.bf16.mxu0 0
        %1077 = vmatmul.mubr.bf16.gmra.mrb[0].mxu0 %v795
        %v1078 = vpop.f32.mrb[0].mxu0
        %v1079 = vadd.f32 0.0, %v1078
        %v1080 = vpop.f32.mrb[0].mxu0
        %v1081 = vadd.f32 0.0, %v1080
        %v1082 = vpop.f32.mrb[0].mxu0
        %v1083 = vadd.f32 0.0, %v1082
        %v1084 = vpop.f32.mrb[0].mxu0
        %v1085 = vadd.f32 0.0, %v1084
        %1086 = vmatprep.mubr.bf16.mxu0 0
        %1087 = vmatmul.mubr.bf16.gmra.mrb[0].mxu0 %v798
        %v1088 = vpop.f32.mrb[0].mxu0
        %v1089 = vadd.f32 0.0, %v1088
        %v1090 = vpop.f32.mrb[0].mxu0
        %v1091 = vadd.f32 0.0, %v1090
        %v1092 = vpop.f32.mrb[0].mxu0
        %v1093 = vadd.f32 0.0, %v1092
        %v1094 = vpop.f32.mrb[0].mxu0
        %v1095 = vadd.f32 0.0, %v1094
        %1096 = vmatprep.mubr.bf16.mxu0 0
        %1097 = vmatmul.mubr.bf16.gmra.mrb[0].mxu0 %v801
        %v1098 = vpop.f32.mrb[0].mxu0
        %v1099 = vadd.f32 0.0, %v1098
        %v1100 = vpop.f32.mrb[0].mxu0
        %v1101 = vadd.f32 0.0, %v1100
        %v1102 = vpop.f32.mrb[0].mxu0
        %v1103 = vadd.f32 0.0, %v1102
        %v1104 = vpop.f32.mrb[0].mxu0
        %v1105 = vadd.f32 0.0, %v1104
        %1106 = vmatprep.mubr.bf16.mxu0 0
        %1107 = vmatmul.mubr.bf16.gmra.mrb[0].mxu0 %v804
        %v1108 = vpop.f32.mrb[0].mxu0
        %v1109 = vadd.f32 0.0, %v1108
        %v1110 = vpop.f32.mrb[0].mxu0
        %v1111 = vadd.f32 0.0, %v1110
        %v1112 = vpop.f32.mrb[0].mxu0
        %v1113 = vadd.f32 0.0, %v1112
        %v1114 = vpop.f32.mrb[0].mxu0
        %v1115 = vadd.f32 0.0, %v1114
        %1116 = vmatprep.mubr.bf16.mxu0 0
        %1117 = vmatmul.mubr.bf16.gmra.mrb[0].mxu0 %v807
        %v1118 = vpop.f32.mrb[0].mxu0
        %v1119 = vadd.f32 0.0, %v1118
        %v1120 = vpop.f32.mrb[0].mxu0
        %v1121 = vadd.f32 0.0, %v1120
        %v1122 = vpop.f32.mrb[0].mxu0
        %v1123 = vadd.f32 0.0, %v1122
        %v1124 = vpop.f32.mrb[0].mxu0
        %v1125 = vadd.f32 0.0, %v1124
        %1126 = vmatprep.mubr.bf16.mxu0 0
        %1127 = vmatmul.mubr.bf16.gmra.mrb[0].mxu0 %v810
        %v1128 = vpop.f32.mrb[0].mxu0
        %v1129 = vadd.f32 0.0, %v1128
        %v1130 = vpop.f32.mrb[0].mxu0
        %v1131 = vadd.f32 0.0, %v1130
        %v1132 = vpop.f32.mrb[0].mxu0
        %v1133 = vadd.f32 0.0, %v1132
        %v1134 = vpop.f32.mrb[0].mxu0
        %v1135 = vadd.f32 0.0, %v1134
        %1136 = vmatprep.mubr.bf16.mxu0 0
        %1137 = vmatmul.mubr.bf16.gmra.mrb[0].mxu0 %v813
        %v1138 = vpop.f32.mrb[0].mxu0
        %v1139 = vadd.f32 0.0, %v1138
        %v1140 = vpop.f32.mrb[0].mxu0
        %v1141 = vadd.f32 0.0, %v1140
        %v1142 = vpop.f32.mrb[0].mxu0
        %v1143 = vadd.f32 0.0, %v1142
        %v1144 = vpop.f32.mrb[0].mxu0
        %v1145 = vadd.f32 0.0, %v1144
        %1146 = vmatprep.mubr.bf16.mxu0 0
        %1147 = vmatmul.mubr.bf16.gmra.mrb[0].mxu0 %v816
        %v1148 = vpop.f32.mrb[0].mxu0
        %v1149 = vadd.f32 0.0, %v1148
        %v1150 = vpop.f32.mrb[0].mxu0
        %v1151 = vadd.f32 0.0, %v1150
        %v1152 = vpop.f32.mrb[0].mxu0
        %v1153 = vadd.f32 0.0, %v1152
        %v1154 = vpop.f32.mrb[0].mxu0
        %v1155 = vadd.f32 0.0, %v1154
        %1156 = vmatprep.mubr.bf16.mxu0 0
        %1157 = vmatmul.mubr.bf16.gmra.mrb[0].mxu0 %v819
        %v1158 = vpop.f32.mrb[0].mxu0
        %v1159 = vadd.f32 0.0, %v1158
        %v1160 = vpop.f32.mrb[0].mxu0
        %v1161 = vadd.f32 0.0, %v1160
        %v1162 = vpop.f32.mrb[0].mxu0
        %v1163 = vadd.f32 0.0, %v1162
        %v1164 = vpop.f32.mrb[0].mxu0
        %v1165 = vadd.f32 0.0, %v1164
        %1166 = vmatprep.mubr.bf16.mxu0 0
        %1167 = vmatmul.mubr.bf16.gmra.mrb[0].mxu0 %v822
        %v1168 = vpop.f32.mrb[0].mxu0
        %v1169 = vadd.f32 0.0, %v1168
        %v1170 = vpop.f32.mrb[0].mxu0
        %v1171 = vadd.f32 0.0, %v1170
        %v1172 = vpop.f32.mrb[0].mxu0
        %v1173 = vpop.f32.mrb[0].mxu0
        %1174 = vdwg.mxu0
        %v1179 = vunpack.c.l.b16 %v604
        %v1180 = vunpack.c.h.b16 %v604
        %v1181 = vunpack.c.l.b16 %v605
        %v1182 = vunpack.c.h.b16 %v605
        %v1183 = vunpack.c.l.b16 %v606
        %v1184 = vunpack.c.h.b16 %v606
        %v1185 = vunpack.c.l.b16 %v607
        %v1186 = vunpack.c.h.b16 %v607
        %v1187 = vpack.c.b16 %v1181, %v1179
        %v1188 = vpack.c.b16 %v1182, %v1180
        %v1189 = vpack.c.b16 %v1185, %v1183
        %v1190 = vpack.c.b16 %v1186, %v1184
        %vm1193 = vcmask 244736
        %v1195 = vsel %vm1193, %v572, 0
        %v1198 = vsel %vm1193, %v573, 0
        %v1201 = vsel %vm1193, %v574, 0
        %v1204 = vsel %vm1193, %v575, 0
        %v1207 = vsel %vm1193, %v576, 0
        %v1210 = vsel %vm1193, %v577, 0
        %v1213 = vsel %vm1193, %v578, 0
        %v1216 = vsel %vm1193, %v579, 0
        %v1219 = vsel %vm1193, %v580, 0
        %v1222 = vsel %vm1193, %v581, 0
        %v1225 = vsel %vm1193, %v582, 0
        %v1228 = vsel %vm1193, %v583, 0
        %v1231 = vsel %vm1193, %v584, 0
        %v1234 = vsel %vm1193, %v585, 0
        %v1237 = vsel %vm1193, %v586, 0
        %v1240 = vsel %vm1193, %v587, 0
        %v1243 = vsel %vm1193, %v588, 0
        %v1246 = vsel %vm1193, %v589, 0
        %v1249 = vsel %vm1193, %v590, 0
        %v1252 = vsel %vm1193, %v591, 0
        %v1255 = vsel %vm1193, %v592, 0
        %v1258 = vsel %vm1193, %v593, 0
        %v1261 = vsel %vm1193, %v594, 0
        %v1264 = vsel %vm1193, %v595, 0
        %v1267 = vsel %vm1193, %v596, 0
        %v1270 = vsel %vm1193, %v597, 0
        %v1273 = vsel %vm1193, %v598, 0
        %v1276 = vsel %vm1193, %v599, 0
        %v1279 = vsel %vm1193, %v600, 0
        %v1282 = vsel %vm1193, %v601, 0
        %v1285 = vsel %vm1193, %v602, 0
        %v1288 = vsel %vm1193, %v603, 0
        %vm1290 = vcmask 1046528
        %v1292 = vsel %vm1290, %v1189, 0
        %v1295 = vsel %vm1290, %v1190, 0
        %1297 = vmatprep.subr.bf16.mxu0 %v1188
        %1298 = vmatpush1.bf16.msra.mxu0 %v1187
        %1299 = vmatprep.subr.bf16.mxu0 %v1295
        %1300 = vmatpush1.bf16.msra.mxu0 %v1292
        %1301 = vmatprep.subr.bf16.mxu0 0
        %1302 = vmatpush1.bf16.msra.mxu0 0
        %1303 = vmatprep.subr.bf16.mxu0 0
        %1304 = vmatpush1.bf16.msra.mxu0 0
        %1305 = vmatprep.subr.bf16.mxu0 0
        %1306 = vmatpush1.bf16.msra.mxu0 0
        %1307 = vmatprep.subr.bf16.mxu0 0
        %1308 = vmatpush1.bf16.msra.mxu0 0
        %1309 = vmatprep.subr.bf16.mxu0 0
        %1310 = vmatpush1.bf16.msra.mxu0 0
        %1311 = vmatprep.subr.bf16.mxu0 0
        %1312 = vmatpush1.bf16.msra.mxu0 0
        %1313 = vmatprep.subr.bf16.mxu0 0
        %1314 = vmatpush1.bf16.msra.mxu0 0
        %1315 = vmatprep.subr.bf16.mxu0 0
        %1316 = vmatpush1.bf16.msra.mxu0 0
        %1317 = vmatprep.subr.bf16.mxu0 0
        %1318 = vmatpush1.bf16.msra.mxu0 0
        %1319 = vmatprep.subr.bf16.mxu0 0
        %1320 = vmatpush1.bf16.msra.mxu0 0
        %1321 = vmatprep.subr.bf16.mxu0 0
        %1322 = vmatpush1.bf16.msra.mxu0 0
        %1323 = vmatprep.subr.bf16.mxu0 0
        %1324 = vmatpush1.bf16.msra.mxu0 0
        %1325 = vmatprep.subr.bf16.mxu0 0
        %1326 = vmatpush1.bf16.msra.mxu0 0
        %1327 = vmatprep.subr.bf16.mxu0 0
        %1328 = vmatpush1.bf16.msra.mxu0 0
        %1329 = vmatprep.mubr.bf16.mxu0 0
        %1330 = vmatmul.mubr.bf16.gmra.mrb[0].mxu0 %v1195
        %v1331 = vpop.f32.mrb[0].mxu0
        %v1332 = vadd.f32 %v859, %v1331
        %v1333 = vpop.f32.mrb[0].mxu0
        %v1334 = vadd.f32 %v861, %v1333
        %v1335 = vpop.f32.mrb[0].mxu0
        %v1336 = vadd.f32 %v863, %v1335
        %v1337 = vpop.f32.mrb[0].mxu0
        %v1338 = vadd.f32 %v865, %v1337
        %1339 = vmatprep.mubr.bf16.mxu0 0
        %1340 = vmatmul.mubr.bf16.gmra.mrb[0].mxu0 %v1198
        %v1341 = vpop.f32.mrb[0].mxu0
        %v1342 = vadd.f32 %v869, %v1341
        %v1343 = vpop.f32.mrb[0].mxu0
        %v1344 = vadd.f32 %v871, %v1343
        %v1345 = vpop.f32.mrb[0].mxu0
        %v1346 = vadd.f32 %v873, %v1345
        %v1347 = vpop.f32.mrb[0].mxu0
        %v1348 = vadd.f32 %v875, %v1347
        %1349 = vmatprep.mubr.bf16.mxu0 0
        %1350 = vmatmul.mubr.bf16.gmra.mrb[0].mxu0 %v1201
        %v1351 = vpop.f32.mrb[0].mxu0
        %v1352 = vadd.f32 %v879, %v1351
        %v1353 = vpop.f32.mrb[0].mxu0
        %v1354 = vadd.f32 %v881, %v1353
        %v1355 = vpop.f32.mrb[0].mxu0
        %v1356 = vadd.f32 %v883, %v1355
        %v1357 = vpop.f32.mrb[0].mxu0
        %v1358 = vadd.f32 %v885, %v1357
        %1359 = vmatprep.mubr.bf16.mxu0 0
        %1360 = vmatmul.mubr.bf16.gmra.mrb[0].mxu0 %v1204
        %v1361 = vpop.f32.mrb[0].mxu0
        %v1362 = vadd.f32 %v889, %v1361
        %v1363 = vpop.f32.mrb[0].mxu0
        %v1364 = vadd.f32 %v891, %v1363
        %v1365 = vpop.f32.mrb[0].mxu0
        %v1366 = vadd.f32 %v893, %v1365
        %v1367 = vpop.f32.mrb[0].mxu0
        %v1368 = vadd.f32 %v895, %v1367
        %1369 = vmatprep.mubr.bf16.mxu0 0
        %1370 = vmatmul.mubr.bf16.gmra.mrb[0].mxu0 %v1207
        %v1371 = vpop.f32.mrb[0].mxu0
        %v1372 = vadd.f32 %v899, %v1371
        %v1373 = vpop.f32.mrb[0].mxu0
        %v1374 = vadd.f32 %v901, %v1373
        %v1375 = vpop.f32.mrb[0].mxu0
        %v1376 = vadd.f32 %v903, %v1375
        %v1377 = vpop.f32.mrb[0].mxu0
        %v1378 = vadd.f32 %v905, %v1377
        %1379 = vmatprep.mubr.bf16.mxu0 0
        %1380 = vmatmul.mubr.bf16.gmra.mrb[0].mxu0 %v1210
        %v1381 = vpop.f32.mrb[0].mxu0
        %v1382 = vadd.f32 %v909, %v1381
        %v1383 = vpop.f32.mrb[0].mxu0
        %v1384 = vadd.f32 %v911, %v1383
        %v1385 = vpop.f32.mrb[0].mxu0
        %v1386 = vadd.f32 %v913, %v1385
        %v1387 = vpop.f32.mrb[0].mxu0
        %v1388 = vadd.f32 %v915, %v1387
        %1389 = vmatprep.mubr.bf16.mxu0 0
        %1390 = vmatmul.mubr.bf16.gmra.mrb[0].mxu0 %v1213
        %v1391 = vpop.f32.mrb[0].mxu0
        %v1392 = vadd.f32 %v919, %v1391
        %v1393 = vpop.f32.mrb[0].mxu0
        %v1394 = vadd.f32 %v921, %v1393
        %v1395 = vpop.f32.mrb[0].mxu0
        %v1396 = vadd.f32 %v923, %v1395
        %v1397 = vpop.f32.mrb[0].mxu0
        %v1398 = vadd.f32 %v925, %v1397
        %1399 = vmatprep.mubr.bf16.mxu0 0
        %1400 = vmatmul.mubr.bf16.gmra.mrb[0].mxu0 %v1216
        %v1401 = vpop.f32.mrb[0].mxu0
        %v1402 = vadd.f32 %v929, %v1401
        %v1403 = vpop.f32.mrb[0].mxu0
        %v1404 = vadd.f32 %v931, %v1403
        %v1405 = vpop.f32.mrb[0].mxu0
        %v1406 = vadd.f32 %v933, %v1405
        %v1407 = vpop.f32.mrb[0].mxu0
        %v1408 = vadd.f32 %v935, %v1407
        %1409 = vmatprep.mubr.bf16.mxu0 0
        %1410 = vmatmul.mubr.bf16.gmra.mrb[0].mxu0 %v1219
        %v1411 = vpop.f32.mrb[0].mxu0
        %v1412 = vadd.f32 %v939, %v1411
        %v1413 = vpop.f32.mrb[0].mxu0
        %v1414 = vadd.f32 %v941, %v1413
        %v1415 = vpop.f32.mrb[0].mxu0
        %v1416 = vadd.f32 %v943, %v1415
        %v1417 = vpop.f32.mrb[0].mxu0
        %v1418 = vadd.f32 %v945, %v1417
        %1419 = vmatprep.mubr.bf16.mxu0 0
        %1420 = vmatmul.mubr.bf16.gmra.mrb[0].mxu0 %v1222
        %v1421 = vpop.f32.mrb[0].mxu0
        %v1422 = vadd.f32 %v949, %v1421
        %v1423 = vpop.f32.mrb[0].mxu0
        %v1424 = vadd.f32 %v951, %v1423
        %v1425 = vpop.f32.mrb[0].mxu0
        %v1426 = vadd.f32 %v953, %v1425
        %v1427 = vpop.f32.mrb[0].mxu0
        %v1428 = vadd.f32 %v955, %v1427
        %1429 = vmatprep.mubr.bf16.mxu0 0
        %1430 = vmatmul.mubr.bf16.gmra.mrb[0].mxu0 %v1225
        %v1431 = vpop.f32.mrb[0].mxu0
        %v1432 = vadd.f32 %v959, %v1431
        %v1433 = vpop.f32.mrb[0].mxu0
        %v1434 = vadd.f32 %v961, %v1433
        %v1435 = vpop.f32.mrb[0].mxu0
        %v1436 = vadd.f32 %v963, %v1435
        %v1437 = vpop.f32.mrb[0].mxu0
        %v1438 = vadd.f32 %v965, %v1437
        %1439 = vmatprep.mubr.bf16.mxu0 0
        %1440 = vmatmul.mubr.bf16.gmra.mrb[0].mxu0 %v1228
        %v1441 = vpop.f32.mrb[0].mxu0
        %v1442 = vadd.f32 %v969, %v1441
        %v1443 = vpop.f32.mrb[0].mxu0
        %v1444 = vadd.f32 %v971, %v1443
        %v1445 = vpop.f32.mrb[0].mxu0
        %v1446 = vadd.f32 %v973, %v1445
        %v1447 = vpop.f32.mrb[0].mxu0
        %v1448 = vadd.f32 %v975, %v1447
        %1449 = vmatprep.mubr.bf16.mxu0 0
        %1450 = vmatmul.mubr.bf16.gmra.mrb[0].mxu0 %v1231
        %v1451 = vpop.f32.mrb[0].mxu0
        %v1452 = vadd.f32 %v979, %v1451
        %v1453 = vpop.f32.mrb[0].mxu0
        %v1454 = vadd.f32 %v981, %v1453
        %v1455 = vpop.f32.mrb[0].mxu0
        %v1456 = vadd.f32 %v983, %v1455
        %v1457 = vpop.f32.mrb[0].mxu0
        %v1458 = vadd.f32 %v985, %v1457
        %1459 = vmatprep.mubr.bf16.mxu0 0
        %1460 = vmatmul.mubr.bf16.gmra.mrb[0].mxu0 %v1234
        %v1461 = vpop.f32.mrb[0].mxu0
        %v1462 = vadd.f32 %v989, %v1461
        %v1463 = vpop.f32.mrb[0].mxu0
        %v1464 = vadd.f32 %v991, %v1463
        %v1465 = vpop.f32.mrb[0].mxu0
        %v1466 = vadd.f32 %v993, %v1465
        %v1467 = vpop.f32.mrb[0].mxu0
        %v1468 = vadd.f32 %v995, %v1467
        %1469 = vmatprep.mubr.bf16.mxu0 0
        %1470 = vmatmul.mubr.bf16.gmra.mrb[0].mxu0 %v1237
        %v1471 = vpop.f32.mrb[0].mxu0
        %v1472 = vadd.f32 %v999, %v1471
        %v1473 = vpop.f32.mrb[0].mxu0
        %v1474 = vadd.f32 %v1001, %v1473
        %v1475 = vpop.f32.mrb[0].mxu0
        %v1476 = vadd.f32 %v1003, %v1475
        %v1477 = vpop.f32.mrb[0].mxu0
        %v1478 = vadd.f32 %v1005, %v1477
        %1479 = vmatprep.mubr.bf16.mxu0 0
        %1480 = vmatmul.mubr.bf16.gmra.mrb[0].mxu0 %v1240
        %v1481 = vpop.f32.mrb[0].mxu0
        %v1482 = vadd.f32 %v1009, %v1481
        %v1483 = vpop.f32.mrb[0].mxu0
        %v1484 = vadd.f32 %v1011, %v1483
        %v1485 = vpop.f32.mrb[0].mxu0
        %v1486 = vadd.f32 %v1013, %v1485
        %v1487 = vpop.f32.mrb[0].mxu0
        %v1488 = vadd.f32 %v1015, %v1487
        %1489 = vmatprep.mubr.bf16.mxu0 0
        %1490 = vmatmul.mubr.bf16.gmra.mrb[0].mxu0 %v1243
        %v1491 = vpop.f32.mrb[0].mxu0
        %v1492 = vadd.f32 %v1019, %v1491
        %v1493 = vpop.f32.mrb[0].mxu0
        %v1494 = vadd.f32 %v1021, %v1493
        %v1495 = vpop.f32.mrb[0].mxu0
        %v1496 = vadd.f32 %v1023, %v1495
        %v1497 = vpop.f32.mrb[0].mxu0
        %v1498 = vadd.f32 %v1025, %v1497
        %1499 = vmatprep.mubr.bf16.mxu0 0
        %1500 = vmatmul.mubr.bf16.gmra.mrb[0].mxu0 %v1246
        %v1501 = vpop.f32.mrb[0].mxu0
        %v1502 = vadd.f32 %v1029, %v1501
        %v1503 = vpop.f32.mrb[0].mxu0
        %v1504 = vadd.f32 %v1031, %v1503
        %v1505 = vpop.f32.mrb[0].mxu0
        %v1506 = vadd.f32 %v1033, %v1505
        %v1507 = vpop.f32.mrb[0].mxu0
        %v1508 = vadd.f32 %v1035, %v1507
        %1509 = vmatprep.mubr.bf16.mxu0 0
        %1510 = vmatmul.mubr.bf16.gmra.mrb[0].mxu0 %v1249
        %v1511 = vpop.f32.mrb[0].mxu0
        %v1512 = vadd.f32 %v1039, %v1511
        %v1513 = vpop.f32.mrb[0].mxu0
        %v1514 = vadd.f32 %v1041, %v1513
        %v1515 = vpop.f32.mrb[0].mxu0
        %v1516 = vadd.f32 %v1043, %v1515
        %v1517 = vpop.f32.mrb[0].mxu0
        %v1518 = vadd.f32 %v1045, %v1517
        %1519 = vmatprep.mubr.bf16.mxu0 0
        %1520 = vmatmul.mubr.bf16.gmra.mrb[0].mxu0 %v1252
        %v1521 = vpop.f32.mrb[0].mxu0
        %v1522 = vadd.f32 %v1049, %v1521
        %v1523 = vpop.f32.mrb[0].mxu0
        %v1524 = vadd.f32 %v1051, %v1523
        %v1525 = vpop.f32.mrb[0].mxu0
        %v1526 = vadd.f32 %v1053, %v1525
        %v1527 = vpop.f32.mrb[0].mxu0
        %v1528 = vadd.f32 %v1055, %v1527
        %1529 = vmatprep.mubr.bf16.mxu0 0
        %1530 = vmatmul.mubr.bf16.gmra.mrb[0].mxu0 %v1255
        %v1531 = vpop.f32.mrb[0].mxu0
        %v1532 = vadd.f32 %v1059, %v1531
        %v1533 = vpop.f32.mrb[0].mxu0
        %v1534 = vadd.f32 %v1061, %v1533
        %v1535 = vpop.f32.mrb[0].mxu0
        %v1536 = vadd.f32 %v1063, %v1535
        %v1537 = vpop.f32.mrb[0].mxu0
        %v1538 = vadd.f32 %v1065, %v1537
        %1539 = vmatprep.mubr.bf16.mxu0 0
        %1540 = vmatmul.mubr.bf16.gmra.mrb[0].mxu0 %v1258
        %v1541 = vpop.f32.mrb[0].mxu0
        %v1542 = vadd.f32 %v1069, %v1541
        %v1543 = vpop.f32.mrb[0].mxu0
        %v1544 = vadd.f32 %v1071, %v1543
        %v1545 = vpop.f32.mrb[0].mxu0
        %v1546 = vadd.f32 %v1073, %v1545
        %v1547 = vpop.f32.mrb[0].mxu0
        %v1548 = vadd.f32 %v1075, %v1547
        %1549 = vmatprep.mubr.bf16.mxu0 0
        %1550 = vmatmul.mubr.bf16.gmra.mrb[0].mxu0 %v1261
        %v1551 = vpop.f32.mrb[0].mxu0
        %v1552 = vadd.f32 %v1079, %v1551
        %v1553 = vpop.f32.mrb[0].mxu0
        %v1554 = vadd.f32 %v1081, %v1553
        %v1555 = vpop.f32.mrb[0].mxu0
        %v1556 = vadd.f32 %v1083, %v1555
        %v1557 = vpop.f32.mrb[0].mxu0
        %v1558 = vadd.f32 %v1085, %v1557
        %1559 = vmatprep.mubr.bf16.mxu0 0
        %1560 = vmatmul.mubr.bf16.gmra.mrb[0].mxu0 %v1264
        %v1561 = vpop.f32.mrb[0].mxu0
        %v1562 = vadd.f32 %v1089, %v1561
        %v1563 = vpop.f32.mrb[0].mxu0
        %v1564 = vadd.f32 %v1091, %v1563
        %v1565 = vpop.f32.mrb[0].mxu0
        %v1566 = vadd.f32 %v1093, %v1565
        %v1567 = vpop.f32.mrb[0].mxu0
        %v1568 = vadd.f32 %v1095, %v1567
        %1569 = vmatprep.mubr.bf16.mxu0 0
        %1570 = vmatmul.mubr.bf16.gmra.mrb[0].mxu0 %v1267
        %v1571 = vpop.f32.mrb[0].mxu0
        %v1572 = vadd.f32 %v1099, %v1571
        %v1573 = vpop.f32.mrb[0].mxu0
        %v1574 = vadd.f32 %v1101, %v1573
        %v1575 = vpop.f32.mrb[0].mxu0
        %v1576 = vadd.f32 %v1103, %v1575
        %v1577 = vpop.f32.mrb[0].mxu0
        %v1578 = vadd.f32 %v1105, %v1577
        %1579 = vmatprep.mubr.bf16.mxu0 0
        %1580 = vmatmul.mubr.bf16.gmra.mrb[0].mxu0 %v1270
        %v1581 = vpop.f32.mrb[0].mxu0
        %v1582 = vadd.f32 %v1109, %v1581
        %v1583 = vpop.f32.mrb[0].mxu0
        %v1584 = vadd.f32 %v1111, %v1583
        %v1585 = vpop.f32.mrb[0].mxu0
        %v1586 = vadd.f32 %v1113, %v1585
        %v1587 = vpop.f32.mrb[0].mxu0
        %v1588 = vadd.f32 %v1115, %v1587
        %1589 = vmatprep.mubr.bf16.mxu0 0
        %1590 = vmatmul.mubr.bf16.gmra.mrb[0].mxu0 %v1273
        %v1591 = vpop.f32.mrb[0].mxu0
        %v1592 = vadd.f32 %v1119, %v1591
        %v1593 = vpop.f32.mrb[0].mxu0
        %v1594 = vadd.f32 %v1121, %v1593
        %v1595 = vpop.f32.mrb[0].mxu0
        %v1596 = vadd.f32 %v1123, %v1595
        %v1597 = vpop.f32.mrb[0].mxu0
        %v1598 = vadd.f32 %v1125, %v1597
        %1599 = vmatprep.mubr.bf16.mxu0 0
        %1600 = vmatmul.mubr.bf16.gmra.mrb[0].mxu0 %v1276
        %v1601 = vpop.f32.mrb[0].mxu0
        %v1602 = vadd.f32 %v1129, %v1601
        %v1603 = vpop.f32.mrb[0].mxu0
        %v1604 = vadd.f32 %v1131, %v1603
        %v1605 = vpop.f32.mrb[0].mxu0
        %v1606 = vadd.f32 %v1133, %v1605
        %v1607 = vpop.f32.mrb[0].mxu0
        %v1608 = vadd.f32 %v1135, %v1607
        %1609 = vmatprep.mubr.bf16.mxu0 0
        %1610 = vmatmul.mubr.bf16.gmra.mrb[0].mxu0 %v1279
        %v1611 = vpop.f32.mrb[0].mxu0
        %v1612 = vadd.f32 %v1139, %v1611
        %v1613 = vpop.f32.mrb[0].mxu0
        %v1614 = vadd.f32 %v1141, %v1613
        %v1615 = vpop.f32.mrb[0].mxu0
        %v1616 = vadd.f32 %v1143, %v1615
        %v1617 = vpop.f32.mrb[0].mxu0
        %v1618 = vadd.f32 %v1145, %v1617
        %1619 = vmatprep.mubr.bf16.mxu0 0
        %1620 = vmatmul.mubr.bf16.gmra.mrb[0].mxu0 %v1282
        %v1621 = vpop.f32.mrb[0].mxu0
        %v1622 = vadd.f32 %v1149, %v1621
        %v1623 = vpop.f32.mrb[0].mxu0
        %v1624 = vadd.f32 %v1151, %v1623
        %v1625 = vpop.f32.mrb[0].mxu0
        %v1626 = vadd.f32 %v1153, %v1625
        %v1627 = vpop.f32.mrb[0].mxu0
        %v1628 = vadd.f32 %v1155, %v1627
        %1629 = vmatprep.mubr.bf16.mxu0 0
        %1630 = vmatmul.mubr.bf16.gmra.mrb[0].mxu0 %v1285
        %v1631 = vpop.f32.mrb[0].mxu0
        %v1632 = vadd.f32 %v1159, %v1631
        %v1633 = vpop.f32.mrb[0].mxu0
        %v1634 = vadd.f32 %v1161, %v1633
        %v1635 = vpop.f32.mrb[0].mxu0
        %v1636 = vadd.f32 %v1163, %v1635
        %v1637 = vpop.f32.mrb[0].mxu0
        %v1638 = vadd.f32 %v1165, %v1637
        %1639 = vmatprep.mubr.bf16.mxu0 0
        %1640 = vmatmul.mubr.bf16.gmra.mrb[0].mxu0 %v1288
        %v1641 = vpop.f32.mrb[0].mxu0
        %v1642 = vadd.f32 %v1169, %v1641
        %v1643 = vpop.f32.mrb[0].mxu0
        %v1644 = vadd.f32 %v1171, %v1643
        %v1645 = vpop.f32.mrb[0].mxu0
        %v1646 = vpop.f32.mrb[0].mxu0
        %1647 = vdwg.mxu0
        %v1648 = vld [vmem:[%s499] sm:$0xff]
        %v1649 = vld [vmem:[%s499 + $0x8] sm:$0xff]
        %v1650 = vld [vmem:[%s499 + $0x10] sm:$0xff]
        %v1651 = vld [vmem:[%s499 + $0x18] sm:$0xff]
        %v1652 = vld [vmem:[%s499 + $0x20] sm:$0xff]
        %v1653 = vld [vmem:[%s499 + $0x28] sm:$0xff]
        %v1654 = vld [vmem:[%s499 + $0x30] sm:$0xff]
        %v1655 = vld [vmem:[%s499 + $0x38] sm:$0xff]
        %v1656 = vld [vmem:[%s499 + $0x40] sm:$0xff]
        %v1657 = vld [vmem:[%s499 + $0x48] sm:$0xff]
        %v1658 = vld [vmem:[%s499 + $0x50] sm:$0xff]
        %v1659 = vld [vmem:[%s499 + $0x58] sm:$0xff]
        %v1660 = vld [vmem:[%s499 + $0x60] sm:$0xff]
        %v1661 = vld [vmem:[%s499 + $0x68] sm:$0xff]
        %v1662 = vld [vmem:[%s499 + $0x70] sm:$0xff]
        %v1663 = vld [vmem:[%s499 + $0x78] sm:$0xff]
        %v1664 = vld [vmem:[%s499 + $0x80] sm:$0xff]
        %v1665 = vld [vmem:[%s499 + $0x88] sm:$0xff]
        %v1666 = vld [vmem:[%s499 + $0x90] sm:$0xff]
        %v1667 = vld [vmem:[%s499 + $0x98] sm:$0xff]
        %v1668 = vld [vmem:[%s499 + $0xa0] sm:$0xff]
        %v1669 = vld [vmem:[%s499 + $0xa8] sm:$0xff]
        %v1670 = vld [vmem:[%s499 + $0xb0] sm:$0xff]
        %v1671 = vld [vmem:[%s499 + $0xb8] sm:$0xff]
        %v1672 = vld [vmem:[%s499 + $0xc0] sm:$0xff]
        %v1673 = vld [vmem:[%s499 + $0xc8] sm:$0xff]
        %v1674 = vld [vmem:[%s499 + $0xd0] sm:$0xff]
        %v1675 = vld [vmem:[%s499 + $0xd8] sm:$0xff]
        %v1676 = vld [vmem:[%s499 + $0xe0] sm:$0xff]
        %v1677 = vld [vmem:[%s499 + $0xe8] sm:$0xff]
        %v1678 = vld [vmem:[%s499 + $0xf0] sm:$0xff]
        %v1679 = vld [vmem:[%s499 + $0xf8] sm:$0xff]
        %v1680 = vld [vmem:[%s499 + $0x100] sm:$0xff]
        %v1681 = vld [vmem:[%s499 + $0x108] sm:$0xff]
        %v1682 = vld [vmem:[%s499 + $0x110] sm:$0xff]
        %v1683 = vld [vmem:[%s499 + $0x118] sm:$0xff]
        %v1684 = vld [vmem:[%s499 + $0x120] sm:$0xff]
        %v1685 = vld [vmem:[%s499 + $0x128] sm:$0xff]
        %v1686 = vld [vmem:[%s499 + $0x130] sm:$0xff]
        %v1687 = vld [vmem:[%s499 + $0x138] sm:$0xff]
        %v1688 = vld [vmem:[%s499 + $0x140] sm:$0xff]
        %v1689 = vld [vmem:[%s499 + $0x148] sm:$0xff]
        %v1690 = vld [vmem:[%s499 + $0x150] sm:$0xff]
        %v1691 = vld [vmem:[%s499 + $0x158] sm:$0xff]
        %v1692 = vld [vmem:[%s499 + $0x160] sm:$0xff]
        %v1693 = vld [vmem:[%s499 + $0x168] sm:$0xff]
        %v1694 = vld [vmem:[%s499 + $0x170] sm:$0xff]
        %v1695 = vld [vmem:[%s499 + $0x178] sm:$0xff]
        %v1696 = vld [vmem:[%s499 + $0x180] sm:$0xff]
        %v1697 = vld [vmem:[%s499 + $0x188] sm:$0xff]
        %v1698 = vld [vmem:[%s499 + $0x190] sm:$0xff]
        %v1699 = vld [vmem:[%s499 + $0x198] sm:$0xff]
        %v1700 = vld [vmem:[%s499 + $0x1a0] sm:$0xff]
        %v1701 = vld [vmem:[%s499 + $0x1a8] sm:$0xff]
        %v1702 = vld [vmem:[%s499 + $0x1b0] sm:$0xff]
        %v1703 = vld [vmem:[%s499 + $0x1b8] sm:$0xff]
        %v1704 = vld [vmem:[%s499 + $0x1c0] sm:$0xff]
        %v1705 = vld [vmem:[%s499 + $0x1c8] sm:$0xff]
        %v1706 = vld [vmem:[%s499 + $0x1d0] sm:$0xff]
        %v1707 = vld [vmem:[%s499 + $0x1d8] sm:$0xff]
        %v1708 = vld [vmem:[%s499 + $0x1e0] sm:$0xff]
        %v1709 = vld [vmem:[%s499 + $0x1e8] sm:$0xff]
        %v1710 = vld [vmem:[%s499 + $0x1f0] sm:$0xff]
        %v1711 = vpack.c.bf16 %v1649, %v1648
        %v1712 = vpack.c.bf16 %v1651, %v1650
        %v1713 = vpack.c.bf16 %v1653, %v1652
        %v1714 = vpack.c.bf16 %v1655, %v1654
        %v1715 = vpack.c.bf16 %v1657, %v1656
        %v1716 = vpack.c.bf16 %v1659, %v1658
        %v1717 = vpack.c.bf16 %v1661, %v1660
        %v1718 = vpack.c.bf16 %v1663, %v1662
        %v1719 = vpack.c.bf16 %v1665, %v1664
        %v1720 = vpack.c.bf16 %v1667, %v1666
        %v1721 = vpack.c.bf16 %v1669, %v1668
        %v1722 = vpack.c.bf16 %v1671, %v1670
        %v1723 = vpack.c.bf16 %v1673, %v1672
        %v1724 = vpack.c.bf16 %v1675, %v1674
        %v1725 = vpack.c.bf16 %v1677, %v1676
        %v1726 = vpack.c.bf16 %v1679, %v1678
        %v1727 = vpack.c.bf16 %v1681, %v1680
        %v1728 = vpack.c.bf16 %v1683, %v1682
        %v1729 = vpack.c.bf16 %v1685, %v1684
        %v1730 = vpack.c.bf16 %v1687, %v1686
        %v1731 = vpack.c.bf16 %v1689, %v1688
        %v1732 = vpack.c.bf16 %v1691, %v1690
        %v1733 = vpack.c.bf16 %v1693, %v1692
        %v1734 = vpack.c.bf16 %v1695, %v1694
        %v1735 = vpack.c.bf16 %v1697, %v1696
        %v1736 = vpack.c.bf16 %v1699, %v1698
        %v1737 = vpack.c.bf16 %v1701, %v1700
        %v1738 = vpack.c.bf16 %v1703, %v1702
        %v1739 = vpack.c.bf16 %v1705, %v1704
        %v1740 = vpack.c.bf16 %v1707, %v1706
        %v1741 = vpack.c.bf16 %v1709, %v1708
        %v1742 = vpack.c.bf16 %v1710, %v1710
        %v1743 = vld [vmem:[%s6] sm:$0xff]
        %v1744 = vld [vmem:[%s6 + $0x8] sm:$0xff]
        %v1745 = vld [vmem:[%s6 + $0x10] sm:$0xff]
        %v1749 = vunpack.c.l.b16 %v1743
        %v1750 = vunpack.c.h.b16 %v1743
        %v1751 = vunpack.c.l.b16 %v1744
        %v1752 = vunpack.c.h.b16 %v1744
        %v1753 = vunpack.c.l.b16 %v1745
        %v1754 = vunpack.c.h.b16 %v1745
        %v1755 = vpack.c.b16 %v1751, %v1749
        %v1756 = vpack.c.b16 %v1752, %v1750
        %v1757 = vpack.c.b16 %v1753, %v1753
        %v1758 = vpack.c.b16 %v1754, %v1754
        %vm1761 = vcmask 195584
        %v1763 = vsel %vm1761, %v1711, 0
        %v1766 = vsel %vm1761, %v1712, 0
        %v1769 = vsel %vm1761, %v1713, 0
        %v1772 = vsel %vm1761, %v1714, 0
        %v1775 = vsel %vm1761, %v1715, 0
        %v1778 = vsel %vm1761, %v1716, 0
        %v1781 = vsel %vm1761, %v1717, 0
        %v1784 = vsel %vm1761, %v1718, 0
        %v1787 = vsel %vm1761, %v1719, 0
        %v1790 = vsel %vm1761, %v1720, 0
        %v1793 = vsel %vm1761, %v1721, 0
        %v1796 = vsel %vm1761, %v1722, 0
        %v1799 = vsel %vm1761, %v1723, 0
        %v1802 = vsel %vm1761, %v1724, 0
        %v1805 = vsel %vm1761, %v1725, 0
        %v1808 = vsel %vm1761, %v1726, 0
        %v1811 = vsel %vm1761, %v1727, 0
        %v1814 = vsel %vm1761, %v1728, 0
        %v1817 = vsel %vm1761, %v1729, 0
        %v1820 = vsel %vm1761, %v1730, 0
        %v1823 = vsel %vm1761, %v1731, 0
        %v1826 = vsel %vm1761, %v1732, 0
        %v1829 = vsel %vm1761, %v1733, 0
        %v1832 = vsel %vm1761, %v1734, 0
        %v1835 = vsel %vm1761, %v1735, 0
        %v1838 = vsel %vm1761, %v1736, 0
        %v1841 = vsel %vm1761, %v1737, 0
        %v1844 = vsel %vm1761, %v1738, 0
        %v1847 = vsel %vm1761, %v1739, 0
        %v1850 = vsel %vm1761, %v1740, 0
        %v1853 = vsel %vm1761, %v1741, 0
        %v1856 = vsel %vm1761, %v1742, 0
        %vm1858 = vcmask 1043456
        %v1860 = vsel %vm1858, %v1757, 0
        %v1863 = vsel %vm1858, %v1758, 0
        %1865 = vmatprep.subr.bf16.mxu0 %v1756
        %1866 = vmatpush1.bf16.msra.mxu0 %v1755
        %1867 = vmatprep.subr.bf16.mxu0 %v1863
        %1868 = vmatpush1.bf16.msra.mxu0 %v1860
        %1869 = vmatprep.subr.bf16.mxu0 0
        %1870 = vmatpush1.bf16.msra.mxu0 0
        %1871 = vmatprep.subr.bf16.mxu0 0
        %1872 = vmatpush1.bf16.msra.mxu0 0
        %1873 = vmatprep.subr.bf16.mxu0 0
        %1874 = vmatpush1.bf16.msra.mxu0 0
        %1875 = vmatprep.subr.bf16.mxu0 0
        %1876 = vmatpush1.bf16.msra.mxu0 0
        %1877 = vmatprep.subr.bf16.mxu0 0
        %1878 = vmatpush1.bf16.msra.mxu0 0
        %1879 = vmatprep.subr.bf16.mxu0 0
        %1880 = vmatpush1.bf16.msra.mxu0 0
        %1881 = vmatprep.subr.bf16.mxu0 0
        %1882 = vmatpush1.bf16.msra.mxu0 0
        %1883 = vmatprep.subr.bf16.mxu0 0
        %1884 = vmatpush1.bf16.msra.mxu0 0
        %1885 = vmatprep.subr.bf16.mxu0 0
        %1886 = vmatpush1.bf16.msra.mxu0 0
        %1887 = vmatprep.subr.bf16.mxu0 0
        %1888 = vmatpush1.bf16.msra.mxu0 0
        %1889 = vmatprep.subr.bf16.mxu0 0
        %1890 = vmatpush1.bf16.msra.mxu0 0
        %1891 = vmatprep.subr.bf16.mxu0 0
        %1892 = vmatpush1.bf16.msra.mxu0 0
        %1893 = vmatprep.subr.bf16.mxu0 0
        %1894 = vmatpush1.bf16.msra.mxu0 0
        %1895 = vmatprep.subr.bf16.mxu0 0
        %1896 = vmatpush1.bf16.msra.mxu0 0
        %1897 = vmatprep.mubr.bf16.mxu0 0
        %1898 = vmatmul.mubr.bf16.gmra.mrb[0].mxu0 %v1763
        %v1899 = vpop.f32.mrb[0].mxu0
        %v1900 = vadd.f32 0.0, %v1899
        %v1901 = vpop.f32.mrb[0].mxu0
        %v1902 = vadd.f32 0.0, %v1901
        %v1903 = vpop.f32.mrb[0].mxu0
        %v1904 = vadd.f32 0.0, %v1903
        %v1905 = vpop.f32.mrb[0].mxu0
        %v1906 = vadd.f32 0.0, %v1905
        %1907 = vmatprep.mubr.bf16.mxu0 0
        %1908 = vmatmul.mubr.bf16.gmra.mrb[0].mxu0 %v1766
        %v1909 = vpop.f32.mrb[0].mxu0
        %v1910 = vadd.f32 0.0, %v1909
        %v1911 = vpop.f32.mrb[0].mxu0
        %v1912 = vadd.f32 0.0, %v1911
        %v1913 = vpop.f32.mrb[0].mxu0
        %v1914 = vadd.f32 0.0, %v1913
        %v1915 = vpop.f32.mrb[0].mxu0
        %v1916 = vadd.f32 0.0, %v1915
        %1917 = vmatprep.mubr.bf16.mxu0 0
        %1918 = vmatmul.mubr.bf16.gmra.mrb[0].mxu0 %v1769
        %v1919 = vpop.f32.mrb[0].mxu0
        %v1920 = vadd.f32 0.0, %v1919
        %v1921 = vpop.f32.mrb[0].mxu0
        %v1922 = vadd.f32 0.0, %v1921
        %v1923 = vpop.f32.mrb[0].mxu0
        %v1924 = vadd.f32 0.0, %v1923
        %v1925 = vpop.f32.mrb[0].mxu0
        %v1926 = vadd.f32 0.0, %v1925
        %1927 = vmatprep.mubr.bf16.mxu0 0
        %1928 = vmatmul.mubr.bf16.gmra.mrb[0].mxu0 %v1772
        %v1929 = vpop.f32.mrb[0].mxu0
        %v1930 = vadd.f32 0.0, %v1929
        %v1931 = vpop.f32.mrb[0].mxu0
        %v1932 = vadd.f32 0.0, %v1931
        %v1933 = vpop.f32.mrb[0].mxu0
        %v1934 = vadd.f32 0.0, %v1933
        %v1935 = vpop.f32.mrb[0].mxu0
        %v1936 = vadd.f32 0.0, %v1935
        %1937 = vmatprep.mubr.bf16.mxu0 0
        %1938 = vmatmul.mubr.bf16.gmra.mrb[0].mxu0 %v1775
        %v1939 = vpop.f32.mrb[0].mxu0
        %v1940 = vadd.f32 0.0, %v1939
        %v1941 = vpop.f32.mrb[0].mxu0
        %v1942 = vadd.f32 0.0, %v1941
        %v1943 = vpop.f32.mrb[0].mxu0
        %v1944 = vadd.f32 0.0, %v1943
        %v1945 = vpop.f32.mrb[0].mxu0
        %v1946 = vadd.f32 0.0, %v1945
        %1947 = vmatprep.mubr.bf16.mxu0 0
        %1948 = vmatmul.mubr.bf16.gmra.mrb[0].mxu0 %v1778
        %v1949 = vpop.f32.mrb[0].mxu0
        %v1950 = vadd.f32 0.0, %v1949
        %v1951 = vpop.f32.mrb[0].mxu0
        %v1952 = vadd.f32 0.0, %v1951
        %v1953 = vpop.f32.mrb[0].mxu0
        %v1954 = vadd.f32 0.0, %v1953
        %v1955 = vpop.f32.mrb[0].mxu0
        %v1956 = vadd.f32 0.0, %v1955
        %1957 = vmatprep.mubr.bf16.mxu0 0
        %1958 = vmatmul.mubr.bf16.gmra.mrb[0].mxu0 %v1781
        %v1959 = vpop.f32.mrb[0].mxu0
        %v1960 = vadd.f32 0.0, %v1959
        %v1961 = vpop.f32.mrb[0].mxu0
        %v1962 = vadd.f32 0.0, %v1961
        %v1963 = vpop.f32.mrb[0].mxu0
        %v1964 = vadd.f32 0.0, %v1963
        %v1965 = vpop.f32.mrb[0].mxu0
        %v1966 = vadd.f32 0.0, %v1965
        %1967 = vmatprep.mubr.bf16.mxu0 0
        %1968 = vmatmul.mubr.bf16.gmra.mrb[0].mxu0 %v1784
        %v1969 = vpop.f32.mrb[0].mxu0
        %v1970 = vadd.f32 0.0, %v1969
        %v1971 = vpop.f32.mrb[0].mxu0
        %v1972 = vadd.f32 0.0, %v1971
        %v1973 = vpop.f32.mrb[0].mxu0
        %v1974 = vadd.f32 0.0, %v1973
        %v1975 = vpop.f32.mrb[0].mxu0
        %v1976 = vadd.f32 0.0, %v1975
        %1977 = vmatprep.mubr.bf16.mxu0 0
        %1978 = vmatmul.mubr.bf16.gmra.mrb[0].mxu0 %v1787
        %v1979 = vpop.f32.mrb[0].mxu0
        %v1980 = vadd.f32 0.0, %v1979
        %v1981 = vpop.f32.mrb[0].mxu0
        %v1982 = vadd.f32 0.0, %v1981
        %v1983 = vpop.f32.mrb[0].mxu0
        %v1984 = vadd.f32 0.0, %v1983
        %v1985 = vpop.f32.mrb[0].mxu0
        %v1986 = vadd.f32 0.0, %v1985
        %1987 = vmatprep.mubr.bf16.mxu0 0
        %1988 = vmatmul.mubr.bf16.gmra.mrb[0].mxu0 %v1790
        %v1989 = vpop.f32.mrb[0].mxu0
        %v1990 = vadd.f32 0.0, %v1989
        %v1991 = vpop.f32.mrb[0].mxu0
        %v1992 = vadd.f32 0.0, %v1991
        %v1993 = vpop.f32.mrb[0].mxu0
        %v1994 = vadd.f32 0.0, %v1993
        %v1995 = vpop.f32.mrb[0].mxu0
        %v1996 = vadd.f32 0.0, %v1995
        %1997 = vmatprep.mubr.bf16.mxu0 0
        %1998 = vmatmul.mubr.bf16.gmra.mrb[0].mxu0 %v1793
        %v1999 = vpop.f32.mrb[0].mxu0
        %v2000 = vadd.f32 0.0, %v1999
        %v2001 = vpop.f32.mrb[0].mxu0
        %v2002 = vadd.f32 0.0, %v2001
        %v2003 = vpop.f32.mrb[0].mxu0
        %v2004 = vadd.f32 0.0, %v2003
        %v2005 = vpop.f32.mrb[0].mxu0
        %v2006 = vadd.f32 0.0, %v2005
        %2007 = vmatprep.mubr.bf16.mxu0 0
        %2008 = vmatmul.mubr.bf16.gmra.mrb[0].mxu0 %v1796
        %v2009 = vpop.f32.mrb[0].mxu0
        %v2010 = vadd.f32 0.0, %v2009
        %v2011 = vpop.f32.mrb[0].mxu0
        %v2012 = vadd.f32 0.0, %v2011
        %v2013 = vpop.f32.mrb[0].mxu0
        %v2014 = vadd.f32 0.0, %v2013
        %v2015 = vpop.f32.mrb[0].mxu0
        %v2016 = vadd.f32 0.0, %v2015
        %2017 = vmatprep.mubr.bf16.mxu0 0
        %2018 = vmatmul.mubr.bf16.gmra.mrb[0].mxu0 %v1799
        %v2019 = vpop.f32.mrb[0].mxu0
        %v2020 = vadd.f32 0.0, %v2019
        %v2021 = vpop.f32.mrb[0].mxu0
        %v2022 = vadd.f32 0.0, %v2021
        %v2023 = vpop.f32.mrb[0].mxu0
        %v2024 = vadd.f32 0.0, %v2023
        %v2025 = vpop.f32.mrb[0].mxu0
        %v2026 = vadd.f32 0.0, %v2025
        %2027 = vmatprep.mubr.bf16.mxu0 0
        %2028 = vmatmul.mubr.bf16.gmra.mrb[0].mxu0 %v1802
        %v2029 = vpop.f32.mrb[0].mxu0
        %v2030 = vadd.f32 0.0, %v2029
        %v2031 = vpop.f32.mrb[0].mxu0
        %v2032 = vadd.f32 0.0, %v2031
        %v2033 = vpop.f32.mrb[0].mxu0
        %v2034 = vadd.f32 0.0, %v2033
        %v2035 = vpop.f32.mrb[0].mxu0
        %v2036 = vadd.f32 0.0, %v2035
        %2037 = vmatprep.mubr.bf16.mxu0 0
        %2038 = vmatmul.mubr.bf16.gmra.mrb[0].mxu0 %v1805
        %v2039 = vpop.f32.mrb[0].mxu0
        %v2040 = vadd.f32 0.0, %v2039
        %v2041 = vpop.f32.mrb[0].mxu0
        %v2042 = vadd.f32 0.0, %v2041
        %v2043 = vpop.f32.mrb[0].mxu0
        %v2044 = vadd.f32 0.0, %v2043
        %v2045 = vpop.f32.mrb[0].mxu0
        %v2046 = vadd.f32 0.0, %v2045
        %2047 = vmatprep.mubr.bf16.mxu0 0
        %2048 = vmatmul.mubr.bf16.gmra.mrb[0].mxu0 %v1808
        %v2049 = vpop.f32.mrb[0].mxu0
        %v2050 = vadd.f32 0.0, %v2049
        %v2051 = vpop.f32.mrb[0].mxu0
        %v2052 = vadd.f32 0.0, %v2051
        %v2053 = vpop.f32.mrb[0].mxu0
        %v2054 = vadd.f32 0.0, %v2053
        %v2055 = vpop.f32.mrb[0].mxu0
        %v2056 = vadd.f32 0.0, %v2055
        %2057 = vmatprep.mubr.bf16.mxu0 0
        %2058 = vmatmul.mubr.bf16.gmra.mrb[0].mxu0 %v1811
        %v2059 = vpop.f32.mrb[0].mxu0
        %v2060 = vadd.f32 0.0, %v2059
        %v2061 = vpop.f32.mrb[0].mxu0
        %v2062 = vadd.f32 0.0, %v2061
        %v2063 = vpop.f32.mrb[0].mxu0
        %v2064 = vadd.f32 0.0, %v2063
        %v2065 = vpop.f32.mrb[0].mxu0
        %v2066 = vadd.f32 0.0, %v2065
        %2067 = vmatprep.mubr.bf16.mxu0 0
        %2068 = vmatmul.mubr.bf16.gmra.mrb[0].mxu0 %v1814
        %v2069 = vpop.f32.mrb[0].mxu0
        %v2070 = vadd.f32 0.0, %v2069
        %v2071 = vpop.f32.mrb[0].mxu0
        %v2072 = vadd.f32 0.0, %v2071
        %v2073 = vpop.f32.mrb[0].mxu0
        %v2074 = vadd.f32 0.0, %v2073
        %v2075 = vpop.f32.mrb[0].mxu0
        %v2076 = vadd.f32 0.0, %v2075
        %2077 = vmatprep.mubr.bf16.mxu0 0
        %2078 = vmatmul.mubr.bf16.gmra.mrb[0].mxu0 %v1817
        %v2079 = vpop.f32.mrb[0].mxu0
        %v2080 = vadd.f32 0.0, %v2079
        %v2081 = vpop.f32.mrb[0].mxu0
        %v2082 = vadd.f32 0.0, %v2081
        %v2083 = vpop.f32.mrb[0].mxu0
        %v2084 = vadd.f32 0.0, %v2083
        %v2085 = vpop.f32.mrb[0].mxu0
        %v2086 = vadd.f32 0.0, %v2085
        %2087 = vmatprep.mubr.bf16.mxu0 0
        %2088 = vmatmul.mubr.bf16.gmra.mrb[0].mxu0 %v1820
        %v2089 = vpop.f32.mrb[0].mxu0
        %v2090 = vadd.f32 0.0, %v2089
        %v2091 = vpop.f32.mrb[0].mxu0
        %v2092 = vadd.f32 0.0, %v2091
        %v2093 = vpop.f32.mrb[0].mxu0
        %v2094 = vadd.f32 0.0, %v2093
        %v2095 = vpop.f32.mrb[0].mxu0
        %v2096 = vadd.f32 0.0, %v2095
        %2097 = vmatprep.mubr.bf16.mxu0 0
        %2098 = vmatmul.mubr.bf16.gmra.mrb[0].mxu0 %v1823
        %v2099 = vpop.f32.mrb[0].mxu0
        %v2100 = vadd.f32 0.0, %v2099
        %v2101 = vpop.f32.mrb[0].mxu0
        %v2102 = vadd.f32 0.0, %v2101
        %v2103 = vpop.f32.mrb[0].mxu0
        %v2104 = vadd.f32 0.0, %v2103
        %v2105 = vpop.f32.mrb[0].mxu0
        %v2106 = vadd.f32 0.0, %v2105
        %2107 = vmatprep.mubr.bf16.mxu0 0
        %2108 = vmatmul.mubr.bf16.gmra.mrb[0].mxu0 %v1826
        %v2109 = vpop.f32.mrb[0].mxu0
        %v2110 = vadd.f32 0.0, %v2109
        %v2111 = vpop.f32.mrb[0].mxu0
        %v2112 = vadd.f32 0.0, %v2111
        %v2113 = vpop.f32.mrb[0].mxu0
        %v2114 = vadd.f32 0.0, %v2113
        %v2115 = vpop.f32.mrb[0].mxu0
        %v2116 = vadd.f32 0.0, %v2115
        %2117 = vmatprep.mubr.bf16.mxu0 0
        %2118 = vmatmul.mubr.bf16.gmra.mrb[0].mxu0 %v1829
        %v2119 = vpop.f32.mrb[0].mxu0
        %v2120 = vadd.f32 0.0, %v2119
        %v2121 = vpop.f32.mrb[0].mxu0
        %v2122 = vadd.f32 0.0, %v2121
        %v2123 = vpop.f32.mrb[0].mxu0
        %v2124 = vadd.f32 0.0, %v2123
        %v2125 = vpop.f32.mrb[0].mxu0
        %v2126 = vadd.f32 0.0, %v2125
        %2127 = vmatprep.mubr.bf16.mxu0 0
        %2128 = vmatmul.mubr.bf16.gmra.mrb[0].mxu0 %v1832
        %v2129 = vpop.f32.mrb[0].mxu0
        %v2130 = vadd.f32 0.0, %v2129
        %v2131 = vpop.f32.mrb[0].mxu0
        %v2132 = vadd.f32 0.0, %v2131
        %v2133 = vpop.f32.mrb[0].mxu0
        %v2134 = vadd.f32 0.0, %v2133
        %v2135 = vpop.f32.mrb[0].mxu0
        %v2136 = vadd.f32 0.0, %v2135
        %2137 = vmatprep.mubr.bf16.mxu0 0
        %2138 = vmatmul.mubr.bf16.gmra.mrb[0].mxu0 %v1835
        %v2139 = vpop.f32.mrb[0].mxu0
        %v2140 = vadd.f32 0.0, %v2139
        %v2141 = vpop.f32.mrb[0].mxu0
        %v2142 = vadd.f32 0.0, %v2141
        %v2143 = vpop.f32.mrb[0].mxu0
        %v2144 = vadd.f32 0.0, %v2143
        %v2145 = vpop.f32.mrb[0].mxu0
        %v2146 = vadd.f32 0.0, %v2145
        %2147 = vmatprep.mubr.bf16.mxu0 0
        %2148 = vmatmul.mubr.bf16.gmra.mrb[0].mxu0 %v1838
        %v2149 = vpop.f32.mrb[0].mxu0
        %v2150 = vadd.f32 0.0, %v2149
        %v2151 = vpop.f32.mrb[0].mxu0
        %v2152 = vadd.f32 0.0, %v2151
        %v2153 = vpop.f32.mrb[0].mxu0
        %v2154 = vadd.f32 0.0, %v2153
        %v2155 = vpop.f32.mrb[0].mxu0
        %v2156 = vadd.f32 0.0, %v2155
        %2157 = vmatprep.mubr.bf16.mxu0 0
        %2158 = vmatmul.mubr.bf16.gmra.mrb[0].mxu0 %v1841
        %v2159 = vpop.f32.mrb[0].mxu0
        %v2160 = vadd.f32 0.0, %v2159
        %v2161 = vpop.f32.mrb[0].mxu0
        %v2162 = vadd.f32 0.0, %v2161
        %v2163 = vpop.f32.mrb[0].mxu0
        %v2164 = vadd.f32 0.0, %v2163
        %v2165 = vpop.f32.mrb[0].mxu0
        %v2166 = vadd.f32 0.0, %v2165
        %2167 = vmatprep.mubr.bf16.mxu0 0
        %2168 = vmatmul.mubr.bf16.gmra.mrb[0].mxu0 %v1844
        %v2169 = vpop.f32.mrb[0].mxu0
        %v2170 = vadd.f32 0.0, %v2169
        %v2171 = vpop.f32.mrb[0].mxu0
        %v2172 = vadd.f32 0.0, %v2171
        %v2173 = vpop.f32.mrb[0].mxu0
        %v2174 = vadd.f32 0.0, %v2173
        %v2175 = vpop.f32.mrb[0].mxu0
        %v2176 = vadd.f32 0.0, %v2175
        %2177 = vmatprep.mubr.bf16.mxu0 0
        %2178 = vmatmul.mubr.bf16.gmra.mrb[0].mxu0 %v1847
        %v2179 = vpop.f32.mrb[0].mxu0
        %v2180 = vadd.f32 0.0, %v2179
        %v2181 = vpop.f32.mrb[0].mxu0
        %v2182 = vadd.f32 0.0, %v2181
        %v2183 = vpop.f32.mrb[0].mxu0
        %v2184 = vadd.f32 0.0, %v2183
        %v2185 = vpop.f32.mrb[0].mxu0
        %v2186 = vadd.f32 0.0, %v2185
        %2187 = vmatprep.mubr.bf16.mxu0 0
        %2188 = vmatmul.mubr.bf16.gmra.mrb[0].mxu0 %v1850
        %v2189 = vpop.f32.mrb[0].mxu0
        %v2190 = vadd.f32 0.0, %v2189
        %v2191 = vpop.f32.mrb[0].mxu0
        %v2192 = vadd.f32 0.0, %v2191
        %v2193 = vpop.f32.mrb[0].mxu0
        %v2194 = vadd.f32 0.0, %v2193
        %v2195 = vpop.f32.mrb[0].mxu0
        %v2196 = vadd.f32 0.0, %v2195
        %2197 = vmatprep.mubr.bf16.mxu0 0
        %2198 = vmatmul.mubr.bf16.gmra.mrb[0].mxu0 %v1853
        %v2199 = vpop.f32.mrb[0].mxu0
        %v2200 = vadd.f32 0.0, %v2199
        %v2201 = vpop.f32.mrb[0].mxu0
        %v2202 = vadd.f32 0.0, %v2201
        %v2203 = vpop.f32.mrb[0].mxu0
        %v2204 = vadd.f32 0.0, %v2203
        %v2205 = vpop.f32.mrb[0].mxu0
        %v2206 = vadd.f32 0.0, %v2205
        %2207 = vmatprep.mubr.bf16.mxu0 0
        %2208 = vmatmul.mubr.bf16.gmra.mrb[0].mxu0 %v1856
        %v2209 = vpop.f32.mrb[0].mxu0
        %v2210 = vadd.f32 0.0, %v2209
        %v2211 = vpop.f32.mrb[0].mxu0
        %v2212 = vadd.f32 0.0, %v2211
        %v2213 = vpop.f32.mrb[0].mxu0
        %v2214 = vpop.f32.mrb[0].mxu0
        %2215 = vdwg.mxu0
        %v2216 = vadd.f32 %v1332, %v1900
        %v2217 = vadd.f32 %v1334, %v1902
        %v2218 = vadd.f32 %v1336, %v1904
        %v2219 = vadd.f32 %v1338, %v1906
        %v2220 = vadd.f32 %v1342, %v1910
        %v2221 = vadd.f32 %v1344, %v1912
        %v2222 = vadd.f32 %v1346, %v1914
        %v2223 = vadd.f32 %v1348, %v1916
        %v2224 = vadd.f32 %v1352, %v1920
        %v2225 = vadd.f32 %v1354, %v1922
        %v2226 = vadd.f32 %v1356, %v1924
        %v2227 = vadd.f32 %v1358, %v1926
        %v2228 = vadd.f32 %v1362, %v1930
        %v2229 = vadd.f32 %v1364, %v1932
        %v2230 = vadd.f32 %v1366, %v1934
        %v2231 = vadd.f32 %v1368, %v1936
        %v2232 = vadd.f32 %v1372, %v1940
        %v2233 = vadd.f32 %v1374, %v1942
        %v2234 = vadd.f32 %v1376, %v1944
        %v2235 = vadd.f32 %v1378, %v1946
        %v2236 = vadd.f32 %v1382, %v1950
        %v2237 = vadd.f32 %v1384, %v1952
        %v2238 = vadd.f32 %v1386, %v1954
        %v2239 = vadd.f32 %v1388, %v1956
        %v2240 = vadd.f32 %v1392, %v1960
        %v2241 = vadd.f32 %v1394, %v1962
        %v2242 = vadd.f32 %v1396, %v1964
        %v2243 = vadd.f32 %v1398, %v1966
        %v2244 = vadd.f32 %v1402, %v1970
        %v2245 = vadd.f32 %v1404, %v1972
        %v2246 = vadd.f32 %v1406, %v1974
        %v2247 = vadd.f32 %v1408, %v1976
        %v2248 = vadd.f32 %v1412, %v1980
        %v2249 = vadd.f32 %v1414, %v1982
        %v2250 = vadd.f32 %v1416, %v1984
        %v2251 = vadd.f32 %v1418, %v1986
        %v2252 = vadd.f32 %v1422, %v1990
        %v2253 = vadd.f32 %v1424, %v1992
        %v2254 = vadd.f32 %v1426, %v1994
        %v2255 = vadd.f32 %v1428, %v1996
        %v2256 = vadd.f32 %v1432, %v2000
        %v2257 = vadd.f32 %v1434, %v2002
        %v2258 = vadd.f32 %v1436, %v2004
        %v2259 = vadd.f32 %v1438, %v2006
        %v2260 = vadd.f32 %v1442, %v2010
        %v2261 = vadd.f32 %v1444, %v2012
        %v2262 = vadd.f32 %v1446, %v2014
        %v2263 = vadd.f32 %v1448, %v2016
        %v2264 = vadd.f32 %v1452, %v2020
        %v2265 = vadd.f32 %v1454, %v2022
        %v2266 = vadd.f32 %v1456, %v2024
        %v2267 = vadd.f32 %v1458, %v2026
        %v2268 = vadd.f32 %v1462, %v2030
        %v2269 = vadd.f32 %v1464, %v2032
        %v2270 = vadd.f32 %v1466, %v2034
        %v2271 = vadd.f32 %v1468, %v2036
        %v2272 = vadd.f32 %v1472, %v2040
        %v2273 = vadd.f32 %v1474, %v2042
        %v2274 = vadd.f32 %v1476, %v2044
        %v2275 = vadd.f32 %v1478, %v2046
        %v2276 = vadd.f32 %v1482, %v2050
        %v2277 = vadd.f32 %v1484, %v2052
        %v2278 = vadd.f32 %v1486, %v2054
        %v2279 = vadd.f32 %v1488, %v2056
        %v2280 = vadd.f32 %v1492, %v2060
        %v2281 = vadd.f32 %v1494, %v2062
        %v2282 = vadd.f32 %v1496, %v2064
        %v2283 = vadd.f32 %v1498, %v2066
        %v2284 = vadd.f32 %v1502, %v2070
        %v2285 = vadd.f32 %v1504, %v2072
        %v2286 = vadd.f32 %v1506, %v2074
        %v2287 = vadd.f32 %v1508, %v2076
        %v2288 = vadd.f32 %v1512, %v2080
        %v2289 = vadd.f32 %v1514, %v2082
        %v2290 = vadd.f32 %v1516, %v2084
        %v2291 = vadd.f32 %v1518, %v2086
        %v2292 = vadd.f32 %v1522, %v2090
        %v2293 = vadd.f32 %v1524, %v2092
        %v2294 = vadd.f32 %v1526, %v2094
        %v2295 = vadd.f32 %v1528, %v2096
        %v2296 = vadd.f32 %v1532, %v2100
        %v2297 = vadd.f32 %v1534, %v2102
        %v2298 = vadd.f32 %v1536, %v2104
        %v2299 = vadd.f32 %v1538, %v2106
        %v2300 = vadd.f32 %v1542, %v2110
        %v2301 = vadd.f32 %v1544, %v2112
        %v2302 = vadd.f32 %v1546, %v2114
        %v2303 = vadd.f32 %v1548, %v2116
        %v2304 = vadd.f32 %v1552, %v2120
        %v2305 = vadd.f32 %v1554, %v2122
        %v2306 = vadd.f32 %v1556, %v2124
        %v2307 = vadd.f32 %v1558, %v2126
        %v2308 = vadd.f32 %v1562, %v2130
        %v2309 = vadd.f32 %v1564, %v2132
        %v2310 = vadd.f32 %v1566, %v2134
        %v2311 = vadd.f32 %v1568, %v2136
        %v2312 = vadd.f32 %v1572, %v2140
        %v2313 = vadd.f32 %v1574, %v2142
        %v2314 = vadd.f32 %v1576, %v2144
        %v2315 = vadd.f32 %v1578, %v2146
        %v2316 = vadd.f32 %v1582, %v2150
        %v2317 = vadd.f32 %v1584, %v2152
        %v2318 = vadd.f32 %v1586, %v2154
        %v2319 = vadd.f32 %v1588, %v2156
        %v2320 = vadd.f32 %v1592, %v2160
        %v2321 = vadd.f32 %v1594, %v2162
        %v2322 = vadd.f32 %v1596, %v2164
        %v2323 = vadd.f32 %v1598, %v2166
        %v2324 = vadd.f32 %v1602, %v2170
        %v2325 = vadd.f32 %v1604, %v2172
        %v2326 = vadd.f32 %v1606, %v2174
        %v2327 = vadd.f32 %v1608, %v2176
        %v2328 = vadd.f32 %v1612, %v2180
        %v2329 = vadd.f32 %v1614, %v2182
        %v2330 = vadd.f32 %v1616, %v2184
        %v2331 = vadd.f32 %v1618, %v2186
        %v2332 = vadd.f32 %v1622, %v2190
        %v2333 = vadd.f32 %v1624, %v2192
        %v2334 = vadd.f32 %v1626, %v2194
        %v2335 = vadd.f32 %v1628, %v2196
        %v2336 = vadd.f32 %v1632, %v2200
        %v2337 = vadd.f32 %v1634, %v2202
        %v2338 = vadd.f32 %v1636, %v2204
        %v2339 = vadd.f32 %v1638, %v2206
        %v2340 = vadd.f32 %v1642, %v2210
        %v2341 = vadd.f32 %v1644, %v2212
        %v2342 = vld [vmem:[%s505] sm:$0xff]
        %v2343 = vld [vmem:[%s505 + $0x8] sm:$0xff]
        %v2344 = vld [vmem:[%s505 + $0x10] sm:$0xff]
        %v2345 = vld [vmem:[%s505 + $0x18] sm:$0xff]
        %v2346 = vld [vmem:[%s505 + $0x20] sm:$0xff]
        %v2347 = vld [vmem:[%s505 + $0x28] sm:$0xff]
        %v2348 = vld [vmem:[%s505 + $0x30] sm:$0xff]
        %v2349 = vld [vmem:[%s505 + $0x38] sm:$0xff]
        %v2350 = vld [vmem:[%s505 + $0x40] sm:$0xff]
        %v2351 = vld [vmem:[%s505 + $0x48] sm:$0xff]
        %v2352 = vld [vmem:[%s505 + $0x50] sm:$0xff]
        %v2353 = vld [vmem:[%s505 + $0x58] sm:$0xff]
        %v2354 = vld [vmem:[%s505 + $0x60] sm:$0xff]
        %v2355 = vld [vmem:[%s505 + $0x68] sm:$0xff]
        %v2356 = vld [vmem:[%s505 + $0x70] sm:$0xff]
        %v2357 = vld [vmem:[%s505 + $0x78] sm:$0xff]
        %v2358 = vld [vmem:[%s505 + $0x80] sm:$0xff]
        %v2359 = vld [vmem:[%s505 + $0x88] sm:$0xff]
        %v2360 = vld [vmem:[%s505 + $0x90] sm:$0xff]
        %v2361 = vld [vmem:[%s505 + $0x98] sm:$0xff]
        %v2362 = vld [vmem:[%s505 + $0xa0] sm:$0xff]
        %v2363 = vld [vmem:[%s505 + $0xa8] sm:$0xff]
        %v2364 = vld [vmem:[%s505 + $0xb0] sm:$0xff]
        %v2365 = vld [vmem:[%s505 + $0xb8] sm:$0xff]
        %v2366 = vld [vmem:[%s505 + $0xc0] sm:$0xff]
        %v2367 = vld [vmem:[%s505 + $0xc8] sm:$0xff]
        %v2368 = vld [vmem:[%s505 + $0xd0] sm:$0xff]
        %v2369 = vld [vmem:[%s505 + $0xd8] sm:$0xff]
        %v2370 = vld [vmem:[%s505 + $0xe0] sm:$0xff]
        %v2371 = vld [vmem:[%s505 + $0xe8] sm:$0xff]
        %v2372 = vld [vmem:[%s505 + $0xf0] sm:$0xff]
        %v2373 = vld [vmem:[%s505 + $0xf8] sm:$0xff]
        %v2374 = vld [vmem:[%s505 + $0x100] sm:$0xff]
        %v2375 = vld [vmem:[%s505 + $0x108] sm:$0xff]
        %v2376 = vld [vmem:[%s505 + $0x110] sm:$0xff]
        %v2377 = vld [vmem:[%s505 + $0x118] sm:$0xff]
        %v2378 = vld [vmem:[%s505 + $0x120] sm:$0xff]
        %v2379 = vld [vmem:[%s505 + $0x128] sm:$0xff]
        %v2380 = vld [vmem:[%s505 + $0x130] sm:$0xff]
        %v2381 = vld [vmem:[%s505 + $0x138] sm:$0xff]
        %v2382 = vld [vmem:[%s505 + $0x140] sm:$0xff]
        %v2383 = vld [vmem:[%s505 + $0x148] sm:$0xff]
        %v2384 = vld [vmem:[%s505 + $0x150] sm:$0xff]
        %v2385 = vld [vmem:[%s505 + $0x158] sm:$0xff]
        %v2386 = vld [vmem:[%s505 + $0x160] sm:$0xff]
        %v2387 = vld [vmem:[%s505 + $0x168] sm:$0xff]
        %v2388 = vld [vmem:[%s505 + $0x170] sm:$0xff]
        %v2389 = vld [vmem:[%s505 + $0x178] sm:$0xff]
        %v2390 = vld [vmem:[%s505 + $0x180] sm:$0xff]
        %v2391 = vld [vmem:[%s505 + $0x188] sm:$0xff]
        %v2392 = vld [vmem:[%s505 + $0x190] sm:$0xff]
        %v2393 = vld [vmem:[%s505 + $0x198] sm:$0xff]
        %v2394 = vld [vmem:[%s505 + $0x1a0] sm:$0xff]
        %v2395 = vld [vmem:[%s505 + $0x1a8] sm:$0xff]
        %v2396 = vld [vmem:[%s505 + $0x1b0] sm:$0xff]
        %v2397 = vld [vmem:[%s505 + $0x1b8] sm:$0xff]
        %v2398 = vld [vmem:[%s505 + $0x1c0] sm:$0xff]
        %v2399 = vld [vmem:[%s505 + $0x1c8] sm:$0xff]
        %v2400 = vld [vmem:[%s505 + $0x1d0] sm:$0xff]
        %v2401 = vld [vmem:[%s505 + $0x1d8] sm:$0xff]
        %v2402 = vld [vmem:[%s505 + $0x1e0] sm:$0xff]
        %v2403 = vld [vmem:[%s505 + $0x1e8] sm:$0xff]
        %v2404 = vld [vmem:[%s505 + $0x1f0] sm:$0xff]
        %v2405 = vpack.c.bf16 %v2343, %v2342
        %v2406 = vpack.c.bf16 %v2345, %v2344
        %v2407 = vpack.c.bf16 %v2347, %v2346
        %v2408 = vpack.c.bf16 %v2349, %v2348
        %v2409 = vpack.c.bf16 %v2351, %v2350
        %v2410 = vpack.c.bf16 %v2353, %v2352
        %v2411 = vpack.c.bf16 %v2355, %v2354
        %v2412 = vpack.c.bf16 %v2357, %v2356
        %v2413 = vpack.c.bf16 %v2359, %v2358
        %v2414 = vpack.c.bf16 %v2361, %v2360
        %v2415 = vpack.c.bf16 %v2363, %v2362
        %v2416 = vpack.c.bf16 %v2365, %v2364
        %v2417 = vpack.c.bf16 %v2367, %v2366
        %v2418 = vpack.c.bf16 %v2369, %v2368
        %v2419 = vpack.c.bf16 %v2371, %v2370
        %v2420 = vpack.c.bf16 %v2373, %v2372
        %v2421 = vpack.c.bf16 %v2375, %v2374
        %v2422 = vpack.c.bf16 %v2377, %v2376
        %v2423 = vpack.c.bf16 %v2379, %v2378
        %v2424 = vpack.c.bf16 %v2381, %v2380
        %v2425 = vpack.c.bf16 %v2383, %v2382
        %v2426 = vpack.c.bf16 %v2385, %v2384
        %v2427 = vpack.c.bf16 %v2387, %v2386
        %v2428 = vpack.c.bf16 %v2389, %v2388
        %v2429 = vpack.c.bf16 %v2391, %v2390
        %v2430 = vpack.c.bf16 %v2393, %v2392
        %v2431 = vpack.c.bf16 %v2395, %v2394
        %v2432 = vpack.c.bf16 %v2397, %v2396
        %v2433 = vpack.c.bf16 %v2399, %v2398
        %v2434 = vpack.c.bf16 %v2401, %v2400
        %v2435 = vpack.c.bf16 %v2403, %v2402
        %v2436 = vpack.c.bf16 %v2404, %v2404
        %v2437 = vld [vmem:[%s7] sm:$0xf]
        %v2440 = vunpack.c.l.s4 1983009808
        %v2441 = vunpack.c.0.s8 %v2440
        %v2442 = vlaneseq
        %v2443 = vshrl.u32 %v2442, 7
        %v2444 = vsub.s32 %v2441, %v2443
        %v2445 = vrot.slane %v2437, %v2444
        %v2446 = vcombine.high %v2445, %v2445
        %vm2447 = vcmask 31744
        %v2449 = vsel %vm2447, %v2405, 0
        %v2452 = vsel %vm2447, %v2406, 0
        %v2455 = vsel %vm2447, %v2407, 0
        %v2458 = vsel %vm2447, %v2408, 0
        %v2461 = vsel %vm2447, %v2409, 0
        %v2464 = vsel %vm2447, %v2410, 0
        %v2467 = vsel %vm2447, %v2411, 0
        %v2470 = vsel %vm2447, %v2412, 0
        %v2473 = vsel %vm2447, %v2413, 0
        %v2476 = vsel %vm2447, %v2414, 0
        %v2479 = vsel %vm2447, %v2415, 0
        %v2482 = vsel %vm2447, %v2416, 0
        %v2485 = vsel %vm2447, %v2417, 0
        %v2488 = vsel %vm2447, %v2418, 0
        %v2491 = vsel %vm2447, %v2419, 0
        %v2494 = vsel %vm2447, %v2420, 0
        %v2497 = vsel %vm2447, %v2421, 0
        %v2500 = vsel %vm2447, %v2422, 0
        %v2503 = vsel %vm2447, %v2423, 0
        %v2506 = vsel %vm2447, %v2424, 0
        %v2509 = vsel %vm2447, %v2425, 0
        %v2512 = vsel %vm2447, %v2426, 0
        %v2515 = vsel %vm2447, %v2427, 0
        %v2518 = vsel %vm2447, %v2428, 0
        %v2521 = vsel %vm2447, %v2429, 0
        %v2524 = vsel %vm2447, %v2430, 0
        %v2527 = vsel %vm2447, %v2431, 0
        %v2530 = vsel %vm2447, %v2432, 0
        %v2533 = vsel %vm2447, %v2433, 0
        %v2536 = vsel %vm2447, %v2434, 0
        %v2539 = vsel %vm2447, %v2435, 0
        %v2542 = vsel %vm2447, %v2436, 0
        %vm2544 = vcmask 1041408
        %v2546 = vsel %vm2544, %v2445, 0
        %v2549 = vsel %vm2544, %v2446, 0
        %2551 = vmatprep.subr.bf16.mxu0 %v2549
        %2552 = vmatpush1.bf16.msra.mxu0 %v2546
        %2553 = vmatprep.subr.bf16.mxu0 0
        %2554 = vmatpush1.bf16.msra.mxu0 0
        %2555 = vmatprep.subr.bf16.mxu0 0
        %2556 = vmatpush1.bf16.msra.mxu0 0
        %2557 = vmatprep.subr.bf16.mxu0 0
        %2558 = vmatpush1.bf16.msra.mxu0 0
        %2559 = vmatprep.subr.bf16.mxu0 0
        %2560 = vmatpush1.bf16.msra.mxu0 0
        %2561 = vmatprep.subr.bf16.mxu0 0
        %2562 = vmatpush1.bf16.msra.mxu0 0
        %2563 = vmatprep.subr.bf16.mxu0 0
        %2564 = vmatpush1.bf16.msra.mxu0 0
        %2565 = vmatprep.subr.bf16.mxu0 0
        %2566 = vmatpush1.bf16.msra.mxu0 0
        %2567 = vmatprep.subr.bf16.mxu0 0
        %2568 = vmatpush1.bf16.msra.mxu0 0
        %2569 = vmatprep.subr.bf16.mxu0 0
        %2570 = vmatpush1.bf16.msra.mxu0 0
        %2571 = vmatprep.subr.bf16.mxu0 0
        %2572 = vmatpush1.bf16.msra.mxu0 0
        %2573 = vmatprep.subr.bf16.mxu0 0
        %2574 = vmatpush1.bf16.msra.mxu0 0
        %2575 = vmatprep.subr.bf16.mxu0 0
        %2576 = vmatpush1.bf16.msra.mxu0 0
        %2577 = vmatprep.subr.bf16.mxu0 0
        %2578 = vmatpush1.bf16.msra.mxu0 0
        %2579 = vmatprep.subr.bf16.mxu0 0
        %2580 = vmatpush1.bf16.msra.mxu0 0
        %2581 = vmatprep.subr.bf16.mxu0 0
        %2582 = vmatpush1.bf16.msra.mxu0 0
        %2583 = vmatprep.mubr.bf16.mxu0 0
        %2584 = vmatmul.mubr.bf16.gmra.mrb[0].mxu0 %v2449
        %v2585 = vpop.f32.mrb[0].mxu0
        %v2586 = vadd.f32 0.0, %v2585
        %v2587 = vpop.f32.mrb[0].mxu0
        %v2588 = vadd.f32 0.0, %v2587
        %v2589 = vpop.f32.mrb[0].mxu0
        %v2590 = vadd.f32 0.0, %v2589
        %v2591 = vpop.f32.mrb[0].mxu0
        %v2592 = vadd.f32 0.0, %v2591
        %2593 = vmatprep.mubr.bf16.mxu0 0
        %2594 = vmatmul.mubr.bf16.gmra.mrb[0].mxu0 %v2452
        %v2595 = vpop.f32.mrb[0].mxu0
        %v2596 = vadd.f32 0.0, %v2595
        %v2597 = vpop.f32.mrb[0].mxu0
        %v2598 = vadd.f32 0.0, %v2597
        %v2599 = vpop.f32.mrb[0].mxu0
        %v2600 = vadd.f32 0.0, %v2599
        %v2601 = vpop.f32.mrb[0].mxu0
        %v2602 = vadd.f32 0.0, %v2601
        %2603 = vmatprep.mubr.bf16.mxu0 0
        %2604 = vmatmul.mubr.bf16.gmra.mrb[0].mxu0 %v2455
        %v2605 = vpop.f32.mrb[0].mxu0
        %v2606 = vadd.f32 0.0, %v2605
        %v2607 = vpop.f32.mrb[0].mxu0
        %v2608 = vadd.f32 0.0, %v2607
        %v2609 = vpop.f32.mrb[0].mxu0
        %v2610 = vadd.f32 0.0, %v2609
        %v2611 = vpop.f32.mrb[0].mxu0
        %v2612 = vadd.f32 0.0, %v2611
        %2613 = vmatprep.mubr.bf16.mxu0 0
        %2614 = vmatmul.mubr.bf16.gmra.mrb[0].mxu0 %v2458
        %v2615 = vpop.f32.mrb[0].mxu0
        %v2616 = vadd.f32 0.0, %v2615
        %v2617 = vpop.f32.mrb[0].mxu0
        %v2618 = vadd.f32 0.0, %v2617
        %v2619 = vpop.f32.mrb[0].mxu0
        %v2620 = vadd.f32 0.0, %v2619
        %v2621 = vpop.f32.mrb[0].mxu0
        %v2622 = vadd.f32 0.0, %v2621
        %2623 = vmatprep.mubr.bf16.mxu0 0
        %2624 = vmatmul.mubr.bf16.gmra.mrb[0].mxu0 %v2461
        %v2625 = vpop.f32.mrb[0].mxu0
        %v2626 = vadd.f32 0.0, %v2625
        %v2627 = vpop.f32.mrb[0].mxu0
        %v2628 = vadd.f32 0.0, %v2627
        %v2629 = vpop.f32.mrb[0].mxu0
        %v2630 = vadd.f32 0.0, %v2629
        %v2631 = vpop.f32.mrb[0].mxu0
        %v2632 = vadd.f32 0.0, %v2631
        %2633 = vmatprep.mubr.bf16.mxu0 0
        %2634 = vmatmul.mubr.bf16.gmra.mrb[0].mxu0 %v2464
        %v2635 = vpop.f32.mrb[0].mxu0
        %v2636 = vadd.f32 0.0, %v2635
        %v2637 = vpop.f32.mrb[0].mxu0
        %v2638 = vadd.f32 0.0, %v2637
        %v2639 = vpop.f32.mrb[0].mxu0
        %v2640 = vadd.f32 0.0, %v2639
        %v2641 = vpop.f32.mrb[0].mxu0
        %v2642 = vadd.f32 0.0, %v2641
        %2643 = vmatprep.mubr.bf16.mxu0 0
        %2644 = vmatmul.mubr.bf16.gmra.mrb[0].mxu0 %v2467
        %v2645 = vpop.f32.mrb[0].mxu0
        %v2646 = vadd.f32 0.0, %v2645
        %v2647 = vpop.f32.mrb[0].mxu0
        %v2648 = vadd.f32 0.0, %v2647
        %v2649 = vpop.f32.mrb[0].mxu0
        %v2650 = vadd.f32 0.0, %v2649
        %v2651 = vpop.f32.mrb[0].mxu0
        %v2652 = vadd.f32 0.0, %v2651
        %2653 = vmatprep.mubr.bf16.mxu0 0
        %2654 = vmatmul.mubr.bf16.gmra.mrb[0].mxu0 %v2470
        %v2655 = vpop.f32.mrb[0].mxu0
        %v2656 = vadd.f32 0.0, %v2655
        %v2657 = vpop.f32.mrb[0].mxu0
        %v2658 = vadd.f32 0.0, %v2657
        %v2659 = vpop.f32.mrb[0].mxu0
        %v2660 = vadd.f32 0.0, %v2659
        %v2661 = vpop.f32.mrb[0].mxu0
        %v2662 = vadd.f32 0.0, %v2661
        %2663 = vmatprep.mubr.bf16.mxu0 0
        %2664 = vmatmul.mubr.bf16.gmra.mrb[0].mxu0 %v2473
        %v2665 = vpop.f32.mrb[0].mxu0
        %v2666 = vadd.f32 0.0, %v2665
        %v2667 = vpop.f32.mrb[0].mxu0
        %v2668 = vadd.f32 0.0, %v2667
        %v2669 = vpop.f32.mrb[0].mxu0
        %v2670 = vadd.f32 0.0, %v2669
        %v2671 = vpop.f32.mrb[0].mxu0
        %v2672 = vadd.f32 0.0, %v2671
        %2673 = vmatprep.mubr.bf16.mxu0 0
        %2674 = vmatmul.mubr.bf16.gmra.mrb[0].mxu0 %v2476
        %v2675 = vpop.f32.mrb[0].mxu0
        %v2676 = vadd.f32 0.0, %v2675
        %v2677 = vpop.f32.mrb[0].mxu0
        %v2678 = vadd.f32 0.0, %v2677
        %v2679 = vpop.f32.mrb[0].mxu0
        %v2680 = vadd.f32 0.0, %v2679
        %v2681 = vpop.f32.mrb[0].mxu0
        %v2682 = vadd.f32 0.0, %v2681
        %2683 = vmatprep.mubr.bf16.mxu0 0
        %2684 = vmatmul.mubr.bf16.gmra.mrb[0].mxu0 %v2479
        %v2685 = vpop.f32.mrb[0].mxu0
        %v2686 = vadd.f32 0.0, %v2685
        %v2687 = vpop.f32.mrb[0].mxu0
        %v2688 = vadd.f32 0.0, %v2687
        %v2689 = vpop.f32.mrb[0].mxu0
        %v2690 = vadd.f32 0.0, %v2689
        %v2691 = vpop.f32.mrb[0].mxu0
        %v2692 = vadd.f32 0.0, %v2691
        %2693 = vmatprep.mubr.bf16.mxu0 0
        %2694 = vmatmul.mubr.bf16.gmra.mrb[0].mxu0 %v2482
        %v2695 = vpop.f32.mrb[0].mxu0
        %v2696 = vadd.f32 0.0, %v2695
        %v2697 = vpop.f32.mrb[0].mxu0
        %v2698 = vadd.f32 0.0, %v2697
        %v2699 = vpop.f32.mrb[0].mxu0
        %v2700 = vadd.f32 0.0, %v2699
        %v2701 = vpop.f32.mrb[0].mxu0
        %v2702 = vadd.f32 0.0, %v2701
        %2703 = vmatprep.mubr.bf16.mxu0 0
        %2704 = vmatmul.mubr.bf16.gmra.mrb[0].mxu0 %v2485
        %v2705 = vpop.f32.mrb[0].mxu0
        %v2706 = vadd.f32 0.0, %v2705
        %v2707 = vpop.f32.mrb[0].mxu0
        %v2708 = vadd.f32 0.0, %v2707
        %v2709 = vpop.f32.mrb[0].mxu0
        %v2710 = vadd.f32 0.0, %v2709
        %v2711 = vpop.f32.mrb[0].mxu0
        %v2712 = vadd.f32 0.0, %v2711
        %2713 = vmatprep.mubr.bf16.mxu0 0
        %2714 = vmatmul.mubr.bf16.gmra.mrb[0].mxu0 %v2488
        %v2715 = vpop.f32.mrb[0].mxu0
        %v2716 = vadd.f32 0.0, %v2715
        %v2717 = vpop.f32.mrb[0].mxu0
        %v2718 = vadd.f32 0.0, %v2717
        %v2719 = vpop.f32.mrb[0].mxu0
        %v2720 = vadd.f32 0.0, %v2719
        %v2721 = vpop.f32.mrb[0].mxu0
        %v2722 = vadd.f32 0.0, %v2721
        %2723 = vmatprep.mubr.bf16.mxu0 0
        %2724 = vmatmul.mubr.bf16.gmra.mrb[0].mxu0 %v2491
        %v2725 = vpop.f32.mrb[0].mxu0
        %v2726 = vadd.f32 0.0, %v2725
        %v2727 = vpop.f32.mrb[0].mxu0
        %v2728 = vadd.f32 0.0, %v2727
        %v2729 = vpop.f32.mrb[0].mxu0
        %v2730 = vadd.f32 0.0, %v2729
        %v2731 = vpop.f32.mrb[0].mxu0
        %v2732 = vadd.f32 0.0, %v2731
        %2733 = vmatprep.mubr.bf16.mxu0 0
        %2734 = vmatmul.mubr.bf16.gmra.mrb[0].mxu0 %v2494
        %v2735 = vpop.f32.mrb[0].mxu0
        %v2736 = vadd.f32 0.0, %v2735
        %v2737 = vpop.f32.mrb[0].mxu0
        %v2738 = vadd.f32 0.0, %v2737
        %v2739 = vpop.f32.mrb[0].mxu0
        %v2740 = vadd.f32 0.0, %v2739
        %v2741 = vpop.f32.mrb[0].mxu0
        %v2742 = vadd.f32 0.0, %v2741
        %2743 = vmatprep.mubr.bf16.mxu0 0
        %2744 = vmatmul.mubr.bf16.gmra.mrb[0].mxu0 %v2497
        %v2745 = vpop.f32.mrb[0].mxu0
        %v2746 = vadd.f32 0.0, %v2745
        %v2747 = vpop.f32.mrb[0].mxu0
        %v2748 = vadd.f32 0.0, %v2747
        %v2749 = vpop.f32.mrb[0].mxu0
        %v2750 = vadd.f32 0.0, %v2749
        %v2751 = vpop.f32.mrb[0].mxu0
        %v2752 = vadd.f32 0.0, %v2751
        %2753 = vmatprep.mubr.bf16.mxu0 0
        %2754 = vmatmul.mubr.bf16.gmra.mrb[0].mxu0 %v2500
        %v2755 = vpop.f32.mrb[0].mxu0
        %v2756 = vadd.f32 0.0, %v2755
        %v2757 = vpop.f32.mrb[0].mxu0
        %v2758 = vadd.f32 0.0, %v2757
        %v2759 = vpop.f32.mrb[0].mxu0
        %v2760 = vadd.f32 0.0, %v2759
        %v2761 = vpop.f32.mrb[0].mxu0
        %v2762 = vadd.f32 0.0, %v2761
        %2763 = vmatprep.mubr.bf16.mxu0 0
        %2764 = vmatmul.mubr.bf16.gmra.mrb[0].mxu0 %v2503
        %v2765 = vpop.f32.mrb[0].mxu0
        %v2766 = vadd.f32 0.0, %v2765
        %v2767 = vpop.f32.mrb[0].mxu0
        %v2768 = vadd.f32 0.0, %v2767
        %v2769 = vpop.f32.mrb[0].mxu0
        %v2770 = vadd.f32 0.0, %v2769
        %v2771 = vpop.f32.mrb[0].mxu0
        %v2772 = vadd.f32 0.0, %v2771
        %2773 = vmatprep.mubr.bf16.mxu0 0
        %2774 = vmatmul.mubr.bf16.gmra.mrb[0].mxu0 %v2506
        %v2775 = vpop.f32.mrb[0].mxu0
        %v2776 = vadd.f32 0.0, %v2775
        %v2777 = vpop.f32.mrb[0].mxu0
        %v2778 = vadd.f32 0.0, %v2777
        %v2779 = vpop.f32.mrb[0].mxu0
        %v2780 = vadd.f32 0.0, %v2779
        %v2781 = vpop.f32.mrb[0].mxu0
        %v2782 = vadd.f32 0.0, %v2781
        %2783 = vmatprep.mubr.bf16.mxu0 0
        %2784 = vmatmul.mubr.bf16.gmra.mrb[0].mxu0 %v2509
        %v2785 = vpop.f32.mrb[0].mxu0
        %v2786 = vadd.f32 0.0, %v2785
        %v2787 = vpop.f32.mrb[0].mxu0
        %v2788 = vadd.f32 0.0, %v2787
        %v2789 = vpop.f32.mrb[0].mxu0
        %v2790 = vadd.f32 0.0, %v2789
        %v2791 = vpop.f32.mrb[0].mxu0
        %v2792 = vadd.f32 0.0, %v2791
        %2793 = vmatprep.mubr.bf16.mxu0 0
        %2794 = vmatmul.mubr.bf16.gmra.mrb[0].mxu0 %v2512
        %v2795 = vpop.f32.mrb[0].mxu0
        %v2796 = vadd.f32 0.0, %v2795
        %v2797 = vpop.f32.mrb[0].mxu0
        %v2798 = vadd.f32 0.0, %v2797
        %v2799 = vpop.f32.mrb[0].mxu0
        %v2800 = vadd.f32 0.0, %v2799
        %v2801 = vpop.f32.mrb[0].mxu0
        %v2802 = vadd.f32 0.0, %v2801
        %2803 = vmatprep.mubr.bf16.mxu0 0
        %2804 = vmatmul.mubr.bf16.gmra.mrb[0].mxu0 %v2515
        %v2805 = vpop.f32.mrb[0].mxu0
        %v2806 = vadd.f32 0.0, %v2805
        %v2807 = vpop.f32.mrb[0].mxu0
        %v2808 = vadd.f32 0.0, %v2807
        %v2809 = vpop.f32.mrb[0].mxu0
        %v2810 = vadd.f32 0.0, %v2809
        %v2811 = vpop.f32.mrb[0].mxu0
        %v2812 = vadd.f32 0.0, %v2811
        %2813 = vmatprep.mubr.bf16.mxu0 0
        %2814 = vmatmul.mubr.bf16.gmra.mrb[0].mxu0 %v2518
        %v2815 = vpop.f32.mrb[0].mxu0
        %v2816 = vadd.f32 0.0, %v2815
        %v2817 = vpop.f32.mrb[0].mxu0
        %v2818 = vadd.f32 0.0, %v2817
        %v2819 = vpop.f32.mrb[0].mxu0
        %v2820 = vadd.f32 0.0, %v2819
        %v2821 = vpop.f32.mrb[0].mxu0
        %v2822 = vadd.f32 0.0, %v2821
        %2823 = vmatprep.mubr.bf16.mxu0 0
        %2824 = vmatmul.mubr.bf16.gmra.mrb[0].mxu0 %v2521
        %v2825 = vpop.f32.mrb[0].mxu0
        %v2826 = vadd.f32 0.0, %v2825
        %v2827 = vpop.f32.mrb[0].mxu0
        %v2828 = vadd.f32 0.0, %v2827
        %v2829 = vpop.f32.mrb[0].mxu0
        %v2830 = vadd.f32 0.0, %v2829
        %v2831 = vpop.f32.mrb[0].mxu0
        %v2832 = vadd.f32 0.0, %v2831
        %2833 = vmatprep.mubr.bf16.mxu0 0
        %2834 = vmatmul.mubr.bf16.gmra.mrb[0].mxu0 %v2524
        %v2835 = vpop.f32.mrb[0].mxu0
        %v2836 = vadd.f32 0.0, %v2835
        %v2837 = vpop.f32.mrb[0].mxu0
        %v2838 = vadd.f32 0.0, %v2837
        %v2839 = vpop.f32.mrb[0].mxu0
        %v2840 = vadd.f32 0.0, %v2839
        %v2841 = vpop.f32.mrb[0].mxu0
        %v2842 = vadd.f32 0.0, %v2841
        %2843 = vmatprep.mubr.bf16.mxu0 0
        %2844 = vmatmul.mubr.bf16.gmra.mrb[0].mxu0 %v2527
        %v2845 = vpop.f32.mrb[0].mxu0
        %v2846 = vadd.f32 0.0, %v2845
        %v2847 = vpop.f32.mrb[0].mxu0
        %v2848 = vadd.f32 0.0, %v2847
        %v2849 = vpop.f32.mrb[0].mxu0
        %v2850 = vadd.f32 0.0, %v2849
        %v2851 = vpop.f32.mrb[0].mxu0
        %v2852 = vadd.f32 0.0, %v2851
        %2853 = vmatprep.mubr.bf16.mxu0 0
        %2854 = vmatmul.mubr.bf16.gmra.mrb[0].mxu0 %v2530
        %v2855 = vpop.f32.mrb[0].mxu0
        %v2856 = vadd.f32 0.0, %v2855
        %v2857 = vpop.f32.mrb[0].mxu0
        %v2858 = vadd.f32 0.0, %v2857
        %v2859 = vpop.f32.mrb[0].mxu0
        %v2860 = vadd.f32 0.0, %v2859
        %v2861 = vpop.f32.mrb[0].mxu0
        %v2862 = vadd.f32 0.0, %v2861
        %2863 = vmatprep.mubr.bf16.mxu0 0
        %2864 = vmatmul.mubr.bf16.gmra.mrb[0].mxu0 %v2533
        %v2865 = vpop.f32.mrb[0].mxu0
        %v2866 = vadd.f32 0.0, %v2865
        %v2867 = vpop.f32.mrb[0].mxu0
        %v2868 = vadd.f32 0.0, %v2867
        %v2869 = vpop.f32.mrb[0].mxu0
        %v2870 = vadd.f32 0.0, %v2869
        %v2871 = vpop.f32.mrb[0].mxu0
        %v2872 = vadd.f32 0.0, %v2871
        %2873 = vmatprep.mubr.bf16.mxu0 0
        %2874 = vmatmul.mubr.bf16.gmra.mrb[0].mxu0 %v2536
        %v2875 = vpop.f32.mrb[0].mxu0
        %v2876 = vadd.f32 0.0, %v2875
        %v2877 = vpop.f32.mrb[0].mxu0
        %v2878 = vadd.f32 0.0, %v2877
        %v2879 = vpop.f32.mrb[0].mxu0
        %v2880 = vadd.f32 0.0, %v2879
        %v2881 = vpop.f32.mrb[0].mxu0
        %v2882 = vadd.f32 0.0, %v2881
        %2883 = vmatprep.mubr.bf16.mxu0 0
        %2884 = vmatmul.mubr.bf16.gmra.mrb[0].mxu0 %v2539
        %v2885 = vpop.f32.mrb[0].mxu0
        %v2886 = vadd.f32 0.0, %v2885
        %v2887 = vpop.f32.mrb[0].mxu0
        %v2888 = vadd.f32 0.0, %v2887
        %v2889 = vpop.f32.mrb[0].mxu0
        %v2890 = vadd.f32 0.0, %v2889
        %v2891 = vpop.f32.mrb[0].mxu0
        %v2892 = vadd.f32 0.0, %v2891
        %2893 = vmatprep.mubr.bf16.mxu0 0
        %2894 = vmatmul.mubr.bf16.gmra.mrb[0].mxu0 %v2542
        %v2895 = vpop.f32.mrb[0].mxu0
        %v2896 = vadd.f32 0.0, %v2895
        %v2897 = vpop.f32.mrb[0].mxu0
        %v2898 = vadd.f32 0.0, %v2897
        %v2899 = vpop.f32.mrb[0].mxu0
        %v2900 = vpop.f32.mrb[0].mxu0
        %2901 = vdwg.mxu0
        %v2902 = vadd.f32 %v2216, %v2586
        %v2903 = vadd.f32 %v2217, %v2588
        %v2904 = vadd.f32 %v2218, %v2590
        %v2905 = vadd.f32 %v2219, %v2592
        %v2906 = vadd.f32 %v2220, %v2596
        %v2907 = vadd.f32 %v2221, %v2598
        %v2908 = vadd.f32 %v2222, %v2600
        %v2909 = vadd.f32 %v2223, %v2602
        %v2910 = vadd.f32 %v2224, %v2606
        %v2911 = vadd.f32 %v2225, %v2608
        %v2912 = vadd.f32 %v2226, %v2610
        %v2913 = vadd.f32 %v2227, %v2612
        %v2914 = vadd.f32 %v2228, %v2616
        %v2915 = vadd.f32 %v2229, %v2618
        %v2916 = vadd.f32 %v2230, %v2620
        %v2917 = vadd.f32 %v2231, %v2622
        %v2918 = vadd.f32 %v2232, %v2626
        %v2919 = vadd.f32 %v2233, %v2628
        %v2920 = vadd.f32 %v2234, %v2630
        %v2921 = vadd.f32 %v2235, %v2632
        %v2922 = vadd.f32 %v2236, %v2636
        %v2923 = vadd.f32 %v2237, %v2638
        %v2924 = vadd.f32 %v2238, %v2640
        %v2925 = vadd.f32 %v2239, %v2642
        %v2926 = vadd.f32 %v2240, %v2646
        %v2927 = vadd.f32 %v2241, %v2648
        %v2928 = vadd.f32 %v2242, %v2650
        %v2929 = vadd.f32 %v2243, %v2652
        %v2930 = vadd.f32 %v2244, %v2656
        %v2931 = vadd.f32 %v2245, %v2658
        %v2932 = vadd.f32 %v2246, %v2660
        %v2933 = vadd.f32 %v2247, %v2662
        %v2934 = vadd.f32 %v2248, %v2666
        %v2935 = vadd.f32 %v2249, %v2668
        %v2936 = vadd.f32 %v2250, %v2670
        %v2937 = vadd.f32 %v2251, %v2672
        %v2938 = vadd.f32 %v2252, %v2676
        %v2939 = vadd.f32 %v2253, %v2678
        %v2940 = vadd.f32 %v2254, %v2680
        %v2941 = vadd.f32 %v2255, %v2682
        %v2942 = vadd.f32 %v2256, %v2686
        %v2943 = vadd.f32 %v2257, %v2688
        %v2944 = vadd.f32 %v2258, %v2690
        %v2945 = vadd.f32 %v2259, %v2692
        %v2946 = vadd.f32 %v2260, %v2696
        %v2947 = vadd.f32 %v2261, %v2698
        %v2948 = vadd.f32 %v2262, %v2700
        %v2949 = vadd.f32 %v2263, %v2702
        %v2950 = vadd.f32 %v2264, %v2706
        %v2951 = vadd.f32 %v2265, %v2708
        %v2952 = vadd.f32 %v2266, %v2710
        %v2953 = vadd.f32 %v2267, %v2712
        %v2954 = vadd.f32 %v2268, %v2716
        %v2955 = vadd.f32 %v2269, %v2718
        %v2956 = vadd.f32 %v2270, %v2720
        %v2957 = vadd.f32 %v2271, %v2722
        %v2958 = vadd.f32 %v2272, %v2726
        %v2959 = vadd.f32 %v2273, %v2728
        %v2960 = vadd.f32 %v2274, %v2730
        %v2961 = vadd.f32 %v2275, %v2732
        %v2962 = vadd.f32 %v2276, %v2736
        %v2963 = vadd.f32 %v2277, %v2738
        %v2964 = vadd.f32 %v2278, %v2740
        %v2965 = vadd.f32 %v2279, %v2742
        %v2966 = vadd.f32 %v2280, %v2746
        %v2967 = vadd.f32 %v2281, %v2748
        %v2968 = vadd.f32 %v2282, %v2750
        %v2969 = vadd.f32 %v2283, %v2752
        %v2970 = vadd.f32 %v2284, %v2756
        %v2971 = vadd.f32 %v2285, %v2758
        %v2972 = vadd.f32 %v2286, %v2760
        %v2973 = vadd.f32 %v2287, %v2762
        %v2974 = vadd.f32 %v2288, %v2766
        %v2975 = vadd.f32 %v2289, %v2768
        %v2976 = vadd.f32 %v2290, %v2770
        %v2977 = vadd.f32 %v2291, %v2772
        %v2978 = vadd.f32 %v2292, %v2776
        %v2979 = vadd.f32 %v2293, %v2778
        %v2980 = vadd.f32 %v2294, %v2780
        %v2981 = vadd.f32 %v2295, %v2782
        %v2982 = vadd.f32 %v2296, %v2786
        %v2983 = vadd.f32 %v2297, %v2788
        %v2984 = vadd.f32 %v2298, %v2790
        %v2985 = vadd.f32 %v2299, %v2792
        %v2986 = vadd.f32 %v2300, %v2796
        %v2987 = vadd.f32 %v2301, %v2798
        %v2988 = vadd.f32 %v2302, %v2800
        %v2989 = vadd.f32 %v2303, %v2802
        %v2990 = vadd.f32 %v2304, %v2806
        %v2991 = vadd.f32 %v2305, %v2808
        %v2992 = vadd.f32 %v2306, %v2810
        %v2993 = vadd.f32 %v2307, %v2812
        %v2994 = vadd.f32 %v2308, %v2816
        %v2995 = vadd.f32 %v2309, %v2818
        %v2996 = vadd.f32 %v2310, %v2820
        %v2997 = vadd.f32 %v2311, %v2822
        %v2998 = vadd.f32 %v2312, %v2826
        %v2999 = vadd.f32 %v2313, %v2828
        %v3000 = vadd.f32 %v2314, %v2830
        %v3001 = vadd.f32 %v2315, %v2832
        %v3002 = vadd.f32 %v2316, %v2836
        %v3003 = vadd.f32 %v2317, %v2838
        %v3004 = vadd.f32 %v2318, %v2840
        %v3005 = vadd.f32 %v2319, %v2842
        %v3006 = vadd.f32 %v2320, %v2846
        %v3007 = vadd.f32 %v2321, %v2848
        %v3008 = vadd.f32 %v2322, %v2850
        %v3009 = vadd.f32 %v2323, %v2852
        %v3010 = vadd.f32 %v2324, %v2856
        %v3011 = vadd.f32 %v2325, %v2858
        %v3012 = vadd.f32 %v2326, %v2860
        %v3013 = vadd.f32 %v2327, %v2862
        %v3014 = vadd.f32 %v2328, %v2866
        %v3015 = vadd.f32 %v2329, %v2868
        %v3016 = vadd.f32 %v2330, %v2870
        %v3017 = vadd.f32 %v2331, %v2872
        %v3018 = vadd.f32 %v2332, %v2876
        %v3019 = vadd.f32 %v2333, %v2878
        %v3020 = vadd.f32 %v2334, %v2880
        %v3021 = vadd.f32 %v2335, %v2882
        %v3022 = vadd.f32 %v2336, %v2886
        %v3023 = vadd.f32 %v2337, %v2888
        %v3024 = vadd.f32 %v2338, %v2890
        %v3025 = vadd.f32 %v2339, %v2892
        %v3026 = vadd.f32 %v2340, %v2896
        %v3027 = vadd.f32 %v2341, %v2898
        %v3028 = vld [vmem:[%s8] sm:$0x3]
        %v3030 = vlaneseq
        %v3031 = vshrl.u32 %v3030, 7
        %v3032 = vsub.s32 0, %v3031
        %v3033 = vrot.slane %v3028, %v3032
        %v3034 = vlaneseq
        %v3035 = vshrl.u32 %v3034, 7
        %v3036 = vsub.s32 1, %v3035
        %v3037 = vrot.slane %v3028, %v3036
        %v3040 = vadd.f32 %v2902, %v3033
        %v3041 = vadd.f32 %v2903, %v3037
        %v3042 = vadd.f32 %v2904, %v3033
        %v3043 = vadd.f32 %v2905, %v3037
        %v3044 = vadd.f32 %v2906, %v3033
        %v3045 = vadd.f32 %v2907, %v3037
        %v3046 = vadd.f32 %v2908, %v3033
        %v3047 = vadd.f32 %v2909, %v3037
        %v3048 = vadd.f32 %v2910, %v3033
        %v3049 = vadd.f32 %v2911, %v3037
        %v3050 = vadd.f32 %v2912, %v3033
        %v3051 = vadd.f32 %v2913, %v3037
        %v3052 = vadd.f32 %v2914, %v3033
        %v3053 = vadd.f32 %v2915, %v3037
        %v3054 = vadd.f32 %v2916, %v3033
        %v3055 = vadd.f32 %v2917, %v3037
        %v3056 = vadd.f32 %v2918, %v3033
        %v3057 = vadd.f32 %v2919, %v3037
        %v3058 = vadd.f32 %v2920, %v3033
        %v3059 = vadd.f32 %v2921, %v3037
        %v3060 = vadd.f32 %v2922, %v3033
        %v3061 = vadd.f32 %v2923, %v3037
        %v3062 = vadd.f32 %v2924, %v3033
        %v3063 = vadd.f32 %v2925, %v3037
        %v3064 = vadd.f32 %v2926, %v3033
        %v3065 = vadd.f32 %v2927, %v3037
        %v3066 = vadd.f32 %v2928, %v3033
        %v3067 = vadd.f32 %v2929, %v3037
        %v3068 = vadd.f32 %v2930, %v3033
        %v3069 = vadd.f32 %v2931, %v3037
        %v3070 = vadd.f32 %v2932, %v3033
        %v3071 = vadd.f32 %v2933, %v3037
        %v3072 = vadd.f32 %v2934, %v3033
        %v3073 = vadd.f32 %v2935, %v3037
        %v3074 = vadd.f32 %v2936, %v3033
        %v3075 = vadd.f32 %v2937, %v3037
        %v3076 = vadd.f32 %v2938, %v3033
        %v3077 = vadd.f32 %v2939, %v3037
        %v3078 = vadd.f32 %v2940, %v3033
        %v3079 = vadd.f32 %v2941, %v3037
        %v3080 = vadd.f32 %v2942, %v3033
        %v3081 = vadd.f32 %v2943, %v3037
        %v3082 = vadd.f32 %v2944, %v3033
        %v3083 = vadd.f32 %v2945, %v3037
        %v3084 = vadd.f32 %v2946, %v3033
        %v3085 = vadd.f32 %v2947, %v3037
        %v3086 = vadd.f32 %v2948, %v3033
        %v3087 = vadd.f32 %v2949, %v3037
        %v3088 = vadd.f32 %v2950, %v3033
        %v3089 = vadd.f32 %v2951, %v3037
        %v3090 = vadd.f32 %v2952, %v3033
        %v3091 = vadd.f32 %v2953, %v3037
        %v3092 = vadd.f32 %v2954, %v3033
        %v3093 = vadd.f32 %v2955, %v3037
        %v3094 = vadd.f32 %v2956, %v3033
        %v3095 = vadd.f32 %v2957, %v3037
        %v3096 = vadd.f32 %v2958, %v3033
        %v3097 = vadd.f32 %v2959, %v3037
        %v3098 = vadd.f32 %v2960, %v3033
        %v3099 = vadd.f32 %v2961, %v3037
        %v3100 = vadd.f32 %v2962, %v3033
        %v3101 = vadd.f32 %v2963, %v3037
        %v3102 = vadd.f32 %v2964, %v3033
        %v3103 = vadd.f32 %v2965, %v3037
        %v3104 = vadd.f32 %v2966, %v3033
        %v3105 = vadd.f32 %v2967, %v3037
        %v3106 = vadd.f32 %v2968, %v3033
        %v3107 = vadd.f32 %v2969, %v3037
        %v3108 = vadd.f32 %v2970, %v3033
        %v3109 = vadd.f32 %v2971, %v3037
        %v3110 = vadd.f32 %v2972, %v3033
        %v3111 = vadd.f32 %v2973, %v3037
        %v3112 = vadd.f32 %v2974, %v3033
        %v3113 = vadd.f32 %v2975, %v3037
        %v3114 = vadd.f32 %v2976, %v3033
        %v3115 = vadd.f32 %v2977, %v3037
        %v3116 = vadd.f32 %v2978, %v3033
        %v3117 = vadd.f32 %v2979, %v3037
        %v3118 = vadd.f32 %v2980, %v3033
        %v3119 = vadd.f32 %v2981, %v3037
        %v3120 = vadd.f32 %v2982, %v3033
        %v3121 = vadd.f32 %v2983, %v3037
        %v3122 = vadd.f32 %v2984, %v3033
        %v3123 = vadd.f32 %v2985, %v3037
        %v3124 = vadd.f32 %v2986, %v3033
        %v3125 = vadd.f32 %v2987, %v3037
        %v3126 = vadd.f32 %v2988, %v3033
        %v3127 = vadd.f32 %v2989, %v3037
        %v3128 = vadd.f32 %v2990, %v3033
        %v3129 = vadd.f32 %v2991, %v3037
        %v3130 = vadd.f32 %v2992, %v3033
        %v3131 = vadd.f32 %v2993, %v3037
        %v3132 = vadd.f32 %v2994, %v3033
        %v3133 = vadd.f32 %v2995, %v3037
        %v3134 = vadd.f32 %v2996, %v3033
        %v3135 = vadd.f32 %v2997, %v3037
        %v3136 = vadd.f32 %v2998, %v3033
        %v3137 = vadd.f32 %v2999, %v3037
        %v3138 = vadd.f32 %v3000, %v3033
        %v3139 = vadd.f32 %v3001, %v3037
        %v3140 = vadd.f32 %v3002, %v3033
        %v3141 = vadd.f32 %v3003, %v3037
        %v3142 = vadd.f32 %v3004, %v3033
        %v3143 = vadd.f32 %v3005, %v3037
        %v3144 = vadd.f32 %v3006, %v3033
        %v3145 = vadd.f32 %v3007, %v3037
        %v3146 = vadd.f32 %v3008, %v3033
        %v3147 = vadd.f32 %v3009, %v3037
        %v3148 = vadd.f32 %v3010, %v3033
        %v3149 = vadd.f32 %v3011, %v3037
        %v3150 = vadd.f32 %v3012, %v3033
        %v3151 = vadd.f32 %v3013, %v3037
        %v3152 = vadd.f32 %v3014, %v3033
        %v3153 = vadd.f32 %v3015, %v3037
        %v3154 = vadd.f32 %v3016, %v3033
        %v3155 = vadd.f32 %v3017, %v3037
        %v3156 = vadd.f32 %v3018, %v3033
        %v3157 = vadd.f32 %v3019, %v3037
        %v3158 = vadd.f32 %v3020, %v3033
        %v3159 = vadd.f32 %v3021, %v3037
        %v3160 = vadd.f32 %v3022, %v3033
        %v3161 = vadd.f32 %v3023, %v3037
        %v3162 = vadd.f32 %v3024, %v3033
        %v3163 = vadd.f32 %v3025, %v3037
        %v3164 = vadd.f32 %v3026, %v3033
        %v3165 = vadd.f32 %v3027, %v3037
        %v3166 = vmax.f32 %v3040, 0.0
        %v3167 = vmax.f32 %v3041, 0.0
        %v3168 = vmax.f32 %v3042, 0.0
        %v3169 = vmax.f32 %v3043, 0.0
        %v3170 = vmax.f32 %v3044, 0.0
        %v3171 = vmax.f32 %v3045, 0.0
        %v3172 = vmax.f32 %v3046, 0.0
        %v3173 = vmax.f32 %v3047, 0.0
        %v3174 = vmax.f32 %v3048, 0.0
        %v3175 = vmax.f32 %v3049, 0.0
        %v3176 = vmax.f32 %v3050, 0.0
        %v3177 = vmax.f32 %v3051, 0.0
        %v3178 = vmax.f32 %v3052, 0.0
        %v3179 = vmax.f32 %v3053, 0.0
        %v3180 = vmax.f32 %v3054, 0.0
        %v3181 = vmax.f32 %v3055, 0.0
        %v3182 = vmax.f32 %v3056, 0.0
        %v3183 = vmax.f32 %v3057, 0.0
        %v3184 = vmax.f32 %v3058, 0.0
        %v3185 = vmax.f32 %v3059, 0.0
        %v3186 = vmax.f32 %v3060, 0.0
        %v3187 = vmax.f32 %v3061, 0.0
        %v3188 = vmax.f32 %v3062, 0.0
        %v3189 = vmax.f32 %v3063, 0.0
        %v3190 = vmax.f32 %v3064, 0.0
        %v3191 = vmax.f32 %v3065, 0.0
        %v3192 = vmax.f32 %v3066, 0.0
        %v3193 = vmax.f32 %v3067, 0.0
        %v3194 = vmax.f32 %v3068, 0.0
        %v3195 = vmax.f32 %v3069, 0.0
        %v3196 = vmax.f32 %v3070, 0.0
        %v3197 = vmax.f32 %v3071, 0.0
        %v3198 = vmax.f32 %v3072, 0.0
        %v3199 = vmax.f32 %v3073, 0.0
        %v3200 = vmax.f32 %v3074, 0.0
        %v3201 = vmax.f32 %v3075, 0.0
        %v3202 = vmax.f32 %v3076, 0.0
        %v3203 = vmax.f32 %v3077, 0.0
        %v3204 = vmax.f32 %v3078, 0.0
        %v3205 = vmax.f32 %v3079, 0.0
        %v3206 = vmax.f32 %v3080, 0.0
        %v3207 = vmax.f32 %v3081, 0.0
        %v3208 = vmax.f32 %v3082, 0.0
        %v3209 = vmax.f32 %v3083, 0.0
        %v3210 = vmax.f32 %v3084, 0.0
        %v3211 = vmax.f32 %v3085, 0.0
        %v3212 = vmax.f32 %v3086, 0.0
        %v3213 = vmax.f32 %v3087, 0.0
        %v3214 = vmax.f32 %v3088, 0.0
        %v3215 = vmax.f32 %v3089, 0.0
        %v3216 = vmax.f32 %v3090, 0.0
        %v3217 = vmax.f32 %v3091, 0.0
        %v3218 = vmax.f32 %v3092, 0.0
        %v3219 = vmax.f32 %v3093, 0.0
        %v3220 = vmax.f32 %v3094, 0.0
        %v3221 = vmax.f32 %v3095, 0.0
        %v3222 = vmax.f32 %v3096, 0.0
        %v3223 = vmax.f32 %v3097, 0.0
        %v3224 = vmax.f32 %v3098, 0.0
        %v3225 = vmax.f32 %v3099, 0.0
        %v3226 = vmax.f32 %v3100, 0.0
        %v3227 = vmax.f32 %v3101, 0.0
        %v3228 = vmax.f32 %v3102, 0.0
        %v3229 = vmax.f32 %v3103, 0.0
        %v3230 = vmax.f32 %v3104, 0.0
        %v3231 = vmax.f32 %v3105, 0.0
        %v3232 = vmax.f32 %v3106, 0.0
        %v3233 = vmax.f32 %v3107, 0.0
        %v3234 = vmax.f32 %v3108, 0.0
        %v3235 = vmax.f32 %v3109, 0.0
        %v3236 = vmax.f32 %v3110, 0.0
        %v3237 = vmax.f32 %v3111, 0.0
        %v3238 = vmax.f32 %v3112, 0.0
        %v3239 = vmax.f32 %v3113, 0.0
        %v3240 = vmax.f32 %v3114, 0.0
        %v3241 = vmax.f32 %v3115, 0.0
        %v3242 = vmax.f32 %v3116, 0.0
        %v3243 = vmax.f32 %v3117, 0.0
        %v3244 = vmax.f32 %v3118, 0.0
        %v3245 = vmax.f32 %v3119, 0.0
        %v3246 = vmax.f32 %v3120, 0.0
        %v3247 = vmax.f32 %v3121, 0.0
        %v3248 = vmax.f32 %v3122, 0.0
        %v3249 = vmax.f32 %v3123, 0.0
        %v3250 = vmax.f32 %v3124, 0.0
        %v3251 = vmax.f32 %v3125, 0.0
        %v3252 = vmax.f32 %v3126, 0.0
        %v3253 = vmax.f32 %v3127, 0.0
        %v3254 = vmax.f32 %v3128, 0.0
        %v3255 = vmax.f32 %v3129, 0.0
        %v3256 = vmax.f32 %v3130, 0.0
        %v3257 = vmax.f32 %v3131, 0.0
        %v3258 = vmax.f32 %v3132, 0.0
        %v3259 = vmax.f32 %v3133, 0.0
        %v3260 = vmax.f32 %v3134, 0.0
        %v3261 = vmax.f32 %v3135, 0.0
        %v3262 = vmax.f32 %v3136, 0.0
        %v3263 = vmax.f32 %v3137, 0.0
        %v3264 = vmax.f32 %v3138, 0.0
        %v3265 = vmax.f32 %v3139, 0.0
        %v3266 = vmax.f32 %v3140, 0.0
        %v3267 = vmax.f32 %v3141, 0.0
        %v3268 = vmax.f32 %v3142, 0.0
        %v3269 = vmax.f32 %v3143, 0.0
        %v3270 = vmax.f32 %v3144, 0.0
        %v3271 = vmax.f32 %v3145, 0.0
        %v3272 = vmax.f32 %v3146, 0.0
        %v3273 = vmax.f32 %v3147, 0.0
        %v3274 = vmax.f32 %v3148, 0.0
        %v3275 = vmax.f32 %v3149, 0.0
        %v3276 = vmax.f32 %v3150, 0.0
        %v3277 = vmax.f32 %v3151, 0.0
        %v3278 = vmax.f32 %v3152, 0.0
        %v3279 = vmax.f32 %v3153, 0.0
        %v3280 = vmax.f32 %v3154, 0.0
        %v3281 = vmax.f32 %v3155, 0.0
        %v3282 = vmax.f32 %v3156, 0.0
        %v3283 = vmax.f32 %v3157, 0.0
        %v3284 = vmax.f32 %v3158, 0.0
        %v3285 = vmax.f32 %v3159, 0.0
        %v3286 = vmax.f32 %v3160, 0.0
        %v3287 = vmax.f32 %v3161, 0.0
        %v3288 = vmax.f32 %v3162, 0.0
        %v3289 = vmax.f32 %v3163, 0.0
        %v3290 = vmax.f32 %v3164, 0.0
        %v3291 = vmax.f32 %v3165, 0.0
        %v3292 = vpack.c.bf16 %v3168, %v3166
        %v3293 = vpack.c.bf16 %v3169, %v3167
        %v3294 = vpack.c.bf16 %v3172, %v3170
        %v3295 = vpack.c.bf16 %v3173, %v3171
        %v3296 = vpack.c.bf16 %v3176, %v3174
        %v3297 = vpack.c.bf16 %v3177, %v3175
        %v3298 = vpack.c.bf16 %v3180, %v3178
        %v3299 = vpack.c.bf16 %v3181, %v3179
        %v3300 = vpack.c.bf16 %v3184, %v3182
        %v3301 = vpack.c.bf16 %v3185, %v3183
        %v3302 = vpack.c.bf16 %v3188, %v3186
        %v3303 = vpack.c.bf16 %v3189, %v3187
        %v3304 = vpack.c.bf16 %v3192, %v3190
        %v3305 = vpack.c.bf16 %v3193, %v3191
        %v3306 = vpack.c.bf16 %v3196, %v3194
        %v3307 = vpack.c.bf16 %v3197, %v3195
        %v3308 = vpack.c.bf16 %v3200, %v3198
        %v3309 = vpack.c.bf16 %v3201, %v3199
        %v3310 = vpack.c.bf16 %v3204, %v3202
        %v3311 = vpack.c.bf16 %v3205, %v3203
        %v3312 = vpack.c.bf16 %v3208, %v3206
        %v3313 = vpack.c.bf16 %v3209, %v3207
        %v3314 = vpack.c.bf16 %v3212, %v3210
        %v3315 = vpack.c.bf16 %v3213, %v3211
        %v3316 = vpack.c.bf16 %v3216, %v3214
        %v3317 = vpack.c.bf16 %v3217, %v3215
        %v3318 = vpack.c.bf16 %v3220, %v3218
        %v3319 = vpack.c.bf16 %v3221, %v3219
        %v3320 = vpack.c.bf16 %v3224, %v3222
        %v3321 = vpack.c.bf16 %v3225, %v3223
        %v3322 = vpack.c.bf16 %v3228, %v3226
        %v3323 = vpack.c.bf16 %v3229, %v3227
        %v3324 = vpack.c.bf16 %v3232, %v3230
        %v3325 = vpack.c.bf16 %v3233, %v3231
        %v3326 = vpack.c.bf16 %v3236, %v3234
        %v3327 = vpack.c.bf16 %v3237, %v3235
        %v3328 = vpack.c.bf16 %v3240, %v3238
        %v3329 = vpack.c.bf16 %v3241, %v3239
        %v3330 = vpack.c.bf16 %v3244, %v3242
        %v3331 = vpack.c.bf16 %v3245, %v3243
        %v3332 = vpack.c.bf16 %v3248, %v3246
        %v3333 = vpack.c.bf16 %v3249, %v3247
        %v3334 = vpack.c.bf16 %v3252, %v3250
        %v3335 = vpack.c.bf16 %v3253, %v3251
        %v3336 = vpack.c.bf16 %v3256, %v3254
        %v3337 = vpack.c.bf16 %v3257, %v3255
        %v3338 = vpack.c.bf16 %v3260, %v3258
        %v3339 = vpack.c.bf16 %v3261, %v3259
        %v3340 = vpack.c.bf16 %v3264, %v3262
        %v3341 = vpack.c.bf16 %v3265, %v3263
        %v3342 = vpack.c.bf16 %v3268, %v3266
        %v3343 = vpack.c.bf16 %v3269, %v3267
        %v3344 = vpack.c.bf16 %v3272, %v3270
        %v3345 = vpack.c.bf16 %v3273, %v3271
        %v3346 = vpack.c.bf16 %v3276, %v3274
        %v3347 = vpack.c.bf16 %v3277, %v3275
        %v3348 = vpack.c.bf16 %v3280, %v3278
        %v3349 = vpack.c.bf16 %v3281, %v3279
        %v3350 = vpack.c.bf16 %v3284, %v3282
        %v3351 = vpack.c.bf16 %v3285, %v3283
        %v3352 = vpack.c.bf16 %v3288, %v3286
        %v3353 = vpack.c.bf16 %v3289, %v3287
        %v3354 = vpack.c.bf16 %v3290, %v3290
        %v3355 = vpack.c.bf16 %v3291, %v3291
        %v3356 = vld [vmem:[%s9] sm:$0xff]
        %v3357 = vld [vmem:[%s9 + $0x8] sm:$0xff]
        %v3358 = vld [vmem:[%s9 + $0x10] sm:$0xff]
        %v3359 = vld [vmem:[%s9 + $0x18] sm:$0xff]
        %v3360 = vld [vmem:[%s9 + $0x20] sm:$0xff]
        %v3361 = vld [vmem:[%s9 + $0x28] sm:$0xff]
        %v3362 = vld [vmem:[%s9 + $0x30] sm:$0xff]
        %v3363 = vld [vmem:[%s9 + $0x38] sm:$0xff]
        %v3364 = vld [vmem:[%s9 + $0x40] sm:$0xff]
        %v3365 = vld [vmem:[%s9 + $0x48] sm:$0xff]
        %v3366 = vld [vmem:[%s9 + $0x50] sm:$0xff]
        %v3367 = vld [vmem:[%s9 + $0x58] sm:$0xff]
        %v3368 = vld [vmem:[%s9 + $0x60] sm:$0xff]
        %v3369 = vld [vmem:[%s9 + $0x68] sm:$0xff]
        %v3370 = vld [vmem:[%s9 + $0x70] sm:$0xff]
        %v3371 = vld [vmem:[%s9 + $0x78] sm:$0xff]
        %v3372 = vld [vmem:[%s9 + $0x80] sm:$0xff]
        %v3373 = vld [vmem:[%s9 + $0x88] sm:$0xff]
        %v3374 = vld [vmem:[%s9 + $0x90] sm:$0xff]
        %v3375 = vld [vmem:[%s9 + $0x98] sm:$0xff]
        %v3376 = vld [vmem:[%s9 + $0xa0] sm:$0xff]
        %v3377 = vld [vmem:[%s9 + $0xa8] sm:$0xff]
        %v3378 = vld [vmem:[%s9 + $0xb0] sm:$0xff]
        %v3379 = vld [vmem:[%s9 + $0xb8] sm:$0xff]
        %v3380 = vld [vmem:[%s9 + $0xc0] sm:$0xff]
        %v3381 = vld [vmem:[%s9 + $0xc8] sm:$0xff]
        %v3382 = vld [vmem:[%s9 + $0xd0] sm:$0xff]
        %v3383 = vld [vmem:[%s9 + $0xd8] sm:$0xff]
        %v3384 = vld [vmem:[%s9 + $0xe0] sm:$0xff]
        %v3385 = vld [vmem:[%s9 + $0xe8] sm:$0xff]
        %v3386 = vld [vmem:[%s9 + $0xf0] sm:$0xff]
        %v3387 = vld [vmem:[%s9 + $0xf8] sm:$0xff]
        %v3388 = vld [vmem:[%s10] sm:$0x3]
        %v3390 = vlaneseq
        %v3391 = vshrl.u32 %v3390, 7
        %v3392 = vsub.s32 0, %v3391
        %v3393 = vrot.slane %v3388, %v3392
        %v3394 = vlaneseq
        %v3395 = vshrl.u32 %v3394, 7
        %v3396 = vsub.s32 1, %v3395
        %v3397 = vrot.slane %v3388, %v3396
        %v3432 = vunpack.c.l.b16 %v3356
        %v3433 = vunpack.c.h.b16 %v3356
        %v3434 = vunpack.c.l.b16 %v3357
        %v3435 = vunpack.c.h.b16 %v3357
        %v3436 = vunpack.c.l.b16 %v3358
        %v3437 = vunpack.c.h.b16 %v3358
        %v3438 = vunpack.c.l.b16 %v3359
        %v3439 = vunpack.c.h.b16 %v3359
        %v3440 = vunpack.c.l.b16 %v3360
        %v3441 = vunpack.c.h.b16 %v3360
        %v3442 = vunpack.c.l.b16 %v3361
        %v3443 = vunpack.c.h.b16 %v3361
        %v3444 = vunpack.c.l.b16 %v3362
        %v3445 = vunpack.c.h.b16 %v3362
        %v3446 = vunpack.c.l.b16 %v3363
        %v3447 = vunpack.c.h.b16 %v3363
        %v3448 = vunpack.c.l.b16 %v3364
        %v3449 = vunpack.c.h.b16 %v3364
        %v3450 = vunpack.c.l.b16 %v3365
        %v3451 = vunpack.c.h.b16 %v3365
        %v3452 = vunpack.c.l.b16 %v3366
        %v3453 = vunpack.c.h.b16 %v3366
        %v3454 = vunpack.c.l.b16 %v3367
        %v3455 = vunpack.c.h.b16 %v3367
        %v3456 = vunpack.c.l.b16 %v3368
        %v3457 = vunpack.c.h.b16 %v3368
        %v3458 = vunpack.c.l.b16 %v3369
        %v3459 = vunpack.c.h.b16 %v3369
        %v3460 = vunpack.c.l.b16 %v3370
        %v3461 = vunpack.c.h.b16 %v3370
        %v3462 = vunpack.c.l.b16 %v3371
        %v3463 = vunpack.c.h.b16 %v3371
        %v3464 = vunpack.c.l.b16 %v3372
        %v3465 = vunpack.c.h.b16 %v3372
        %v3466 = vunpack.c.l.b16 %v3373
        %v3467 = vunpack.c.h.b16 %v3373
        %v3468 = vunpack.c.l.b16 %v3374
        %v3469 = vunpack.c.h.b16 %v3374
        %v3470 = vunpack.c.l.b16 %v3375
        %v3471 = vunpack.c.h.b16 %v3375
        %v3472 = vunpack.c.l.b16 %v3376
        %v3473 = vunpack.c.h.b16 %v3376
        %v3474 = vunpack.c.l.b16 %v3377
        %v3475 = vunpack.c.h.b16 %v3377
        %v3476 = vunpack.c.l.b16 %v3378
        %v3477 = vunpack.c.h.b16 %v3378
        %v3478 = vunpack.c.l.b16 %v3379
        %v3479 = vunpack.c.h.b16 %v3379
        %v3480 = vunpack.c.l.b16 %v3380
        %v3481 = vunpack.c.h.b16 %v3380
        %v3482 = vunpack.c.l.b16 %v3381
        %v3483 = vunpack.c.h.b16 %v3381
        %v3484 = vunpack.c.l.b16 %v3382
        %v3485 = vunpack.c.h.b16 %v3382
        %v3486 = vunpack.c.l.b16 %v3383
        %v3487 = vunpack.c.h.b16 %v3383
        %v3488 = vunpack.c.l.b16 %v3384
        %v3489 = vunpack.c.h.b16 %v3384
        %v3490 = vunpack.c.l.b16 %v3385
        %v3491 = vunpack.c.h.b16 %v3385
        %v3492 = vunpack.c.l.b16 %v3386
        %v3493 = vunpack.c.h.b16 %v3386
        %v3494 = vunpack.c.l.b16 %v3387
        %v3495 = vunpack.c.h.b16 %v3387
        %v3496 = vpack.c.b16 %v3434, %v3432
        %v3497 = vpack.c.b16 %v3435, %v3433
        %v3498 = vpack.c.b16 %v3438, %v3436
        %v3499 = vpack.c.b16 %v3439, %v3437
        %v3500 = vpack.c.b16 %v3442, %v3440
        %v3501 = vpack.c.b16 %v3443, %v3441
        %v3502 = vpack.c.b16 %v3446, %v3444
        %v3503 = vpack.c.b16 %v3447, %v3445
        %v3504 = vpack.c.b16 %v3450, %v3448
        %v3505 = vpack.c.b16 %v3451, %v3449
        %v3506 = vpack.c.b16 %v3454, %v3452
        %v3507 = vpack.c.b16 %v3455, %v3453
        %v3508 = vpack.c.b16 %v3458, %v3456
        %v3509 = vpack.c.b16 %v3459, %v3457
        %v3510 = vpack.c.b16 %v3462, %v3460
        %v3511 = vpack.c.b16 %v3463, %v3461
        %v3512 = vpack.c.b16 %v3466, %v3464
        %v3513 = vpack.c.b16 %v3467, %v3465
        %v3514 = vpack.c.b16 %v3470, %v3468
        %v3515 = vpack.c.b16 %v3471, %v3469
        %v3516 = vpack.c.b16 %v3474, %v3472
        %v3517 = vpack.c.b16 %v3475, %v3473
        %v3518 = vpack.c.b16 %v3478, %v3476
        %v3519 = vpack.c.b16 %v3479, %v3477
        %v3520 = vpack.c.b16 %v3482, %v3480
        %v3521 = vpack.c.b16 %v3483, %v3481
        %v3522 = vpack.c.b16 %v3486, %v3484
        %v3523 = vpack.c.b16 %v3487, %v3485
        %v3524 = vpack.c.b16 %v3490, %v3488
        %v3525 = vpack.c.b16 %v3491, %v3489
        %v3526 = vpack.c.b16 %v3494, %v3492
        %v3527 = vpack.c.b16 %v3495, %v3493
        %3560 = vmatprep.subr.bf16.mxu0 %v3497
        %3561 = vmatpush1.bf16.msra.mxu0 %v3496
        %3562 = vmatprep.subr.bf16.mxu0 %v3499
        %3563 = vmatpush1.bf16.msra.mxu0 %v3498
        %3564 = vmatprep.subr.bf16.mxu0 %v3501
        %3565 = vmatpush1.bf16.msra.mxu0 %v3500
        %3566 = vmatprep.subr.bf16.mxu0 %v3503
        %3567 = vmatpush1.bf16.msra.mxu0 %v3502
        %3568 = vmatprep.subr.bf16.mxu0 %v3505
        %3569 = vmatpush1.bf16.msra.mxu0 %v3504
        %3570 = vmatprep.subr.bf16.mxu0 %v3507
        %3571 = vmatpush1.bf16.msra.mxu0 %v3506
        %3572 = vmatprep.subr.bf16.mxu0 %v3509
        %3573 = vmatpush1.bf16.msra.mxu0 %v3508
        %3574 = vmatprep.subr.bf16.mxu0 %v3511
        %3575 = vmatpush1.bf16.msra.mxu0 %v3510
        %3576 = vmatprep.subr.bf16.mxu0 %v3513
        %3577 = vmatpush1.bf16.msra.mxu0 %v3512
        %3578 = vmatprep.subr.bf16.mxu0 %v3515
        %3579 = vmatpush1.bf16.msra.mxu0 %v3514
        %3580 = vmatprep.subr.bf16.mxu0 %v3517
        %3581 = vmatpush1.bf16.msra.mxu0 %v3516
        %3582 = vmatprep.subr.bf16.mxu0 %v3519
        %3583 = vmatpush1.bf16.msra.mxu0 %v3518
        %3584 = vmatprep.subr.bf16.mxu0 %v3521
        %3585 = vmatpush1.bf16.msra.mxu0 %v3520
        %3586 = vmatprep.subr.bf16.mxu0 %v3523
        %3587 = vmatpush1.bf16.msra.mxu0 %v3522
        %3588 = vmatprep.subr.bf16.mxu0 %v3525
        %3589 = vmatpush1.bf16.msra.mxu0 %v3524
        %3590 = vmatprep.subr.bf16.mxu0 %v3527
        %3591 = vmatpush1.bf16.msra.mxu0 %v3526
        %3592 = vmatprep.mubr.bf16.mxu0 %v3293
        %3593 = vmatmul.mubr.bf16.gmra.mrb[0].mxu0 %v3292
        %v3594 = vpop.f32.mrb[0].mxu0
        %v3595 = vadd.f32 %v3393, %v3594
        %v3596 = vpop.f32.mrb[0].mxu0
        %v3597 = vadd.f32 %v3397, %v3596
        %v3598 = vpop.f32.mrb[0].mxu0
        %v3599 = vadd.f32 %v3393, %v3598
        %v3600 = vpop.f32.mrb[0].mxu0
        %v3601 = vadd.f32 %v3397, %v3600
        %3602 = vmatprep.mubr.bf16.mxu0 %v3295
        %3603 = vmatmul.mubr.bf16.gmra.mrb[0].mxu0 %v3294
        %v3604 = vpop.f32.mrb[0].mxu0
        %v3605 = vadd.f32 %v3393, %v3604
        %v3606 = vpop.f32.mrb[0].mxu0
        %v3607 = vadd.f32 %v3397, %v3606
        %v3608 = vpop.f32.mrb[0].mxu0
        %v3609 = vadd.f32 %v3393, %v3608
        %v3610 = vpop.f32.mrb[0].mxu0
        %v3611 = vadd.f32 %v3397, %v3610
        %3612 = vmatprep.mubr.bf16.mxu0 %v3297
        %3613 = vmatmul.mubr.bf16.gmra.mrb[0].mxu0 %v3296
        %v3614 = vpop.f32.mrb[0].mxu0
        %v3615 = vadd.f32 %v3393, %v3614
        %v3616 = vpop.f32.mrb[0].mxu0
        %v3617 = vadd.f32 %v3397, %v3616
        %v3618 = vpop.f32.mrb[0].mxu0
        %v3619 = vadd.f32 %v3393, %v3618
        %v3620 = vpop.f32.mrb[0].mxu0
        %v3621 = vadd.f32 %v3397, %v3620
        %3622 = vmatprep.mubr.bf16.mxu0 %v3299
        %3623 = vmatmul.mubr.bf16.gmra.mrb[0].mxu0 %v3298
        %v3624 = vpop.f32.mrb[0].mxu0
        %v3625 = vadd.f32 %v3393, %v3624
        %v3626 = vpop.f32.mrb[0].mxu0
        %v3627 = vadd.f32 %v3397, %v3626
        %v3628 = vpop.f32.mrb[0].mxu0
        %v3629 = vadd.f32 %v3393, %v3628
        %v3630 = vpop.f32.mrb[0].mxu0
        %v3631 = vadd.f32 %v3397, %v3630
        %3632 = vmatprep.mubr.bf16.mxu0 %v3301
        %3633 = vmatmul.mubr.bf16.gmra.mrb[0].mxu0 %v3300
        %v3634 = vpop.f32.mrb[0].mxu0
        %v3635 = vadd.f32 %v3393, %v3634
        %v3636 = vpop.f32.mrb[0].mxu0
        %v3637 = vadd.f32 %v3397, %v3636
        %v3638 = vpop.f32.mrb[0].mxu0
        %v3639 = vadd.f32 %v3393, %v3638
        %v3640 = vpop.f32.mrb[0].mxu0
        %v3641 = vadd.f32 %v3397, %v3640
        %3642 = vmatprep.mubr.bf16.mxu0 %v3303
        %3643 = vmatmul.mubr.bf16.gmra.mrb[0].mxu0 %v3302
        %v3644 = vpop.f32.mrb[0].mxu0
        %v3645 = vadd.f32 %v3393, %v3644
        %v3646 = vpop.f32.mrb[0].mxu0
        %v3647 = vadd.f32 %v3397, %v3646
        %v3648 = vpop.f32.mrb[0].mxu0
        %v3649 = vadd.f32 %v3393, %v3648
        %v3650 = vpop.f32.mrb[0].mxu0
        %v3651 = vadd.f32 %v3397, %v3650
        %3652 = vmatprep.mubr.bf16.mxu0 %v3305
        %3653 = vmatmul.mubr.bf16.gmra.mrb[0].mxu0 %v3304
        %v3654 = vpop.f32.mrb[0].mxu0
        %v3655 = vadd.f32 %v3393, %v3654
        %v3656 = vpop.f32.mrb[0].mxu0
        %v3657 = vadd.f32 %v3397, %v3656
        %v3658 = vpop.f32.mrb[0].mxu0
        %v3659 = vadd.f32 %v3393, %v3658
        %v3660 = vpop.f32.mrb[0].mxu0
        %v3661 = vadd.f32 %v3397, %v3660
        %3662 = vmatprep.mubr.bf16.mxu0 %v3307
        %3663 = vmatmul.mubr.bf16.gmra.mrb[0].mxu0 %v3306
        %v3664 = vpop.f32.mrb[0].mxu0
        %v3665 = vadd.f32 %v3393, %v3664
        %v3666 = vpop.f32.mrb[0].mxu0
        %v3667 = vadd.f32 %v3397, %v3666
        %v3668 = vpop.f32.mrb[0].mxu0
        %v3669 = vadd.f32 %v3393, %v3668
        %v3670 = vpop.f32.mrb[0].mxu0
        %v3671 = vadd.f32 %v3397, %v3670
        %3672 = vmatprep.mubr.bf16.mxu0 %v3309
        %3673 = vmatmul.mubr.bf16.gmra.mrb[0].mxu0 %v3308
        %v3674 = vpop.f32.mrb[0].mxu0
        %v3675 = vadd.f32 %v3393, %v3674
        %v3676 = vpop.f32.mrb[0].mxu0
        %v3677 = vadd.f32 %v3397, %v3676
        %v3678 = vpop.f32.mrb[0].mxu0
        %v3679 = vadd.f32 %v3393, %v3678
        %v3680 = vpop.f32.mrb[0].mxu0
        %v3681 = vadd.f32 %v3397, %v3680
        %3682 = vmatprep.mubr.bf16.mxu0 %v3311
        %3683 = vmatmul.mubr.bf16.gmra.mrb[0].mxu0 %v3310
        %v3684 = vpop.f32.mrb[0].mxu0
        %v3685 = vadd.f32 %v3393, %v3684
        %v3686 = vpop.f32.mrb[0].mxu0
        %v3687 = vadd.f32 %v3397, %v3686
        %v3688 = vpop.f32.mrb[0].mxu0
        %v3689 = vadd.f32 %v3393, %v3688
        %v3690 = vpop.f32.mrb[0].mxu0
        %v3691 = vadd.f32 %v3397, %v3690
        %3692 = vmatprep.mubr.bf16.mxu0 %v3313
        %3693 = vmatmul.mubr.bf16.gmra.mrb[0].mxu0 %v3312
        %v3694 = vpop.f32.mrb[0].mxu0
        %v3695 = vadd.f32 %v3393, %v3694
        %v3696 = vpop.f32.mrb[0].mxu0
        %v3697 = vadd.f32 %v3397, %v3696
        %v3698 = vpop.f32.mrb[0].mxu0
        %v3699 = vadd.f32 %v3393, %v3698
        %v3700 = vpop.f32.mrb[0].mxu0
        %v3701 = vadd.f32 %v3397, %v3700
        %3702 = vmatprep.mubr.bf16.mxu0 %v3315
        %3703 = vmatmul.mubr.bf16.gmra.mrb[0].mxu0 %v3314
        %v3704 = vpop.f32.mrb[0].mxu0
        %v3705 = vadd.f32 %v3393, %v3704
        %v3706 = vpop.f32.mrb[0].mxu0
        %v3707 = vadd.f32 %v3397, %v3706
        %v3708 = vpop.f32.mrb[0].mxu0
        %v3709 = vadd.f32 %v3393, %v3708
        %v3710 = vpop.f32.mrb[0].mxu0
        %v3711 = vadd.f32 %v3397, %v3710
        %3712 = vmatprep.mubr.bf16.mxu0 %v3317
        %3713 = vmatmul.mubr.bf16.gmra.mrb[0].mxu0 %v3316
        %v3714 = vpop.f32.mrb[0].mxu0
        %v3715 = vadd.f32 %v3393, %v3714
        %v3716 = vpop.f32.mrb[0].mxu0
        %v3717 = vadd.f32 %v3397, %v3716
        %v3718 = vpop.f32.mrb[0].mxu0
        %v3719 = vadd.f32 %v3393, %v3718
        %v3720 = vpop.f32.mrb[0].mxu0
        %v3721 = vadd.f32 %v3397, %v3720
        %3722 = vmatprep.mubr.bf16.mxu0 %v3319
        %3723 = vmatmul.mubr.bf16.gmra.mrb[0].mxu0 %v3318
        %v3724 = vpop.f32.mrb[0].mxu0
        %v3725 = vadd.f32 %v3393, %v3724
        %v3726 = vpop.f32.mrb[0].mxu0
        %v3727 = vadd.f32 %v3397, %v3726
        %v3728 = vpop.f32.mrb[0].mxu0
        %v3729 = vadd.f32 %v3393, %v3728
        %v3730 = vpop.f32.mrb[0].mxu0
        %v3731 = vadd.f32 %v3397, %v3730
        %3732 = vmatprep.mubr.bf16.mxu0 %v3321
        %3733 = vmatmul.mubr.bf16.gmra.mrb[0].mxu0 %v3320
        %v3734 = vpop.f32.mrb[0].mxu0
        %v3735 = vadd.f32 %v3393, %v3734
        %v3736 = vpop.f32.mrb[0].mxu0
        %v3737 = vadd.f32 %v3397, %v3736
        %v3738 = vpop.f32.mrb[0].mxu0
        %v3739 = vadd.f32 %v3393, %v3738
        %v3740 = vpop.f32.mrb[0].mxu0
        %v3741 = vadd.f32 %v3397, %v3740
        %3742 = vmatprep.mubr.bf16.mxu0 %v3323
        %3743 = vmatmul.mubr.bf16.gmra.mrb[0].mxu0 %v3322
        %v3744 = vpop.f32.mrb[0].mxu0
        %v3745 = vadd.f32 %v3393, %v3744
        %v3746 = vpop.f32.mrb[0].mxu0
        %v3747 = vadd.f32 %v3397, %v3746
        %v3748 = vpop.f32.mrb[0].mxu0
        %v3749 = vadd.f32 %v3393, %v3748
        %v3750 = vpop.f32.mrb[0].mxu0
        %v3751 = vadd.f32 %v3397, %v3750
        %3752 = vmatprep.mubr.bf16.mxu0 %v3325
        %3753 = vmatmul.mubr.bf16.gmra.mrb[0].mxu0 %v3324
        %v3754 = vpop.f32.mrb[0].mxu0
        %v3755 = vadd.f32 %v3393, %v3754
        %v3756 = vpop.f32.mrb[0].mxu0
        %v3757 = vadd.f32 %v3397, %v3756
        %v3758 = vpop.f32.mrb[0].mxu0
        %v3759 = vadd.f32 %v3393, %v3758
        %v3760 = vpop.f32.mrb[0].mxu0
        %v3761 = vadd.f32 %v3397, %v3760
        %3762 = vmatprep.mubr.bf16.mxu0 %v3327
        %3763 = vmatmul.mubr.bf16.gmra.mrb[0].mxu0 %v3326
        %v3764 = vpop.f32.mrb[0].mxu0
        %v3765 = vadd.f32 %v3393, %v3764
        %v3766 = vpop.f32.mrb[0].mxu0
        %v3767 = vadd.f32 %v3397, %v3766
        %v3768 = vpop.f32.mrb[0].mxu0
        %v3769 = vadd.f32 %v3393, %v3768
        %v3770 = vpop.f32.mrb[0].mxu0
        %v3771 = vadd.f32 %v3397, %v3770
        %3772 = vmatprep.mubr.bf16.mxu0 %v3329
        %3773 = vmatmul.mubr.bf16.gmra.mrb[0].mxu0 %v3328
        %v3774 = vpop.f32.mrb[0].mxu0
        %v3775 = vadd.f32 %v3393, %v3774
        %v3776 = vpop.f32.mrb[0].mxu0
        %v3777 = vadd.f32 %v3397, %v3776
        %v3778 = vpop.f32.mrb[0].mxu0
        %v3779 = vadd.f32 %v3393, %v3778
        %v3780 = vpop.f32.mrb[0].mxu0
        %v3781 = vadd.f32 %v3397, %v3780
        %3782 = vmatprep.mubr.bf16.mxu0 %v3331
        %3783 = vmatmul.mubr.bf16.gmra.mrb[0].mxu0 %v3330
        %v3784 = vpop.f32.mrb[0].mxu0
        %v3785 = vadd.f32 %v3393, %v3784
        %v3786 = vpop.f32.mrb[0].mxu0
        %v3787 = vadd.f32 %v3397, %v3786
        %v3788 = vpop.f32.mrb[0].mxu0
        %v3789 = vadd.f32 %v3393, %v3788
        %v3790 = vpop.f32.mrb[0].mxu0
        %v3791 = vadd.f32 %v3397, %v3790
        %3792 = vmatprep.mubr.bf16.mxu0 %v3333
        %3793 = vmatmul.mubr.bf16.gmra.mrb[0].mxu0 %v3332
        %v3794 = vpop.f32.mrb[0].mxu0
        %v3795 = vadd.f32 %v3393, %v3794
        %v3796 = vpop.f32.mrb[0].mxu0
        %v3797 = vadd.f32 %v3397, %v3796
        %v3798 = vpop.f32.mrb[0].mxu0
        %v3799 = vadd.f32 %v3393, %v3798
        %v3800 = vpop.f32.mrb[0].mxu0
        %v3801 = vadd.f32 %v3397, %v3800
        %3802 = vmatprep.mubr.bf16.mxu0 %v3335
        %3803 = vmatmul.mubr.bf16.gmra.mrb[0].mxu0 %v3334
        %v3804 = vpop.f32.mrb[0].mxu0
        %v3805 = vadd.f32 %v3393, %v3804
        %v3806 = vpop.f32.mrb[0].mxu0
        %v3807 = vadd.f32 %v3397, %v3806
        %v3808 = vpop.f32.mrb[0].mxu0
        %v3809 = vadd.f32 %v3393, %v3808
        %v3810 = vpop.f32.mrb[0].mxu0
        %v3811 = vadd.f32 %v3397, %v3810
        %3812 = vmatprep.mubr.bf16.mxu0 %v3337
        %3813 = vmatmul.mubr.bf16.gmra.mrb[0].mxu0 %v3336
        %v3814 = vpop.f32.mrb[0].mxu0
        %v3815 = vadd.f32 %v3393, %v3814
        %v3816 = vpop.f32.mrb[0].mxu0
        %v3817 = vadd.f32 %v3397, %v3816
        %v3818 = vpop.f32.mrb[0].mxu0
        %v3819 = vadd.f32 %v3393, %v3818
        %v3820 = vpop.f32.mrb[0].mxu0
        %v3821 = vadd.f32 %v3397, %v3820
        %3822 = vmatprep.mubr.bf16.mxu0 %v3339
        %3823 = vmatmul.mubr.bf16.gmra.mrb[0].mxu0 %v3338
        %v3824 = vpop.f32.mrb[0].mxu0
        %v3825 = vadd.f32 %v3393, %v3824
        %v3826 = vpop.f32.mrb[0].mxu0
        %v3827 = vadd.f32 %v3397, %v3826
        %v3828 = vpop.f32.mrb[0].mxu0
        %v3829 = vadd.f32 %v3393, %v3828
        %v3830 = vpop.f32.mrb[0].mxu0
        %v3831 = vadd.f32 %v3397, %v3830
        %3832 = vmatprep.mubr.bf16.mxu0 %v3341
        %3833 = vmatmul.mubr.bf16.gmra.mrb[0].mxu0 %v3340
        %v3834 = vpop.f32.mrb[0].mxu0
        %v3835 = vadd.f32 %v3393, %v3834
        %v3836 = vpop.f32.mrb[0].mxu0
        %v3837 = vadd.f32 %v3397, %v3836
        %v3838 = vpop.f32.mrb[0].mxu0
        %v3839 = vadd.f32 %v3393, %v3838
        %v3840 = vpop.f32.mrb[0].mxu0
        %v3841 = vadd.f32 %v3397, %v3840
        %3842 = vmatprep.mubr.bf16.mxu0 %v3343
        %3843 = vmatmul.mubr.bf16.gmra.mrb[0].mxu0 %v3342
        %v3844 = vpop.f32.mrb[0].mxu0
        %v3845 = vadd.f32 %v3393, %v3844
        %v3846 = vpop.f32.mrb[0].mxu0
        %v3847 = vadd.f32 %v3397, %v3846
        %v3848 = vpop.f32.mrb[0].mxu0
        %v3849 = vadd.f32 %v3393, %v3848
        %v3850 = vpop.f32.mrb[0].mxu0
        %v3851 = vadd.f32 %v3397, %v3850
        %3852 = vmatprep.mubr.bf16.mxu0 %v3345
        %3853 = vmatmul.mubr.bf16.gmra.mrb[0].mxu0 %v3344
        %v3854 = vpop.f32.mrb[0].mxu0
        %v3855 = vadd.f32 %v3393, %v3854
        %v3856 = vpop.f32.mrb[0].mxu0
        %v3857 = vadd.f32 %v3397, %v3856
        %v3858 = vpop.f32.mrb[0].mxu0
        %v3859 = vadd.f32 %v3393, %v3858
        %v3860 = vpop.f32.mrb[0].mxu0
        %v3861 = vadd.f32 %v3397, %v3860
        %3862 = vmatprep.mubr.bf16.mxu0 %v3347
        %3863 = vmatmul.mubr.bf16.gmra.mrb[0].mxu0 %v3346
        %v3864 = vpop.f32.mrb[0].mxu0
        %v3865 = vadd.f32 %v3393, %v3864
        %v3866 = vpop.f32.mrb[0].mxu0
        %v3867 = vadd.f32 %v3397, %v3866
        %v3868 = vpop.f32.mrb[0].mxu0
        %v3869 = vadd.f32 %v3393, %v3868
        %v3870 = vpop.f32.mrb[0].mxu0
        %v3871 = vadd.f32 %v3397, %v3870
        %3872 = vmatprep.mubr.bf16.mxu0 %v3349
        %3873 = vmatmul.mubr.bf16.gmra.mrb[0].mxu0 %v3348
        %v3874 = vpop.f32.mrb[0].mxu0
        %v3875 = vadd.f32 %v3393, %v3874
        %v3876 = vpop.f32.mrb[0].mxu0
        %v3877 = vadd.f32 %v3397, %v3876
        %v3878 = vpop.f32.mrb[0].mxu0
        %v3879 = vadd.f32 %v3393, %v3878
        %v3880 = vpop.f32.mrb[0].mxu0
        %v3881 = vadd.f32 %v3397, %v3880
        %3882 = vmatprep.mubr.bf16.mxu0 %v3351
        %3883 = vmatmul.mubr.bf16.gmra.mrb[0].mxu0 %v3350
        %v3884 = vpop.f32.mrb[0].mxu0
        %v3885 = vadd.f32 %v3393, %v3884
        %v3886 = vpop.f32.mrb[0].mxu0
        %v3887 = vadd.f32 %v3397, %v3886
        %v3888 = vpop.f32.mrb[0].mxu0
        %v3889 = vadd.f32 %v3393, %v3888
        %v3890 = vpop.f32.mrb[0].mxu0
        %v3891 = vadd.f32 %v3397, %v3890
        %3892 = vmatprep.mubr.bf16.mxu0 %v3353
        %3893 = vmatmul.mubr.bf16.gmra.mrb[0].mxu0 %v3352
        %v3894 = vpop.f32.mrb[0].mxu0
        %v3895 = vadd.f32 %v3393, %v3894
        %v3896 = vpop.f32.mrb[0].mxu0
        %v3897 = vadd.f32 %v3397, %v3896
        %v3898 = vpop.f32.mrb[0].mxu0
        %v3899 = vadd.f32 %v3393, %v3898
        %v3900 = vpop.f32.mrb[0].mxu0
        %v3901 = vadd.f32 %v3397, %v3900
        %3902 = vmatprep.mubr.bf16.mxu0 %v3355
        %3903 = vmatmul.mubr.bf16.gmra.mrb[0].mxu0 %v3354
        %v3904 = vpop.f32.mrb[0].mxu0
        %v3905 = vadd.f32 %v3393, %v3904
        %v3906 = vpop.f32.mrb[0].mxu0
        %v3907 = vadd.f32 %v3397, %v3906
        %v3908 = vpop.f32.mrb[0].mxu0
        %v3909 = vpop.f32.mrb[0].mxu0
        %3910 = vdwg.mxu0
        %v3911 = vmax.f32 %v3595, 0.0
        %v3912 = vmax.f32 %v3597, 0.0
        %v3913 = vmax.f32 %v3599, 0.0
        %v3914 = vmax.f32 %v3601, 0.0
        %v3915 = vmax.f32 %v3605, 0.0
        %v3916 = vmax.f32 %v3607, 0.0
        %v3917 = vmax.f32 %v3609, 0.0
        %v3918 = vmax.f32 %v3611, 0.0
        %v3919 = vmax.f32 %v3615, 0.0
        %v3920 = vmax.f32 %v3617, 0.0
        %v3921 = vmax.f32 %v3619, 0.0
        %v3922 = vmax.f32 %v3621, 0.0
        %v3923 = vmax.f32 %v3625, 0.0
        %v3924 = vmax.f32 %v3627, 0.0
        %v3925 = vmax.f32 %v3629, 0.0
        %v3926 = vmax.f32 %v3631, 0.0
        %v3927 = vmax.f32 %v3635, 0.0
        %v3928 = vmax.f32 %v3637, 0.0
        %v3929 = vmax.f32 %v3639, 0.0
        %v3930 = vmax.f32 %v3641, 0.0
        %v3931 = vmax.f32 %v3645, 0.0
        %v3932 = vmax.f32 %v3647, 0.0
        %v3933 = vmax.f32 %v3649, 0.0
        %v3934 = vmax.f32 %v3651, 0.0
        %v3935 = vmax.f32 %v3655, 0.0
        %v3936 = vmax.f32 %v3657, 0.0
        %v3937 = vmax.f32 %v3659, 0.0
        %v3938 = vmax.f32 %v3661, 0.0
        %v3939 = vmax.f32 %v3665, 0.0
        %v3940 = vmax.f32 %v3667, 0.0
        %v3941 = vmax.f32 %v3669, 0.0
        %v3942 = vmax.f32 %v3671, 0.0
        %v3943 = vmax.f32 %v3675, 0.0
        %v3944 = vmax.f32 %v3677, 0.0
        %v3945 = vmax.f32 %v3679, 0.0
        %v3946 = vmax.f32 %v3681, 0.0
        %v3947 = vmax.f32 %v3685, 0.0
        %v3948 = vmax.f32 %v3687, 0.0
        %v3949 = vmax.f32 %v3689, 0.0
        %v3950 = vmax.f32 %v3691, 0.0
        %v3951 = vmax.f32 %v3695, 0.0
        %v3952 = vmax.f32 %v3697, 0.0
        %v3953 = vmax.f32 %v3699, 0.0
        %v3954 = vmax.f32 %v3701, 0.0
        %v3955 = vmax.f32 %v3705, 0.0
        %v3956 = vmax.f32 %v3707, 0.0
        %v3957 = vmax.f32 %v3709, 0.0
        %v3958 = vmax.f32 %v3711, 0.0
        %v3959 = vmax.f32 %v3715, 0.0
        %v3960 = vmax.f32 %v3717, 0.0
        %v3961 = vmax.f32 %v3719, 0.0
        %v3962 = vmax.f32 %v3721, 0.0
        %v3963 = vmax.f32 %v3725, 0.0
        %v3964 = vmax.f32 %v3727, 0.0
        %v3965 = vmax.f32 %v3729, 0.0
        %v3966 = vmax.f32 %v3731, 0.0
        %v3967 = vmax.f32 %v3735, 0.0
        %v3968 = vmax.f32 %v3737, 0.0
        %v3969 = vmax.f32 %v3739, 0.0
        %v3970 = vmax.f32 %v3741, 0.0
        %v3971 = vmax.f32 %v3745, 0.0
        %v3972 = vmax.f32 %v3747, 0.0
        %v3973 = vmax.f32 %v3749, 0.0
        %v3974 = vmax.f32 %v3751, 0.0
        %v3975 = vmax.f32 %v3755, 0.0
        %v3976 = vmax.f32 %v3757, 0.0
        %v3977 = vmax.f32 %v3759, 0.0
        %v3978 = vmax.f32 %v3761, 0.0
        %v3979 = vmax.f32 %v3765, 0.0
        %v3980 = vmax.f32 %v3767, 0.0
        %v3981 = vmax.f32 %v3769, 0.0
        %v3982 = vmax.f32 %v3771, 0.0
        %v3983 = vmax.f32 %v3775, 0.0
        %v3984 = vmax.f32 %v3777, 0.0
        %v3985 = vmax.f32 %v3779, 0.0
        %v3986 = vmax.f32 %v3781, 0.0
        %v3987 = vmax.f32 %v3785, 0.0
        %v3988 = vmax.f32 %v3787, 0.0
        %v3989 = vmax.f32 %v3789, 0.0
        %v3990 = vmax.f32 %v3791, 0.0
        %v3991 = vmax.f32 %v3795, 0.0
        %v3992 = vmax.f32 %v3797, 0.0
        %v3993 = vmax.f32 %v3799, 0.0
        %v3994 = vmax.f32 %v3801, 0.0
        %v3995 = vmax.f32 %v3805, 0.0
        %v3996 = vmax.f32 %v3807, 0.0
        %v3997 = vmax.f32 %v3809, 0.0
        %v3998 = vmax.f32 %v3811, 0.0
        %v3999 = vmax.f32 %v3815, 0.0
        %v4000 = vmax.f32 %v3817, 0.0
        %v4001 = vmax.f32 %v3819, 0.0
        %v4002 = vmax.f32 %v3821, 0.0
        %v4003 = vmax.f32 %v3825, 0.0
        %v4004 = vmax.f32 %v3827, 0.0
        %v4005 = vmax.f32 %v3829, 0.0
        %v4006 = vmax.f32 %v3831, 0.0
        %v4007 = vmax.f32 %v3835, 0.0
        %v4008 = vmax.f32 %v3837, 0.0
        %v4009 = vmax.f32 %v3839, 0.0
        %v4010 = vmax.f32 %v3841, 0.0
        %v4011 = vmax.f32 %v3845, 0.0
        %v4012 = vmax.f32 %v3847, 0.0
        %v4013 = vmax.f32 %v3849, 0.0
        %v4014 = vmax.f32 %v3851, 0.0
        %v4015 = vmax.f32 %v3855, 0.0
        %v4016 = vmax.f32 %v3857, 0.0
        %v4017 = vmax.f32 %v3859, 0.0
        %v4018 = vmax.f32 %v3861, 0.0
        %v4019 = vmax.f32 %v3865, 0.0
        %v4020 = vmax.f32 %v3867, 0.0
        %v4021 = vmax.f32 %v3869, 0.0
        %v4022 = vmax.f32 %v3871, 0.0
        %v4023 = vmax.f32 %v3875, 0.0
        %v4024 = vmax.f32 %v3877, 0.0
        %v4025 = vmax.f32 %v3879, 0.0
        %v4026 = vmax.f32 %v3881, 0.0
        %v4027 = vmax.f32 %v3885, 0.0
        %v4028 = vmax.f32 %v3887, 0.0
        %v4029 = vmax.f32 %v3889, 0.0
        %v4030 = vmax.f32 %v3891, 0.0
        %v4031 = vmax.f32 %v3895, 0.0
        %v4032 = vmax.f32 %v3897, 0.0
        %v4033 = vmax.f32 %v3899, 0.0
        %v4034 = vmax.f32 %v3901, 0.0
        %v4035 = vmax.f32 %v3905, 0.0
        %v4036 = vmax.f32 %v3907, 0.0
        %v4037 = vpack.c.bf16 %v3913, %v3911
        %v4038 = vpack.c.bf16 %v3914, %v3912
        %v4039 = vpack.c.bf16 %v3917, %v3915
        %v4040 = vpack.c.bf16 %v3918, %v3916
        %v4041 = vpack.c.bf16 %v3921, %v3919
        %v4042 = vpack.c.bf16 %v3922, %v3920
        %v4043 = vpack.c.bf16 %v3925, %v3923
        %v4044 = vpack.c.bf16 %v3926, %v3924
        %v4045 = vpack.c.bf16 %v3929, %v3927
        %v4046 = vpack.c.bf16 %v3930, %v3928
        %v4047 = vpack.c.bf16 %v3933, %v3931
        %v4048 = vpack.c.bf16 %v3934, %v3932
        %v4049 = vpack.c.bf16 %v3937, %v3935
        %v4050 = vpack.c.bf16 %v3938, %v3936
        %v4051 = vpack.c.bf16 %v3941, %v3939
        %v4052 = vpack.c.bf16 %v3942, %v3940
        %v4053 = vpack.c.bf16 %v3945, %v3943
        %v4054 = vpack.c.bf16 %v3946, %v3944
        %v4055 = vpack.c.bf16 %v3949, %v3947
        %v4056 = vpack.c.bf16 %v3950, %v3948
        %v4057 = vpack.c.bf16 %v3953, %v3951
        %v4058 = vpack.c.bf16 %v3954, %v3952
        %v4059 = vpack.c.bf16 %v3957, %v3955
        %v4060 = vpack.c.bf16 %v3958, %v3956
        %v4061 = vpack.c.bf16 %v3961, %v3959
        %v4062 = vpack.c.bf16 %v3962, %v3960
        %v4063 = vpack.c.bf16 %v3965, %v3963
        %v4064 = vpack.c.bf16 %v3966, %v3964
        %v4065 = vpack.c.bf16 %v3969, %v3967
        %v4066 = vpack.c.bf16 %v3970, %v3968
        %v4067 = vpack.c.bf16 %v3973, %v3971
        %v4068 = vpack.c.bf16 %v3974, %v3972
        %v4069 = vpack.c.bf16 %v3977, %v3975
        %v4070 = vpack.c.bf16 %v3978, %v3976
        %v4071 = vpack.c.bf16 %v3981, %v3979
        %v4072 = vpack.c.bf16 %v3982, %v3980
        %v4073 = vpack.c.bf16 %v3985, %v3983
        %v4074 = vpack.c.bf16 %v3986, %v3984
        %v4075 = vpack.c.bf16 %v3989, %v3987
        %v4076 = vpack.c.bf16 %v3990, %v3988
        %v4077 = vpack.c.bf16 %v3993, %v3991
        %v4078 = vpack.c.bf16 %v3994, %v3992
        %v4079 = vpack.c.bf16 %v3997, %v3995
        %v4080 = vpack.c.bf16 %v3998, %v3996
        %v4081 = vpack.c.bf16 %v4001, %v3999
        %v4082 = vpack.c.bf16 %v4002, %v4000
        %v4083 = vpack.c.bf16 %v4005, %v4003
        %v4084 = vpack.c.bf16 %v4006, %v4004
        %v4085 = vpack.c.bf16 %v4009, %v4007
        %v4086 = vpack.c.bf16 %v4010, %v4008
        %v4087 = vpack.c.bf16 %v4013, %v4011
        %v4088 = vpack.c.bf16 %v4014, %v4012
        %v4089 = vpack.c.bf16 %v4017, %v4015
        %v4090 = vpack.c.bf16 %v4018, %v4016
        %v4091 = vpack.c.bf16 %v4021, %v4019
        %v4092 = vpack.c.bf16 %v4022, %v4020
        %v4093 = vpack.c.bf16 %v4025, %v4023
        %v4094 = vpack.c.bf16 %v4026, %v4024
        %v4095 = vpack.c.bf16 %v4029, %v4027
        %v4096 = vpack.c.bf16 %v4030, %v4028
        %v4097 = vpack.c.bf16 %v4033, %v4031
        %v4098 = vpack.c.bf16 %v4034, %v4032
        %v4099 = vpack.c.bf16 %v4035, %v4035
        %v4100 = vpack.c.bf16 %v4036, %v4036
        %v4101 = vld [vmem:[%s11] sm:$0xf]
        %v4102 = vld [vmem:[%s11 + $0x4] sm:$0xf]
        %v4103 = vld [vmem:[%s11 + $0x8] sm:$0xf]
        %v4104 = vld [vmem:[%s11 + $0xc] sm:$0xf]
        %v4105 = vld [vmem:[%s11 + $0x10] sm:$0xf]
        %v4106 = vld [vmem:[%s11 + $0x14] sm:$0xf]
        %v4107 = vld [vmem:[%s11 + $0x18] sm:$0xf]
        %v4108 = vld [vmem:[%s11 + $0x1c] sm:$0xf]
        %v4109 = vld [vmem:[%s11 + $0x20] sm:$0xf]
        %v4110 = vld [vmem:[%s11 + $0x24] sm:$0xf]
        %v4111 = vld [vmem:[%s11 + $0x28] sm:$0xf]
        %v4112 = vld [vmem:[%s11 + $0x2c] sm:$0xf]
        %v4113 = vld [vmem:[%s11 + $0x30] sm:$0xf]
        %v4114 = vld [vmem:[%s11 + $0x34] sm:$0xf]
        %v4115 = vld [vmem:[%s11 + $0x38] sm:$0xf]
        %v4116 = vld [vmem:[%s11 + $0x3c] sm:$0xf]
        %v4117 = vld [vmem:[%s11 + $0x40] sm:$0xf]
        %v4118 = vld [vmem:[%s11 + $0x44] sm:$0xf]
        %v4119 = vld [vmem:[%s11 + $0x48] sm:$0xf]
        %v4120 = vld [vmem:[%s11 + $0x4c] sm:$0xf]
        %v4121 = vld [vmem:[%s11 + $0x50] sm:$0xf]
        %v4122 = vld [vmem:[%s11 + $0x54] sm:$0xf]
        %v4123 = vld [vmem:[%s11 + $0x58] sm:$0xf]
        %v4124 = vld [vmem:[%s11 + $0x5c] sm:$0xf]
        %v4125 = vld [vmem:[%s11 + $0x60] sm:$0xf]
        %v4126 = vld [vmem:[%s11 + $0x64] sm:$0xf]
        %v4127 = vld [vmem:[%s11 + $0x68] sm:$0xf]
        %v4128 = vld [vmem:[%s11 + $0x6c] sm:$0xf]
        %v4129 = vld [vmem:[%s11 + $0x70] sm:$0xf]
        %v4130 = vld [vmem:[%s11 + $0x74] sm:$0xf]
        %v4131 = vld [vmem:[%s11 + $0x78] sm:$0xf]
        %v4132 = vld [vmem:[%s11 + $0x7c] sm:$0xf]
        %v4133 = vld [vmem:[%s12] sm:$0x1]
        %v4135 = vlaneseq
        %v4136 = vshrl.u32 %v4135, 7
        %v4137 = vsub.s32 0, %v4136
        %v4138 = vrot.slane %v4133, %v4137
        %v4172 = vunpack.c.l.b16 %v4101
        %v4173 = vunpack.c.l.b16 %v4102
        %v4174 = vunpack.c.l.b16 %v4103
        %v4175 = vunpack.c.l.b16 %v4104
        %v4176 = vunpack.c.l.b16 %v4105
        %v4177 = vunpack.c.l.b16 %v4106
        %v4178 = vunpack.c.l.b16 %v4107
        %v4179 = vunpack.c.l.b16 %v4108
        %v4180 = vunpack.c.l.b16 %v4109
        %v4181 = vunpack.c.l.b16 %v4110
        %v4182 = vunpack.c.l.b16 %v4111
        %v4183 = vunpack.c.l.b16 %v4112
        %v4184 = vunpack.c.l.b16 %v4113
        %v4185 = vunpack.c.l.b16 %v4114
        %v4186 = vunpack.c.l.b16 %v4115
        %v4187 = vunpack.c.l.b16 %v4116
        %v4188 = vunpack.c.l.b16 %v4117
        %v4189 = vunpack.c.l.b16 %v4118
        %v4190 = vunpack.c.l.b16 %v4119
        %v4191 = vunpack.c.l.b16 %v4120
        %v4192 = vunpack.c.l.b16 %v4121
        %v4193 = vunpack.c.l.b16 %v4122
        %v4194 = vunpack.c.l.b16 %v4123
        %v4195 = vunpack.c.l.b16 %v4124
        %v4196 = vunpack.c.l.b16 %v4125
        %v4197 = vunpack.c.l.b16 %v4126
        %v4198 = vunpack.c.l.b16 %v4127
        %v4199 = vunpack.c.l.b16 %v4128
        %v4200 = vunpack.c.l.b16 %v4129
        %v4201 = vunpack.c.l.b16 %v4130
        %v4202 = vunpack.c.l.b16 %v4131
        %v4203 = vunpack.c.l.b16 %v4132
        %v4204 = vpack.c.b16 %v4173, %v4172
        %v4205 = vpack.c.b16 %v4175, %v4174
        %v4206 = vpack.c.b16 %v4177, %v4176
        %v4207 = vpack.c.b16 %v4179, %v4178
        %v4208 = vpack.c.b16 %v4181, %v4180
        %v4209 = vpack.c.b16 %v4183, %v4182
        %v4210 = vpack.c.b16 %v4185, %v4184
        %v4211 = vpack.c.b16 %v4187, %v4186
        %v4212 = vpack.c.b16 %v4189, %v4188
        %v4213 = vpack.c.b16 %v4191, %v4190
        %v4214 = vpack.c.b16 %v4193, %v4192
        %v4215 = vpack.c.b16 %v4195, %v4194
        %v4216 = vpack.c.b16 %v4197, %v4196
        %v4217 = vpack.c.b16 %v4199, %v4198
        %v4218 = vpack.c.b16 %v4201, %v4200
        %v4219 = vpack.c.b16 %v4203, %v4202
        %4236 = vmatprep.subr.bf16.mxu0 0
        %4237 = vmatpush1.bf16.msra.mxu0 %v4204
        %4238 = vmatprep.subr.bf16.mxu0 0
        %4239 = vmatpush1.bf16.msra.mxu0 %v4205
        %4240 = vmatprep.subr.bf16.mxu0 0
        %4241 = vmatpush1.bf16.msra.mxu0 %v4206
        %4242 = vmatprep.subr.bf16.mxu0 0
        %4243 = vmatpush1.bf16.msra.mxu0 %v4207
        %4244 = vmatprep.subr.bf16.mxu0 0
        %4245 = vmatpush1.bf16.msra.mxu0 %v4208
        %4246 = vmatprep.subr.bf16.mxu0 0
        %4247 = vmatpush1.bf16.msra.mxu0 %v4209
        %4248 = vmatprep.subr.bf16.mxu0 0
        %4249 = vmatpush1.bf16.msra.mxu0 %v4210
        %4250 = vmatprep.subr.bf16.mxu0 0
        %4251 = vmatpush1.bf16.msra.mxu0 %v4211
        %4252 = vmatprep.subr.bf16.mxu0 0
        %4253 = vmatpush1.bf16.msra.mxu0 %v4212
        %4254 = vmatprep.subr.bf16.mxu0 0
        %4255 = vmatpush1.bf16.msra.mxu0 %v4213
        %4256 = vmatprep.subr.bf16.mxu0 0
        %4257 = vmatpush1.bf16.msra.mxu0 %v4214
        %4258 = vmatprep.subr.bf16.mxu0 0
        %4259 = vmatpush1.bf16.msra.mxu0 %v4215
        %4260 = vmatprep.subr.bf16.mxu0 0
        %4261 = vmatpush1.bf16.msra.mxu0 %v4216
        %4262 = vmatprep.subr.bf16.mxu0 0
        %4263 = vmatpush1.bf16.msra.mxu0 %v4217
        %4264 = vmatprep.subr.bf16.mxu0 0
        %4265 = vmatpush1.bf16.msra.mxu0 %v4218
        %4266 = vmatprep.subr.bf16.mxu0 0
        %4267 = vmatpush1.bf16.msra.mxu0 %v4219
        %4268 = vmatprep.mubr.bf16.mxu0 %v4038
        %4269 = vmatmul.mubr.bf16.gmra.mrb[0].mxu0 %v4037
        %v4270 = vpop.f32.mrb[0].mxu0
        %v4271 = vadd.f32 %v4138, %v4270
        %v4272 = vpop.f32.mrb[0].mxu0
        %v4273 = vpop.f32.mrb[0].mxu0
        %v4274 = vadd.f32 %v4138, %v4273
        %v4275 = vpop.f32.mrb[0].mxu0
        %4276 = vmatprep.mubr.bf16.mxu0 %v4040
        %4277 = vmatmul.mubr.bf16.gmra.mrb[0].mxu0 %v4039
        %v4278 = vpop.f32.mrb[0].mxu0
        %v4279 = vadd.f32 %v4138, %v4278
        %v4280 = vpop.f32.mrb[0].mxu0
        %v4281 = vpop.f32.mrb[0].mxu0
        %v4282 = vadd.f32 %v4138, %v4281
        %v4283 = vpop.f32.mrb[0].mxu0
        %4284 = vmatprep.mubr.bf16.mxu0 %v4042
        %4285 = vmatmul.mubr.bf16.gmra.mrb[0].mxu0 %v4041
        %v4286 = vpop.f32.mrb[0].mxu0
        %v4287 = vadd.f32 %v4138, %v4286
        %v4288 = vpop.f32.mrb[0].mxu0
        %v4289 = vpop.f32.mrb[0].mxu0
        %v4290 = vadd.f32 %v4138, %v4289
        %v4291 = vpop.f32.mrb[0].mxu0
        %4292 = vmatprep.mubr.bf16.mxu0 %v4044
        %4293 = vmatmul.mubr.bf16.gmra.mrb[0].mxu0 %v4043
        %v4294 = vpop.f32.mrb[0].mxu0
        %v4295 = vadd.f32 %v4138, %v4294
        %v4296 = vpop.f32.mrb[0].mxu0
        %v4297 = vpop.f32.mrb[0].mxu0
        %v4298 = vadd.f32 %v4138, %v4297
        %v4299 = vpop.f32.mrb[0].mxu0
        %4300 = vmatprep.mubr.bf16.mxu0 %v4046
        %4301 = vmatmul.mubr.bf16.gmra.mrb[0].mxu0 %v4045
        %v4302 = vpop.f32.mrb[0].mxu0
        %v4303 = vadd.f32 %v4138, %v4302
        %v4304 = vpop.f32.mrb[0].mxu0
        %v4305 = vpop.f32.mrb[0].mxu0
        %v4306 = vadd.f32 %v4138, %v4305
        %v4307 = vpop.f32.mrb[0].mxu0
        %4308 = vmatprep.mubr.bf16.mxu0 %v4048
        %4309 = vmatmul.mubr.bf16.gmra.mrb[0].mxu0 %v4047
        %v4310 = vpop.f32.mrb[0].mxu0
        %v4311 = vadd.f32 %v4138, %v4310
        %v4312 = vpop.f32.mrb[0].mxu0
        %v4313 = vpop.f32.mrb[0].mxu0
        %v4314 = vadd.f32 %v4138, %v4313
        %v4315 = vpop.f32.mrb[0].mxu0
        %4316 = vmatprep.mubr.bf16.mxu0 %v4050
        %4317 = vmatmul.mubr.bf16.gmra.mrb[0].mxu0 %v4049
        %v4318 = vpop.f32.mrb[0].mxu0
        %v4319 = vadd.f32 %v4138, %v4318
        %v4320 = vpop.f32.mrb[0].mxu0
        %v4321 = vpop.f32.mrb[0].mxu0
        %v4322 = vadd.f32 %v4138, %v4321
        %v4323 = vpop.f32.mrb[0].mxu0
        %4324 = vmatprep.mubr.bf16.mxu0 %v4052
        %4325 = vmatmul.mubr.bf16.gmra.mrb[0].mxu0 %v4051
        %v4326 = vpop.f32.mrb[0].mxu0
        %v4327 = vadd.f32 %v4138, %v4326
        %v4328 = vpop.f32.mrb[0].mxu0
        %v4329 = vpop.f32.mrb[0].mxu0
        %v4330 = vadd.f32 %v4138, %v4329
        %v4331 = vpop.f32.mrb[0].mxu0
        %4332 = vmatprep.mubr.bf16.mxu0 %v4054
        %4333 = vmatmul.mubr.bf16.gmra.mrb[0].mxu0 %v4053
        %v4334 = vpop.f32.mrb[0].mxu0
        %v4335 = vadd.f32 %v4138, %v4334
        %v4336 = vpop.f32.mrb[0].mxu0
        %v4337 = vpop.f32.mrb[0].mxu0
        %v4338 = vadd.f32 %v4138, %v4337
        %v4339 = vpop.f32.mrb[0].mxu0
        %4340 = vmatprep.mubr.bf16.mxu0 %v4056
        %4341 = vmatmul.mubr.bf16.gmra.mrb[0].mxu0 %v4055
        %v4342 = vpop.f32.mrb[0].mxu0
        %v4343 = vadd.f32 %v4138, %v4342
        %v4344 = vpop.f32.mrb[0].mxu0
        %v4345 = vpop.f32.mrb[0].mxu0
        %v4346 = vadd.f32 %v4138, %v4345
        %v4347 = vpop.f32.mrb[0].mxu0
        %4348 = vmatprep.mubr.bf16.mxu0 %v4058
        %4349 = vmatmul.mubr.bf16.gmra.mrb[0].mxu0 %v4057
        %v4350 = vpop.f32.mrb[0].mxu0
        %v4351 = vadd.f32 %v4138, %v4350
        %v4352 = vpop.f32.mrb[0].mxu0
        %v4353 = vpop.f32.mrb[0].mxu0
        %v4354 = vadd.f32 %v4138, %v4353
        %v4355 = vpop.f32.mrb[0].mxu0
        %4356 = vmatprep.mubr.bf16.mxu0 %v4060
        %4357 = vmatmul.mubr.bf16.gmra.mrb[0].mxu0 %v4059
        %v4358 = vpop.f32.mrb[0].mxu0
        %v4359 = vadd.f32 %v4138, %v4358
        %v4360 = vpop.f32.mrb[0].mxu0
        %v4361 = vpop.f32.mrb[0].mxu0
        %v4362 = vadd.f32 %v4138, %v4361
        %v4363 = vpop.f32.mrb[0].mxu0
        %4364 = vmatprep.mubr.bf16.mxu0 %v4062
        %4365 = vmatmul.mubr.bf16.gmra.mrb[0].mxu0 %v4061
        %v4366 = vpop.f32.mrb[0].mxu0
        %v4367 = vadd.f32 %v4138, %v4366
        %v4368 = vpop.f32.mrb[0].mxu0
        %v4369 = vpop.f32.mrb[0].mxu0
        %v4370 = vadd.f32 %v4138, %v4369
        %v4371 = vpop.f32.mrb[0].mxu0
        %4372 = vmatprep.mubr.bf16.mxu0 %v4064
        %4373 = vmatmul.mubr.bf16.gmra.mrb[0].mxu0 %v4063
        %v4374 = vpop.f32.mrb[0].mxu0
        %v4375 = vadd.f32 %v4138, %v4374
        %v4376 = vpop.f32.mrb[0].mxu0
        %v4377 = vpop.f32.mrb[0].mxu0
        %v4378 = vadd.f32 %v4138, %v4377
        %v4379 = vpop.f32.mrb[0].mxu0
        %4380 = vmatprep.mubr.bf16.mxu0 %v4066
        %4381 = vmatmul.mubr.bf16.gmra.mrb[0].mxu0 %v4065
        %v4382 = vpop.f32.mrb[0].mxu0
        %v4383 = vadd.f32 %v4138, %v4382
        %v4384 = vpop.f32.mrb[0].mxu0
        %v4385 = vpop.f32.mrb[0].mxu0
        %v4386 = vadd.f32 %v4138, %v4385
        %v4387 = vpop.f32.mrb[0].mxu0
        %4388 = vmatprep.mubr.bf16.mxu0 %v4068
        %4389 = vmatmul.mubr.bf16.gmra.mrb[0].mxu0 %v4067
        %v4390 = vpop.f32.mrb[0].mxu0
        %v4391 = vadd.f32 %v4138, %v4390
        %v4392 = vpop.f32.mrb[0].mxu0
        %v4393 = vpop.f32.mrb[0].mxu0
        %v4394 = vadd.f32 %v4138, %v4393
        %v4395 = vpop.f32.mrb[0].mxu0
        %4396 = vmatprep.mubr.bf16.mxu0 %v4070
        %4397 = vmatmul.mubr.bf16.gmra.mrb[0].mxu0 %v4069
        %v4398 = vpop.f32.mrb[0].mxu0
        %v4399 = vadd.f32 %v4138, %v4398
        %v4400 = vpop.f32.mrb[0].mxu0
        %v4401 = vpop.f32.mrb[0].mxu0
        %v4402 = vadd.f32 %v4138, %v4401
        %v4403 = vpop.f32.mrb[0].mxu0
        %4404 = vmatprep.mubr.bf16.mxu0 %v4072
        %4405 = vmatmul.mubr.bf16.gmra.mrb[0].mxu0 %v4071
        %v4406 = vpop.f32.mrb[0].mxu0
        %v4407 = vadd.f32 %v4138, %v4406
        %v4408 = vpop.f32.mrb[0].mxu0
        %v4409 = vpop.f32.mrb[0].mxu0
        %v4410 = vadd.f32 %v4138, %v4409
        %v4411 = vpop.f32.mrb[0].mxu0
        %4412 = vmatprep.mubr.bf16.mxu0 %v4074
        %4413 = vmatmul.mubr.bf16.gmra.mrb[0].mxu0 %v4073
        %v4414 = vpop.f32.mrb[0].mxu0
        %v4415 = vadd.f32 %v4138, %v4414
        %v4416 = vpop.f32.mrb[0].mxu0
        %v4417 = vpop.f32.mrb[0].mxu0
        %v4418 = vadd.f32 %v4138, %v4417
        %v4419 = vpop.f32.mrb[0].mxu0
        %4420 = vmatprep.mubr.bf16.mxu0 %v4076
        %4421 = vmatmul.mubr.bf16.gmra.mrb[0].mxu0 %v4075
        %v4422 = vpop.f32.mrb[0].mxu0
        %v4423 = vadd.f32 %v4138, %v4422
        %v4424 = vpop.f32.mrb[0].mxu0
        %v4425 = vpop.f32.mrb[0].mxu0
        %v4426 = vadd.f32 %v4138, %v4425
        %v4427 = vpop.f32.mrb[0].mxu0
        %4428 = vmatprep.mubr.bf16.mxu0 %v4078
        %4429 = vmatmul.mubr.bf16.gmra.mrb[0].mxu0 %v4077
        %v4430 = vpop.f32.mrb[0].mxu0
        %v4431 = vadd.f32 %v4138, %v4430
        %v4432 = vpop.f32.mrb[0].mxu0
        %v4433 = vpop.f32.mrb[0].mxu0
        %v4434 = vadd.f32 %v4138, %v4433
        %v4435 = vpop.f32.mrb[0].mxu0
        %4436 = vmatprep.mubr.bf16.mxu0 %v4080
        %4437 = vmatmul.mubr.bf16.gmra.mrb[0].mxu0 %v4079
        %v4438 = vpop.f32.mrb[0].mxu0
        %v4439 = vadd.f32 %v4138, %v4438
        %v4440 = vpop.f32.mrb[0].mxu0
        %v4441 = vpop.f32.mrb[0].mxu0
        %v4442 = vadd.f32 %v4138, %v4441
        %v4443 = vpop.f32.mrb[0].mxu0
        %4444 = vmatprep.mubr.bf16.mxu0 %v4082
        %4445 = vmatmul.mubr.bf16.gmra.mrb[0].mxu0 %v4081
        %v4446 = vpop.f32.mrb[0].mxu0
        %v4447 = vadd.f32 %v4138, %v4446
        %v4448 = vpop.f32.mrb[0].mxu0
        %v4449 = vpop.f32.mrb[0].mxu0
        %v4450 = vadd.f32 %v4138, %v4449
        %v4451 = vpop.f32.mrb[0].mxu0
        %4452 = vmatprep.mubr.bf16.mxu0 %v4084
        %4453 = vmatmul.mubr.bf16.gmra.mrb[0].mxu0 %v4083
        %v4454 = vpop.f32.mrb[0].mxu0
        %v4455 = vadd.f32 %v4138, %v4454
        %v4456 = vpop.f32.mrb[0].mxu0
        %v4457 = vpop.f32.mrb[0].mxu0
        %v4458 = vadd.f32 %v4138, %v4457
        %v4459 = vpop.f32.mrb[0].mxu0
        %4460 = vmatprep.mubr.bf16.mxu0 %v4086
        %4461 = vmatmul.mubr.bf16.gmra.mrb[0].mxu0 %v4085
        %v4462 = vpop.f32.mrb[0].mxu0
        %v4463 = vadd.f32 %v4138, %v4462
        %v4464 = vpop.f32.mrb[0].mxu0
        %v4465 = vpop.f32.mrb[0].mxu0
        %v4466 = vadd.f32 %v4138, %v4465
        %v4467 = vpop.f32.mrb[0].mxu0
        %4468 = vmatprep.mubr.bf16.mxu0 %v4088
        %4469 = vmatmul.mubr.bf16.gmra.mrb[0].mxu0 %v4087
        %v4470 = vpop.f32.mrb[0].mxu0
        %v4471 = vadd.f32 %v4138, %v4470
        %v4472 = vpop.f32.mrb[0].mxu0
        %v4473 = vpop.f32.mrb[0].mxu0
        %v4474 = vadd.f32 %v4138, %v4473
        %v4475 = vpop.f32.mrb[0].mxu0
        %4476 = vmatprep.mubr.bf16.mxu0 %v4090
        %4477 = vmatmul.mubr.bf16.gmra.mrb[0].mxu0 %v4089
        %v4478 = vpop.f32.mrb[0].mxu0
        %v4479 = vadd.f32 %v4138, %v4478
        %v4480 = vpop.f32.mrb[0].mxu0
        %v4481 = vpop.f32.mrb[0].mxu0
        %v4482 = vadd.f32 %v4138, %v4481
        %v4483 = vpop.f32.mrb[0].mxu0
        %4484 = vmatprep.mubr.bf16.mxu0 %v4092
        %4485 = vmatmul.mubr.bf16.gmra.mrb[0].mxu0 %v4091
        %v4486 = vpop.f32.mrb[0].mxu0
        %v4487 = vadd.f32 %v4138, %v4486
        %v4488 = vpop.f32.mrb[0].mxu0
        %v4489 = vpop.f32.mrb[0].mxu0
        %v4490 = vadd.f32 %v4138, %v4489
        %v4491 = vpop.f32.mrb[0].mxu0
        %4492 = vmatprep.mubr.bf16.mxu0 %v4094
        %4493 = vmatmul.mubr.bf16.gmra.mrb[0].mxu0 %v4093
        %v4494 = vpop.f32.mrb[0].mxu0
        %v4495 = vadd.f32 %v4138, %v4494
        %v4496 = vpop.f32.mrb[0].mxu0
        %v4497 = vpop.f32.mrb[0].mxu0
        %v4498 = vadd.f32 %v4138, %v4497
        %v4499 = vpop.f32.mrb[0].mxu0
        %4500 = vmatprep.mubr.bf16.mxu0 %v4096
        %4501 = vmatmul.mubr.bf16.gmra.mrb[0].mxu0 %v4095
        %v4502 = vpop.f32.mrb[0].mxu0
        %v4503 = vadd.f32 %v4138, %v4502
        %v4504 = vpop.f32.mrb[0].mxu0
        %v4505 = vpop.f32.mrb[0].mxu0
        %v4506 = vadd.f32 %v4138, %v4505
        %v4507 = vpop.f32.mrb[0].mxu0
        %4508 = vmatprep.mubr.bf16.mxu0 %v4098
        %4509 = vmatmul.mubr.bf16.gmra.mrb[0].mxu0 %v4097
        %v4510 = vpop.f32.mrb[0].mxu0
        %v4511 = vadd.f32 %v4138, %v4510
        %v4512 = vpop.f32.mrb[0].mxu0
        %v4513 = vpop.f32.mrb[0].mxu0
        %v4514 = vadd.f32 %v4138, %v4513
        %v4515 = vpop.f32.mrb[0].mxu0
        %4516 = vmatprep.mubr.bf16.mxu0 %v4100
        %4517 = vmatmul.mubr.bf16.gmra.mrb[0].mxu0 %v4099
        %v4518 = vpop.f32.mrb[0].mxu0
        %v4519 = vadd.f32 %v4138, %v4518
        %v4520 = vpop.f32.mrb[0].mxu0
        %v4521 = vpop.f32.mrb[0].mxu0
        %v4522 = vpop.f32.mrb[0].mxu0
        %4523 = vdwg.mxu0
        %v4524 = vxor.u32 %v4271, 2147483648
        %v4525 = vxor.u32 %v4274, 2147483648
        %v4526 = vxor.u32 %v4279, 2147483648
        %v4527 = vxor.u32 %v4282, 2147483648
        %v4528 = vxor.u32 %v4287, 2147483648
        %v4529 = vxor.u32 %v4290, 2147483648
        %v4530 = vxor.u32 %v4295, 2147483648
        %v4531 = vxor.u32 %v4298, 2147483648
        %v4532 = vxor.u32 %v4303, 2147483648
        %v4533 = vxor.u32 %v4306, 2147483648
        %v4534 = vxor.u32 %v4311, 2147483648
        %v4535 = vxor.u32 %v4314, 2147483648
        %v4536 = vxor.u32 %v4319, 2147483648
        %v4537 = vxor.u32 %v4322, 2147483648
        %v4538 = vxor.u32 %v4327, 2147483648
        %v4539 = vxor.u32 %v4330, 2147483648
        %v4540 = vxor.u32 %v4335, 2147483648
        %v4541 = vxor.u32 %v4338, 2147483648
        %v4542 = vxor.u32 %v4343, 2147483648
        %v4543 = vxor.u32 %v4346, 2147483648
        %v4544 = vxor.u32 %v4351, 2147483648
        %v4545 = vxor.u32 %v4354, 2147483648
        %v4546 = vxor.u32 %v4359, 2147483648
        %v4547 = vxor.u32 %v4362, 2147483648
        %v4548 = vxor.u32 %v4367, 2147483648
        %v4549 = vxor.u32 %v4370, 2147483648
        %v4550 = vxor.u32 %v4375, 2147483648
        %v4551 = vxor.u32 %v4378, 2147483648
        %v4552 = vxor.u32 %v4383, 2147483648
        %v4553 = vxor.u32 %v4386, 2147483648
        %v4554 = vxor.u32 %v4391, 2147483648
        %v4555 = vxor.u32 %v4394, 2147483648
        %v4556 = vxor.u32 %v4399, 2147483648
        %v4557 = vxor.u32 %v4402, 2147483648
        %v4558 = vxor.u32 %v4407, 2147483648
        %v4559 = vxor.u32 %v4410, 2147483648
        %v4560 = vxor.u32 %v4415, 2147483648
        %v4561 = vxor.u32 %v4418, 2147483648
        %v4562 = vxor.u32 %v4423, 2147483648
        %v4563 = vxor.u32 %v4426, 2147483648
        %v4564 = vxor.u32 %v4431, 2147483648
        %v4565 = vxor.u32 %v4434, 2147483648
        %v4566 = vxor.u32 %v4439, 2147483648
        %v4567 = vxor.u32 %v4442, 2147483648
        %v4568 = vxor.u32 %v4447, 2147483648
        %v4569 = vxor.u32 %v4450, 2147483648
        %v4570 = vxor.u32 %v4455, 2147483648
        %v4571 = vxor.u32 %v4458, 2147483648
        %v4572 = vxor.u32 %v4463, 2147483648
        %v4573 = vxor.u32 %v4466, 2147483648
        %v4574 = vxor.u32 %v4471, 2147483648
        %v4575 = vxor.u32 %v4474, 2147483648
        %v4576 = vxor.u32 %v4479, 2147483648
        %v4577 = vxor.u32 %v4482, 2147483648
        %v4578 = vxor.u32 %v4487, 2147483648
        %v4579 = vxor.u32 %v4490, 2147483648
        %v4580 = vxor.u32 %v4495, 2147483648
        %v4581 = vxor.u32 %v4498, 2147483648
        %v4582 = vxor.u32 %v4503, 2147483648
        %v4583 = vxor.u32 %v4506, 2147483648
        %v4584 = vxor.u32 %v4511, 2147483648
        %v4585 = vxor.u32 %v4514, 2147483648
        %v4586 = vxor.u32 %v4519, 2147483648
        %v4587 = vmul.f32 %v4524, 1.442695
        %v4588 = vpow.pop %v4587
        %v4589 = vmul.f32 %v4525, 1.442695
        %v4590 = vpow.pop %v4589
        %v4591 = vmul.f32 %v4526, 1.442695
        %v4592 = vpow.pop %v4591
        %v4593 = vmul.f32 %v4527, 1.442695
        %v4594 = vpow.pop %v4593
        %v4595 = vmul.f32 %v4528, 1.442695
        %v4596 = vpow.pop %v4595
        %v4597 = vmul.f32 %v4529, 1.442695
        %v4598 = vpow.pop %v4597
        %v4599 = vmul.f32 %v4530, 1.442695
        %v4600 = vpow.pop %v4599
        %v4601 = vmul.f32 %v4531, 1.442695
        %v4602 = vpow.pop %v4601
        %v4603 = vmul.f32 %v4532, 1.442695
        %v4604 = vpow.pop %v4603
        %v4605 = vmul.f32 %v4533, 1.442695
        %v4606 = vpow.pop %v4605
        %v4607 = vmul.f32 %v4534, 1.442695
        %v4608 = vpow.pop %v4607
        %v4609 = vmul.f32 %v4535, 1.442695
        %v4610 = vpow.pop %v4609
        %v4611 = vmul.f32 %v4536, 1.442695
        %v4612 = vpow.pop %v4611
        %v4613 = vmul.f32 %v4537, 1.442695
        %v4614 = vpow.pop %v4613
        %v4615 = vmul.f32 %v4538, 1.442695
        %v4616 = vpow.pop %v4615
        %v4617 = vmul.f32 %v4539, 1.442695
        %v4618 = vpow.pop %v4617
        %v4619 = vmul.f32 %v4540, 1.442695
        %v4620 = vpow.pop %v4619
        %v4621 = vmul.f32 %v4541, 1.442695
        %v4622 = vpow.pop %v4621
        %v4623 = vmul.f32 %v4542, 1.442695
        %v4624 = vpow.pop %v4623
        %v4625 = vmul.f32 %v4543, 1.442695
        %v4626 = vpow.pop %v4625
        %v4627 = vmul.f32 %v4544, 1.442695
        %v4628 = vpow.pop %v4627
        %v4629 = vmul.f32 %v4545, 1.442695
        %v4630 = vpow.pop %v4629
        %v4631 = vmul.f32 %v4546, 1.442695
        %v4632 = vpow.pop %v4631
        %v4633 = vmul.f32 %v4547, 1.442695
        %v4634 = vpow.pop %v4633
        %v4635 = vmul.f32 %v4548, 1.442695
        %v4636 = vpow.pop %v4635
        %v4637 = vmul.f32 %v4549, 1.442695
        %v4638 = vpow.pop %v4637
        %v4639 = vmul.f32 %v4550, 1.442695
        %v4640 = vpow.pop %v4639
        %v4641 = vmul.f32 %v4551, 1.442695
        %v4642 = vpow.pop %v4641
        %v4643 = vmul.f32 %v4552, 1.442695
        %v4644 = vpow.pop %v4643
        %v4645 = vmul.f32 %v4553, 1.442695
        %v4646 = vpow.pop %v4645
        %v4647 = vmul.f32 %v4554, 1.442695
        %v4648 = vpow.pop %v4647
        %v4649 = vmul.f32 %v4555, 1.442695
        %v4650 = vpow.pop %v4649
        %v4651 = vmul.f32 %v4556, 1.442695
        %v4652 = vpow.pop %v4651
        %v4653 = vmul.f32 %v4557, 1.442695
        %v4654 = vpow.pop %v4653
        %v4655 = vmul.f32 %v4558, 1.442695
        %v4656 = vpow.pop %v4655
        %v4657 = vmul.f32 %v4559, 1.442695
        %v4658 = vpow.pop %v4657
        %v4659 = vmul.f32 %v4560, 1.442695
        %v4660 = vpow.pop %v4659
        %v4661 = vmul.f32 %v4561, 1.442695
        %v4662 = vpow.pop %v4661
        %v4663 = vmul.f32 %v4562, 1.442695
        %v4664 = vpow.pop %v4663
        %v4665 = vmul.f32 %v4563, 1.442695
        %v4666 = vpow.pop %v4665
        %v4667 = vmul.f32 %v4564, 1.442695
        %v4668 = vpow.pop %v4667
        %v4669 = vmul.f32 %v4565, 1.442695
        %v4670 = vpow.pop %v4669
        %v4671 = vmul.f32 %v4566, 1.442695
        %v4672 = vpow.pop %v4671
        %v4673 = vmul.f32 %v4567, 1.442695
        %v4674 = vpow.pop %v4673
        %v4675 = vmul.f32 %v4568, 1.442695
        %v4676 = vpow.pop %v4675
        %v4677 = vmul.f32 %v4569, 1.442695
        %v4678 = vpow.pop %v4677
        %v4679 = vmul.f32 %v4570, 1.442695
        %v4680 = vpow.pop %v4679
        %v4681 = vmul.f32 %v4571, 1.442695
        %v4682 = vpow.pop %v4681
        %v4683 = vmul.f32 %v4572, 1.442695
        %v4684 = vpow.pop %v4683
        %v4685 = vmul.f32 %v4573, 1.442695
        %v4686 = vpow.pop %v4685
        %v4687 = vmul.f32 %v4574, 1.442695
        %v4688 = vpow.pop %v4687
        %v4689 = vmul.f32 %v4575, 1.442695
        %v4690 = vpow.pop %v4689
        %v4691 = vmul.f32 %v4576, 1.442695
        %v4692 = vpow.pop %v4691
        %v4693 = vmul.f32 %v4577, 1.442695
        %v4694 = vpow.pop %v4693
        %v4695 = vmul.f32 %v4578, 1.442695
        %v4696 = vpow.pop %v4695
        %v4697 = vmul.f32 %v4579, 1.442695
        %v4698 = vpow.pop %v4697
        %v4699 = vmul.f32 %v4580, 1.442695
        %v4700 = vpow.pop %v4699
        %v4701 = vmul.f32 %v4581, 1.442695
        %v4702 = vpow.pop %v4701
        %v4703 = vmul.f32 %v4582, 1.442695
        %v4704 = vpow.pop %v4703
        %v4705 = vmul.f32 %v4583, 1.442695
        %v4706 = vpow.pop %v4705
        %v4707 = vmul.f32 %v4584, 1.442695
        %v4708 = vpow.pop %v4707
        %v4709 = vmul.f32 %v4585, 1.442695
        %v4710 = vpow.pop %v4709
        %v4711 = vmul.f32 %v4586, 1.442695
        %v4712 = vpow.pop %v4711
        %v4713 = vadd.f32 %v4588, 1.0
        %v4714 = vadd.f32 %v4590, 1.0
        %v4715 = vadd.f32 %v4592, 1.0
        %v4716 = vadd.f32 %v4594, 1.0
        %v4717 = vadd.f32 %v4596, 1.0
        %v4718 = vadd.f32 %v4598, 1.0
        %v4719 = vadd.f32 %v4600, 1.0
        %v4720 = vadd.f32 %v4602, 1.0
        %v4721 = vadd.f32 %v4604, 1.0
        %v4722 = vadd.f32 %v4606, 1.0
        %v4723 = vadd.f32 %v4608, 1.0
        %v4724 = vadd.f32 %v4610, 1.0
        %v4725 = vadd.f32 %v4612, 1.0
        %v4726 = vadd.f32 %v4614, 1.0
        %v4727 = vadd.f32 %v4616, 1.0
        %v4728 = vadd.f32 %v4618, 1.0
        %v4729 = vadd.f32 %v4620, 1.0
        %v4730 = vadd.f32 %v4622, 1.0
        %v4731 = vadd.f32 %v4624, 1.0
        %v4732 = vadd.f32 %v4626, 1.0
        %v4733 = vadd.f32 %v4628, 1.0
        %v4734 = vadd.f32 %v4630, 1.0
        %v4735 = vadd.f32 %v4632, 1.0
        %v4736 = vadd.f32 %v4634, 1.0
        %v4737 = vadd.f32 %v4636, 1.0
        %v4738 = vadd.f32 %v4638, 1.0
        %v4739 = vadd.f32 %v4640, 1.0
        %v4740 = vadd.f32 %v4642, 1.0
        %v4741 = vadd.f32 %v4644, 1.0
        %v4742 = vadd.f32 %v4646, 1.0
        %v4743 = vadd.f32 %v4648, 1.0
        %v4744 = vadd.f32 %v4650, 1.0
        %v4745 = vadd.f32 %v4652, 1.0
        %v4746 = vadd.f32 %v4654, 1.0
        %v4747 = vadd.f32 %v4656, 1.0
        %v4748 = vadd.f32 %v4658, 1.0
        %v4749 = vadd.f32 %v4660, 1.0
        %v4750 = vadd.f32 %v4662, 1.0
        %v4751 = vadd.f32 %v4664, 1.0
        %v4752 = vadd.f32 %v4666, 1.0
        %v4753 = vadd.f32 %v4668, 1.0
        %v4754 = vadd.f32 %v4670, 1.0
        %v4755 = vadd.f32 %v4672, 1.0
        %v4756 = vadd.f32 %v4674, 1.0
        %v4757 = vadd.f32 %v4676, 1.0
        %v4758 = vadd.f32 %v4678, 1.0
        %v4759 = vadd.f32 %v4680, 1.0
        %v4760 = vadd.f32 %v4682, 1.0
        %v4761 = vadd.f32 %v4684, 1.0
        %v4762 = vadd.f32 %v4686, 1.0
        %v4763 = vadd.f32 %v4688, 1.0
        %v4764 = vadd.f32 %v4690, 1.0
        %v4765 = vadd.f32 %v4692, 1.0
        %v4766 = vadd.f32 %v4694, 1.0
        %v4767 = vadd.f32 %v4696, 1.0
        %v4768 = vadd.f32 %v4698, 1.0
        %v4769 = vadd.f32 %v4700, 1.0
        %v4770 = vadd.f32 %v4702, 1.0
        %v4771 = vadd.f32 %v4704, 1.0
        %v4772 = vadd.f32 %v4706, 1.0
        %v4773 = vadd.f32 %v4708, 1.0
        %v4774 = vadd.f32 %v4710, 1.0
        %v4775 = vadd.f32 %v4712, 1.0
        %v4776 = vrcp.pop %v4713
        %v4777 = vmul.f32 1.0, %v4776
        %v4778 = vrcp.pop %v4714
        %v4779 = vmul.f32 1.0, %v4778
        %v4780 = vrcp.pop %v4715
        %v4781 = vmul.f32 1.0, %v4780
        %v4782 = vrcp.pop %v4716
        %v4783 = vmul.f32 1.0, %v4782
        %v4784 = vrcp.pop %v4717
        %v4785 = vmul.f32 1.0, %v4784
        %v4786 = vrcp.pop %v4718
        %v4787 = vmul.f32 1.0, %v4786
        %v4788 = vrcp.pop %v4719
        %v4789 = vmul.f32 1.0, %v4788
        %v4790 = vrcp.pop %v4720
        %v4791 = vmul.f32 1.0, %v4790
        %v4792 = vrcp.pop %v4721
        %v4793 = vmul.f32 1.0, %v4792
        %v4794 = vrcp.pop %v4722
        %v4795 = vmul.f32 1.0, %v4794
        %v4796 = vrcp.pop %v4723
        %v4797 = vmul.f32 1.0, %v4796
        %v4798 = vrcp.pop %v4724
        %v4799 = vmul.f32 1.0, %v4798
        %v4800 = vrcp.pop %v4725
        %v4801 = vmul.f32 1.0, %v4800
        %v4802 = vrcp.pop %v4726
        %v4803 = vmul.f32 1.0, %v4802
        %v4804 = vrcp.pop %v4727
        %v4805 = vmul.f32 1.0, %v4804
        %v4806 = vrcp.pop %v4728
        %v4807 = vmul.f32 1.0, %v4806
        %v4808 = vrcp.pop %v4729
        %v4809 = vmul.f32 1.0, %v4808
        %v4810 = vrcp.pop %v4730
        %v4811 = vmul.f32 1.0, %v4810
        %v4812 = vrcp.pop %v4731
        %v4813 = vmul.f32 1.0, %v4812
        %v4814 = vrcp.pop %v4732
        %v4815 = vmul.f32 1.0, %v4814
        %v4816 = vrcp.pop %v4733
        %v4817 = vmul.f32 1.0, %v4816
        %v4818 = vrcp.pop %v4734
        %v4819 = vmul.f32 1.0, %v4818
        %v4820 = vrcp.pop %v4735
        %v4821 = vmul.f32 1.0, %v4820
        %v4822 = vrcp.pop %v4736
        %v4823 = vmul.f32 1.0, %v4822
        %v4824 = vrcp.pop %v4737
        %v4825 = vmul.f32 1.0, %v4824
        %v4826 = vrcp.pop %v4738
        %v4827 = vmul.f32 1.0, %v4826
        %v4828 = vrcp.pop %v4739
        %v4829 = vmul.f32 1.0, %v4828
        %v4830 = vrcp.pop %v4740
        %v4831 = vmul.f32 1.0, %v4830
        %v4832 = vrcp.pop %v4741
        %v4833 = vmul.f32 1.0, %v4832
        %v4834 = vrcp.pop %v4742
        %v4835 = vmul.f32 1.0, %v4834
        %v4836 = vrcp.pop %v4743
        %v4837 = vmul.f32 1.0, %v4836
        %v4838 = vrcp.pop %v4744
        %v4839 = vmul.f32 1.0, %v4838
        %v4840 = vrcp.pop %v4745
        %v4841 = vmul.f32 1.0, %v4840
        %v4842 = vrcp.pop %v4746
        %v4843 = vmul.f32 1.0, %v4842
        %v4844 = vrcp.pop %v4747
        %v4845 = vmul.f32 1.0, %v4844
        %v4846 = vrcp.pop %v4748
        %v4847 = vmul.f32 1.0, %v4846
        %v4848 = vrcp.pop %v4749
        %v4849 = vmul.f32 1.0, %v4848
        %v4850 = vrcp.pop %v4750
        %v4851 = vmul.f32 1.0, %v4850
        %v4852 = vrcp.pop %v4751
        %v4853 = vmul.f32 1.0, %v4852
        %v4854 = vrcp.pop %v4752
        %v4855 = vmul.f32 1.0, %v4854
        %v4856 = vrcp.pop %v4753
        %v4857 = vmul.f32 1.0, %v4856
        %v4858 = vrcp.pop %v4754
        %v4859 = vmul.f32 1.0, %v4858
        %v4860 = vrcp.pop %v4755
        %v4861 = vmul.f32 1.0, %v4860
        %v4862 = vrcp.pop %v4756
        %v4863 = vmul.f32 1.0, %v4862
        %v4864 = vrcp.pop %v4757
        %v4865 = vmul.f32 1.0, %v4864
        %v4866 = vrcp.pop %v4758
        %v4867 = vmul.f32 1.0, %v4866
        %v4868 = vrcp.pop %v4759
        %v4869 = vmul.f32 1.0, %v4868
        %v4870 = vrcp.pop %v4760
        %v4871 = vmul.f32 1.0, %v4870
        %v4872 = vrcp.pop %v4761
        %v4873 = vmul.f32 1.0, %v4872
        %v4874 = vrcp.pop %v4762
        %v4875 = vmul.f32 1.0, %v4874
        %v4876 = vrcp.pop %v4763
        %v4877 = vmul.f32 1.0, %v4876
        %v4878 = vrcp.pop %v4764
        %v4879 = vmul.f32 1.0, %v4878
        %v4880 = vrcp.pop %v4765
        %v4881 = vmul.f32 1.0, %v4880
        %v4882 = vrcp.pop %v4766
        %v4883 = vmul.f32 1.0, %v4882
        %v4884 = vrcp.pop %v4767
        %v4885 = vmul.f32 1.0, %v4884
        %v4886 = vrcp.pop %v4768
        %v4887 = vmul.f32 1.0, %v4886
        %v4888 = vrcp.pop %v4769
        %v4889 = vmul.f32 1.0, %v4888
        %v4890 = vrcp.pop %v4770
        %v4891 = vmul.f32 1.0, %v4890
        %v4892 = vrcp.pop %v4771
        %v4893 = vmul.f32 1.0, %v4892
        %v4894 = vrcp.pop %v4772
        %v4895 = vmul.f32 1.0, %v4894
        %v4896 = vrcp.pop %v4773
        %v4897 = vmul.f32 1.0, %v4896
        %v4898 = vrcp.pop %v4774
        %v4899 = vmul.f32 1.0, %v4898
        %v4900 = vrcp.pop %v4775
        %v4901 = vmul.f32 1.0, %v4900
        %4902 = vst [vmem:[%s482] sm:$0xff] %v4777
        %4903 = vst [vmem:[%s482 + $0x8] sm:$0xff] %v4779
        %4904 = vst [vmem:[%s482 + $0x10] sm:$0xff] %v4781
        %4905 = vst [vmem:[%s482 + $0x18] sm:$0xff] %v4783
        %4906 = vst [vmem:[%s482 + $0x20] sm:$0xff] %v4785
        %4907 = vst [vmem:[%s482 + $0x28] sm:$0xff] %v4787
        %4908 = vst [vmem:[%s482 + $0x30] sm:$0xff] %v4789
        %4909 = vst [vmem:[%s482 + $0x38] sm:$0xff] %v4791
        %4910 = vst [vmem:[%s482 + $0x40] sm:$0xff] %v4793
        %4911 = vst [vmem:[%s482 + $0x48] sm:$0xff] %v4795
        %4912 = vst [vmem:[%s482 + $0x50] sm:$0xff] %v4797
        %4913 = vst [vmem:[%s482 + $0x58] sm:$0xff] %v4799
        %4914 = vst [vmem:[%s482 + $0x60] sm:$0xff] %v4801
        %4915 = vst [vmem:[%s482 + $0x68] sm:$0xff] %v4803
        %4916 = vst [vmem:[%s482 + $0x70] sm:$0xff] %v4805
        %4917 = vst [vmem:[%s482 + $0x78] sm:$0xff] %v4807
        %4918 = vst [vmem:[%s482 + $0x80] sm:$0xff] %v4809
        %4919 = vst [vmem:[%s482 + $0x88] sm:$0xff] %v4811
        %4920 = vst [vmem:[%s482 + $0x90] sm:$0xff] %v4813
        %4921 = vst [vmem:[%s482 + $0x98] sm:$0xff] %v4815
        %4922 = vst [vmem:[%s482 + $0xa0] sm:$0xff] %v4817
        %4923 = vst [vmem:[%s482 + $0xa8] sm:$0xff] %v4819
        %4924 = vst [vmem:[%s482 + $0xb0] sm:$0xff] %v4821
        %4925 = vst [vmem:[%s482 + $0xb8] sm:$0xff] %v4823
        %4926 = vst [vmem:[%s482 + $0xc0] sm:$0xff] %v4825
        %4927 = vst [vmem:[%s482 + $0xc8] sm:$0xff] %v4827
        %4928 = vst [vmem:[%s482 + $0xd0] sm:$0xff] %v4829
        %4929 = vst [vmem:[%s482 + $0xd8] sm:$0xff] %v4831
        %4930 = vst [vmem:[%s482 + $0xe0] sm:$0xff] %v4833
        %4931 = vst [vmem:[%s482 + $0xe8] sm:$0xff] %v4835
        %4932 = vst [vmem:[%s482 + $0xf0] sm:$0xff] %v4837
        %4933 = vst [vmem:[%s482 + $0xf8] sm:$0xff] %v4839
        %4934 = vst [vmem:[%s482 + $0x100] sm:$0xff] %v4841
        %4935 = vst [vmem:[%s482 + $0x108] sm:$0xff] %v4843
        %4936 = vst [vmem:[%s482 + $0x110] sm:$0xff] %v4845
        %4937 = vst [vmem:[%s482 + $0x118] sm:$0xff] %v4847
        %4938 = vst [vmem:[%s482 + $0x120] sm:$0xff] %v4849
        %4939 = vst [vmem:[%s482 + $0x128] sm:$0xff] %v4851
        %4940 = vst [vmem:[%s482 + $0x130] sm:$0xff] %v4853
        %4941 = vst [vmem:[%s482 + $0x138] sm:$0xff] %v4855
        %4942 = vst [vmem:[%s482 + $0x140] sm:$0xff] %v4857
        %4943 = vst [vmem:[%s482 + $0x148] sm:$0xff] %v4859
        %4944 = vst [vmem:[%s482 + $0x150] sm:$0xff] %v4861
        %4945 = vst [vmem:[%s482 + $0x158] sm:$0xff] %v4863
        %4946 = vst [vmem:[%s482 + $0x160] sm:$0xff] %v4865
        %4947 = vst [vmem:[%s482 + $0x168] sm:$0xff] %v4867
        %4948 = vst [vmem:[%s482 + $0x170] sm:$0xff] %v4869
        %4949 = vst [vmem:[%s482 + $0x178] sm:$0xff] %v4871
        %4950 = vst [vmem:[%s482 + $0x180] sm:$0xff] %v4873
        %4951 = vst [vmem:[%s482 + $0x188] sm:$0xff] %v4875
        %4952 = vst [vmem:[%s482 + $0x190] sm:$0xff] %v4877
        %4953 = vst [vmem:[%s482 + $0x198] sm:$0xff] %v4879
        %4954 = vst [vmem:[%s482 + $0x1a0] sm:$0xff] %v4881
        %4955 = vst [vmem:[%s482 + $0x1a8] sm:$0xff] %v4883
        %4956 = vst [vmem:[%s482 + $0x1b0] sm:$0xff] %v4885
        %4957 = vst [vmem:[%s482 + $0x1b8] sm:$0xff] %v4887
        %4958 = vst [vmem:[%s482 + $0x1c0] sm:$0xff] %v4889
        %4959 = vst [vmem:[%s482 + $0x1c8] sm:$0xff] %v4891
        %4960 = vst [vmem:[%s482 + $0x1d0] sm:$0xff] %v4893
        %4961 = vst [vmem:[%s482 + $0x1d8] sm:$0xff] %v4895
        %4962 = vst [vmem:[%s482 + $0x1e0] sm:$0xff] %v4897
        %4963 = vst [vmem:[%s482 + $0x1e8] sm:$0xff] %v4899
        %4964 = vst [vmem:[%s482 + $0x1f0] sm:$0xff] %v4901
        %s4965 = sand.u32 %s328, 1
        %s4966 = scalar_lea.sflag [#allocation3], %s4965
        %s4967 = sand.u32 %s328, 1
        %s4968 = smul.addr %s4967, 504
        %s4969 = scalar_lea.vmem [#allocation2], %s4968
        // Predicated region
        $region73: #{tpu_custom_call.1} parent=71 // pred_check
          %p4970 = pneg %p338
        $region74: #{tpu_custom_call.1} parent=71 // pred_check_branch
          %4972 = sbr.rel (%p4970) target = $region76
        $region75: #{tpu_custom_call.1} parent=71 // pred_region
          %s4973 = smul.u32 63, %s27
          %s4975 = ssub.s32 8064, 8064
          %4976 = vsyncadd %s4966, %s4975
          %s4977 = smul.addr %s4973, 128
          %s4978 = scalar_lea.hbm %s13, %s4977
          %s4979 = sshll.u32 %s4969, 4
          %s4980 = int_to_ptr.vmem [resolvable:$true] %s4979
          %4985 = dma.vmem_to_hbm [thread:$0]  %s4980, 8064, %s4978, %s4966, 128, 128, 8
        $region76: #{tpu_custom_call.1} parent=71 // pred_fallthru
          _
      $region72: #{tpu_custom_call.1} parent=5 // pred_fallthru
        _
      %p4986 = scmp.le.s32.totalorder 2, %s22
      // Predicated region
      $region77: #{tpu_custom_call.1} parent=5 // pred_check
        %p4987 = pneg %p4986
      $region78: #{tpu_custom_call.1} parent=5 // pred_check_branch
        %4989 = sbr.rel (%p4987) target = $region80
      $region79: #{tpu_custom_call.1} parent=5 // pred_region
        %s4990 = ssub.s32 %s22, 2
        // Predicated region
        $region81: #{tpu_custom_call.1} parent=79 // pred_check
          %p4991 = pneg %p344
        $region82: #{tpu_custom_call.1} parent=79 // pred_check_branch
          %4993 = sbr.rel (%p4991) target = $region84
        $region83: #{tpu_custom_call.1} parent=79 // pred_region
          %s4994 = sand.u32 %s329, 1
          %s4995 = scalar_lea.sflag [#allocation3], %s4994
          %s4996 = sand.u32 %s329, 1
          %s4997 = smul.addr %s4996, 504
          %s4998 = scalar_lea.vmem [#allocation2], %s4997
          %4999 = dma.done %s4995, 8064
        $region84: #{tpu_custom_call.1} parent=79 // pred_fallthru
          _
      $region80: #{tpu_custom_call.1} parent=5 // pred_fallthru
        _
    $region6: #{tpu_custom_call.1} parent=1 // loop_footer
      %s26 = sadd.s32 1, %s22
    $region7: #{tpu_custom_call.1} parent=1 // loop_footer_branch
      %21 = sbr.rel target = $region3
    $region8: #{tpu_custom_call.1} parent=1 // loop_exit
      _
    %5000 = vsyncpa [#allocation3], 1
    %s5001 = scalar_lea.sflag [#allocation3], 1
    %5002 = vsyncpa %s5001, 1

</llo_original>
